<compile_context>
chip_gen: v6e
topology: v6e:2x2x1
jax: 0.10.0
libtpu: 0.0.40
codegen_flags: <defaults>
</compile_context>

<pallas_src>
import jax
import jax.numpy as jnp
from jax.experimental import pallas as pl
from jax.experimental.pallas import tpu as pltpu

# ---- small "opt" config (consistent with cgan.py's opt) --------------------
N_CLASSES = 8
LATENT_DIM = 24
CHANNELS = 1
IMG_SIZE = 16
IMG_PROD = CHANNELS * IMG_SIZE * IMG_SIZE  # 256
BATCH = 4

LEAKY_SLOPE = 0.2
BN_EPS = 0.8  # nn.BatchNorm1d(out_feat, 0.8): second positional arg is eps


# ---- kernel -----------------------------------------------------------------
def _build_kernel(b_valid, b_pad):
    """Builds the generator kernel for a (possibly padded) batch.

    b_valid: true batch size (BN statistics normalize by this).
    b_pad  : padded batch size actually carried through the kernel (>= b_valid,
             multiple of 8). Padded rows are masked out of BN statistics.
    """
    need_mask = b_valid != b_pad

    def leaky(x):
        return jnp.where(x > 0, x, LEAKY_SLOPE * x)

    def bn_leaky(x, gamma, beta):
        # Training-mode BatchNorm1d folded to a single scale/shift:
        #   scale = gamma / sqrt(var + eps); shift = beta - mean * scale
        # var computed as E[x^2] - mean^2 (one masked reduction pass).
        if need_mask:
            row = jax.lax.broadcasted_iota(jnp.int32, x.shape, 0)
            xm = jnp.where(row < b_valid, x, 0.0)
        else:
            xm = x
        inv_b = 1.0 / float(b_valid)
        mean = jnp.sum(xm, axis=0, keepdims=True) * inv_b
        ex2 = jnp.sum(xm * xm, axis=0, keepdims=True) * inv_b
        var = ex2 - mean * mean                      # biased variance
        scale = gamma * jax.lax.rsqrt(var + BN_EPS)  # rsqrt -> EUP slot
        shift = beta - mean * scale
        return leaky(x * scale + shift)

    def kernel(noise_ref, labels_ref, emb_ref,
               w1a_ref, w1b_ref, b1_ref,
               w2_ref, b2_ref, g2_ref, be2_ref,
               w3_ref, b3_ref, g3_ref, be3_ref,
               w4_ref, b4_ref, g4_ref, be4_ref,
               w5_ref, b5_ref,
               o_ref):
        # Embedding(labels) as a one-hot matmul against the VMEM-resident table
        # (exact f32 gather: one-hot rows select table rows unchanged).
        labels = labels_ref[...]                                         # (Bp,1) i32
        cls = jax.lax.broadcasted_iota(jnp.int32, (b_pad, N_CLASSES), 1)
        onehot = jnp.where(labels == cls, 1.0, 0.0)                      # (Bp,nc) f32
        emb = jnp.dot(onehot, emb_ref[...],
                      preferred_element_type=jnp.float32)                # (Bp,nc)

        # Linear([emb, noise] -> 128): concat avoided by splitting W1 rows.
        h = (jnp.dot(emb.astype(jnp.bfloat16), w1a_ref[...],
                     preferred_element_type=jnp.float32)
             + jnp.dot(noise_ref[...].astype(jnp.bfloat16), w1b_ref[...],
                       preferred_element_type=jnp.float32)
             + b1_ref[...])
        h = leaky(h)

        # block(128, 256): Linear -> BatchNorm1d -> LeakyReLU
        h = jnp.dot(h.astype(jnp.bfloat16), w2_ref[...],
                    preferred_element_type=jnp.float32) + b2_ref[...]
        h = bn_leaky(h, g2_ref[...], be2_ref[...])

        # block(256, 512)
        h = jnp.dot(h.astype(jnp.bfloat16), w3_ref[...],
                    preferred_element_type=jnp.float32) + b3_ref[...]
        h = bn_leaky(h, g3_ref[...], be3_ref[...])

        # block(512, 1024)
        h = jnp.dot(h.astype(jnp.bfloat16), w4_ref[...],
                    preferred_element_type=jnp.float32) + b4_ref[...]
        h = bn_leaky(h, g4_ref[...], be4_ref[...])

        # Linear(1024, prod(img_shape)) -> Tanh (tanh -> EUP slot)
        h = jnp.dot(h.astype(jnp.bfloat16), w5_ref[...],
                    preferred_element_type=jnp.float32) + b5_ref[...]
        o_ref[...] = jnp.tanh(h)

    return kernel


# ---- parameters -------------------------------------------------------------
def make_params(key):
    """Deterministic parameter init (shapes match the PyTorch module).

    Matmul weights are stored in bfloat16 (DMA-bound kernel -> 2x fewer weight
    bytes); biases, BN affine params and the embedding table stay float32.
    """
    dims = [LATENT_DIM + N_CLASSES, 128, 256, 512, 1024, IMG_PROD]
    keys = jax.random.split(key, 2 * (len(dims) - 1) + 1)
    params = {}
    # Embedding(n_classes, n_classes) ~ N(0, 1)
    params["emb"] = jax.random.normal(keys[0], (N_CLASSES, N_CLASSES), jnp.float32)
    for i in range(len(dims) - 1):
        fan_in, fan_out = dims[i], dims[i + 1]
        bound = float(fan_in) ** -0.5
        # stored as (in, out) so the kernel does x @ W (== x @ W_pt.T)
        w = jax.random.uniform(keys[1 + 2 * i], (fan_in, fan_out),
                               jnp.float32, -bound, bound)
        b = jax.random.uniform(keys[2 + 2 * i], (1, fan_out),
                               jnp.float32, -bound, bound)
        if i == 0:
            # Split first-layer weight: rows for the embedding / noise halves.
            params["w1a"] = w[:N_CLASSES].astype(jnp.bfloat16)
            params["w1b"] = w[N_CLASSES:].astype(jnp.bfloat16)
        else:
            params[f"w{i + 1}"] = w.astype(jnp.bfloat16)
        params[f"b{i + 1}"] = b
    # BatchNorm affine params for blocks 2..4 (gamma=1, beta=0 at init)
    for i, d in zip((2, 3, 4), (256, 512, 1024)):
        params[f"g{i}"] = jnp.ones((1, d), jnp.float32)
        params[f"be{i}"] = jnp.zeros((1, d), jnp.float32)
    return params


# ---- wrapper ----------------------------------------------------------------
@jax.jit
def generator_forward(noise, labels, params):
    b = noise.shape[0]
    b_pad = ((b + 7) // 8) * 8          # pad batch to a sublane multiple
    pad = b_pad - b
    if pad:
        noise_p = jnp.pad(noise, ((0, pad), (0, 0)))
        labels_p = jnp.pad(labels, ((0, pad),))
    else:
        noise_p, labels_p = noise, labels
    labels_2d = labels_p.astype(jnp.int32).reshape(b_pad, 1)

    args = [
        noise_p, labels_2d, params["emb"],
        params["w1a"], params["w1b"], params["b1"],
        params["w2"], params["b2"], params["g2"], params["be2"],
        params["w3"], params["b3"], params["g3"], params["be3"],
        params["w4"], params["b4"], params["g4"], params["be4"],
        params["w5"], params["b5"],
    ]
    vmem = pl.BlockSpec(memory_space=pltpu.MemorySpace.VMEM)

    # Advisory cost estimate so XLA schedules surrounding ops sensibly.
    kn_sum = (N_CLASSES * N_CLASSES
              + N_CLASSES * 128 + LATENT_DIM * 128
              + 128 * 256 + 256 * 512 + 512 * 1024 + 1024 * IMG_PROD)
    weight_bytes = 2 * (N_CLASSES * 128 + LATENT_DIM * 128 + 128 * 256
                        + 256 * 512 + 512 * 1024 + 1024 * IMG_PROD)
    small_param_bytes = 4 * (N_CLASSES * N_CLASSES + 128 + 3 * 256 + 3 * 512
                             + 3 * 1024 + IMG_PROD)
    act_bytes = 4 * b_pad * (LATENT_DIM + 1 + IMG_PROD)
    cost = pl.CostEstimate(
        flops=2 * b_pad * kn_sum,
        transcendentals=b_pad * IMG_PROD + (256 + 512 + 1024),
        bytes_accessed=weight_bytes + small_param_bytes + act_bytes,
    )

    flat_img = pl.pallas_call(
        _build_kernel(b, b_pad),
        out_shape=jax.ShapeDtypeStruct((b_pad, IMG_PROD), jnp.float32),
        in_specs=[vmem] * len(args),
        out_specs=vmem,
        cost_estimate=cost,
        compiler_params=pltpu.CompilerParams(vmem_limit_bytes=32 * 1024 * 1024),
    )(*args)
    # Drop padded rows; img.view(B, C, H, W) -> NCHW, matching PyTorch.
    return flat_img[:b].reshape(b, CHANNELS, IMG_SIZE, IMG_SIZE)


if __name__ == "__main__":
    key = jax.random.PRNGKey(0)
    k_param, k_noise, k_label = jax.random.split(key, 3)

    params = make_params(k_param)
    noise = jax.random.normal(k_noise, (BATCH, LATENT_DIM), jnp.float32)
    labels = jax.random.randint(k_label, (BATCH,), 0, N_CLASSES, jnp.int32)

    img = generator_forward(noise, labels, params)
    jax.block_until_ready(img)

    assert img.shape == (BATCH, CHANNELS, IMG_SIZE, IMG_SIZE)
    assert img.dtype == jnp.float32
    assert bool(jnp.all(jnp.isfinite(img)))
    print("KERNEL_OK")
</pallas_src>

<mosaic_0001>
module attributes {stable_mosaic.version = 11 : i64} {
  func.func @kernel(%arg0: memref<8x24xf32, #tpu.memory_space<vmem>>, %arg1: memref<8x1xi32, #tpu.memory_space<vmem>>, %arg2: memref<8x8xf32, #tpu.memory_space<vmem>>, %arg3: memref<8x128xbf16, #tpu.memory_space<vmem>>, %arg4: memref<24x128xbf16, #tpu.memory_space<vmem>>, %arg5: memref<1x128xf32, #tpu.memory_space<vmem>>, %arg6: memref<128x256xbf16, #tpu.memory_space<vmem>>, %arg7: memref<1x256xf32, #tpu.memory_space<vmem>>, %arg8: memref<1x256xf32, #tpu.memory_space<vmem>>, %arg9: memref<1x256xf32, #tpu.memory_space<vmem>>, %arg10: memref<256x512xbf16, #tpu.memory_space<vmem>>, %arg11: memref<1x512xf32, #tpu.memory_space<vmem>>, %arg12: memref<1x512xf32, #tpu.memory_space<vmem>>, %arg13: memref<1x512xf32, #tpu.memory_space<vmem>>, %arg14: memref<512x1024xbf16, #tpu.memory_space<vmem>>, %arg15: memref<1x1024xf32, #tpu.memory_space<vmem>>, %arg16: memref<1x1024xf32, #tpu.memory_space<vmem>>, %arg17: memref<1x1024xf32, #tpu.memory_space<vmem>>, %arg18: memref<1024x256xbf16, #tpu.memory_space<vmem>>, %arg19: memref<1x256xf32, #tpu.memory_space<vmem>>, %arg20: memref<8x256xf32, #tpu.memory_space<vmem>>) attributes {dimension_semantics = [], scalar_prefetch = 0 : i64, scratch_operands = 0 : i64, tpu.core_type = #tpu.core_type<tc>} {
    %c0 = arith.constant 0 : index
    %c0_0 = arith.constant 0 : index
    %0 = vector.load %arg1[%c0, %c0_0] : memref<8x1xi32, #tpu.memory_space<vmem>>, vector<8x1xi32>
    %1 = tpu.iota {dimensions = array<i32: 1>} : vector<8x8xi32>
    %2 = vector.broadcast %0 : vector<8x1xi32> to vector<8x8xi32>
    %3 = arith.cmpi eq, %2, %1 : vector<8x8xi32>
    %cst = arith.constant 1.000000e+00 : f32
    %cst_1 = arith.constant 0.000000e+00 : f32
    %4 = vector.broadcast %cst : f32 to vector<8x8xf32>
    %5 = vector.broadcast %cst_1 : f32 to vector<8x8xf32>
    %6 = arith.select %3, %4, %5 : vector<8x8xi1>, vector<8x8xf32>
    %c0_2 = arith.constant 0 : index
    %c0_3 = arith.constant 0 : index
    %7 = vector.load %arg2[%c0_2, %c0_3] : memref<8x8xf32, #tpu.memory_space<vmem>>, vector<8x8xf32>
    %cst_4 = arith.constant dense<0.000000e+00> : vector<8x8xf32>
    %8 = tpu.matmul %6, %7, %cst_4 {dimension_numbers = #tpu.dot_dimension_numbers<[1], [0], [0], [1], [0, 0, 1, 1], [], []>} : vector<8x8xf32>, vector<8x8xf32>, vector<8x8xf32> -> vector<8x8xf32>
    %9 = arith.truncf %8 : vector<8x8xf32> to vector<8x8xbf16>
    %c0_5 = arith.constant 0 : index
    %c0_6 = arith.constant 0 : index
    %10 = vector.load %arg3[%c0_5, %c0_6] : memref<8x128xbf16, #tpu.memory_space<vmem>>, vector<8x128xbf16>
    %cst_7 = arith.constant dense<0.000000e+00> : vector<8x128xf32>
    %11 = tpu.matmul %9, %10, %cst_7 {dimension_numbers = #tpu.dot_dimension_numbers<[1], [0], [0], [1], [0, 0, 1, 1], [], []>} : vector<8x8xbf16>, vector<8x128xbf16>, vector<8x128xf32> -> vector<8x128xf32>
    %c0_8 = arith.constant 0 : index
    %c0_9 = arith.constant 0 : index
    %12 = vector.load %arg0[%c0_8, %c0_9] : memref<8x24xf32, #tpu.memory_space<vmem>>, vector<8x24xf32>
    %13 = arith.truncf %12 : vector<8x24xf32> to vector<8x24xbf16>
    %c0_10 = arith.constant 0 : index
    %c0_11 = arith.constant 0 : index
    %14 = vector.load %arg4[%c0_10, %c0_11] : memref<24x128xbf16, #tpu.memory_space<vmem>>, vector<24x128xbf16>
    %cst_12 = arith.constant dense<0.000000e+00> : vector<8x128xf32>
    %15 = tpu.matmul %13, %14, %cst_12 {dimension_numbers = #tpu.dot_dimension_numbers<[1], [0], [0], [1], [0, 0, 1, 1], [], []>} : vector<8x24xbf16>, vector<24x128xbf16>, vector<8x128xf32> -> vector<8x128xf32>
    %16 = arith.addf %11, %15 : vector<8x128xf32>
    %c0_13 = arith.constant 0 : index
    %c0_14 = arith.constant 0 : index
    %17 = vector.load %arg5[%c0_13, %c0_14] : memref<1x128xf32, #tpu.memory_space<vmem>>, vector<1x128xf32>
    %18 = vector.broadcast %17 : vector<1x128xf32> to vector<8x128xf32>
    %19 = arith.addf %16, %18 : vector<8x128xf32>
    %cst_15 = arith.constant 0.000000e+00 : f32
    %20 = vector.broadcast %cst_15 : f32 to vector<8x128xf32>
    %21 = arith.cmpf ogt, %19, %20 : vector<8x128xf32>
    %cst_16 = arith.constant 2.000000e-01 : f32
    %22 = vector.broadcast %cst_16 : f32 to vector<8x128xf32>
    %23 = arith.mulf %22, %19 : vector<8x128xf32>
    %24 = arith.select %21, %19, %23 : vector<8x128xi1>, vector<8x128xf32>
    %25 = arith.truncf %24 : vector<8x128xf32> to vector<8x128xbf16>
    %c0_17 = arith.constant 0 : index
    %c0_18 = arith.constant 0 : index
    %26 = vector.load %arg6[%c0_17, %c0_18] : memref<128x256xbf16, #tpu.memory_space<vmem>>, vector<128x256xbf16>
    %cst_19 = arith.constant dense<0.000000e+00> : vector<8x256xf32>
    %27 = tpu.matmul %25, %26, %cst_19 {dimension_numbers = #tpu.dot_dimension_numbers<[1], [0], [0], [1], [0, 0, 1, 1], [], []>} : vector<8x128xbf16>, vector<128x256xbf16>, vector<8x256xf32> -> vector<8x256xf32>
    %c0_20 = arith.constant 0 : index
    %c0_21 = arith.constant 0 : index
    %28 = vector.load %arg7[%c0_20, %c0_21] : memref<1x256xf32, #tpu.memory_space<vmem>>, vector<1x256xf32>
    %29 = vector.broadcast %28 : vector<1x256xf32> to vector<8x256xf32>
    %30 = arith.addf %27, %29 : vector<8x256xf32>
    %c0_22 = arith.constant 0 : index
    %c0_23 = arith.constant 0 : index
    %31 = vector.load %arg8[%c0_22, %c0_23] : memref<1x256xf32, #tpu.memory_space<vmem>>, vector<1x256xf32>
    %c0_24 = arith.constant 0 : index
    %c0_25 = arith.constant 0 : index
    %32 = vector.load %arg9[%c0_24, %c0_25] : memref<1x256xf32, #tpu.memory_space<vmem>>, vector<1x256xf32>
    %33 = tpu.iota {dimensions = array<i32: 0>} : vector<8x256xi32>
    %c4_i32 = arith.constant 4 : i32
    %34 = vector.broadcast %c4_i32 : i32 to vector<8x256xi32>
    %35 = arith.cmpi slt, %33, %34 : vector<8x256xi32>
    %cst_26 = arith.constant 0.000000e+00 : f32
    %36 = vector.broadcast %cst_26 : f32 to vector<8x256xf32>
    %37 = arith.select %35, %30, %36 : vector<8x256xi1>, vector<8x256xf32>
    %cst_27 = arith.constant dense<0.000000e+00> : vector<256xf32>
    %38 = vector.multi_reduction <add>, %37, %cst_27 [0] : vector<8x256xf32> to vector<256xf32>
    %39 = vector.shape_cast %38 : vector<256xf32> to vector<1x256xf32>
    %cst_28 = arith.constant 2.500000e-01 : f32
    %40 = vector.broadcast %cst_28 : f32 to vector<1x256xf32>
    %41 = arith.mulf %39, %40 : vector<1x256xf32>
    %42 = arith.mulf %37, %37 : vector<8x256xf32>
    %cst_29 = arith.constant dense<0.000000e+00> : vector<256xf32>
    %43 = vector.multi_reduction <add>, %42, %cst_29 [0] : vector<8x256xf32> to vector<256xf32>
    %44 = vector.shape_cast %43 : vector<256xf32> to vector<1x256xf32>
    %cst_30 = arith.constant 2.500000e-01 : f32
    %45 = vector.broadcast %cst_30 : f32 to vector<1x256xf32>
    %46 = arith.mulf %44, %45 : vector<1x256xf32>
    %47 = arith.mulf %41, %41 : vector<1x256xf32>
    %48 = arith.subf %46, %47 : vector<1x256xf32>
    %cst_31 = arith.constant 8.000000e-01 : f32
    %49 = vector.broadcast %cst_31 : f32 to vector<1x256xf32>
    %50 = arith.addf %48, %49 : vector<1x256xf32>
    %51 = math.rsqrt %50 : vector<1x256xf32>
    %52 = arith.mulf %31, %51 : vector<1x256xf32>
    %53 = arith.mulf %41, %52 : vector<1x256xf32>
    %54 = arith.subf %32, %53 : vector<1x256xf32>
    %55 = vector.broadcast %52 : vector<1x256xf32> to vector<8x256xf32>
    %56 = arith.mulf %30, %55 : vector<8x256xf32>
    %57 = vector.broadcast %54 : vector<1x256xf32> to vector<8x256xf32>
    %58 = arith.addf %56, %57 : vector<8x256xf32>
    %cst_32 = arith.constant 0.000000e+00 : f32
    %59 = vector.broadcast %cst_32 : f32 to vector<8x256xf32>
    %60 = arith.cmpf ogt, %58, %59 : vector<8x256xf32>
    %cst_33 = arith.constant 2.000000e-01 : f32
    %61 = vector.broadcast %cst_33 : f32 to vector<8x256xf32>
    %62 = arith.mulf %61, %58 : vector<8x256xf32>
    %63 = arith.select %60, %58, %62 : vector<8x256xi1>, vector<8x256xf32>
    %64 = arith.truncf %63 : vector<8x256xf32> to vector<8x256xbf16>
    %c0_34 = arith.constant 0 : index
    %c0_35 = arith.constant 0 : index
    %65 = vector.load %arg10[%c0_34, %c0_35] : memref<256x512xbf16, #tpu.memory_space<vmem>>, vector<256x512xbf16>
    %cst_36 = arith.constant dense<0.000000e+00> : vector<8x512xf32>
    %66 = tpu.matmul %64, %65, %cst_36 {dimension_numbers = #tpu.dot_dimension_numbers<[1], [0], [0], [1], [0, 0, 1, 1], [], []>} : vector<8x256xbf16>, vector<256x512xbf16>, vector<8x512xf32> -> vector<8x512xf32>
    %c0_37 = arith.constant 0 : index
    %c0_38 = arith.constant 0 : index
    %67 = vector.load %arg11[%c0_37, %c0_38] : memref<1x512xf32, #tpu.memory_space<vmem>>, vector<1x512xf32>
    %68 = vector.broadcast %67 : vector<1x512xf32> to vector<8x512xf32>
    %69 = arith.addf %66, %68 : vector<8x512xf32>
    %c0_39 = arith.constant 0 : index
    %c0_40 = arith.constant 0 : index
    %70 = vector.load %arg12[%c0_39, %c0_40] : memref<1x512xf32, #tpu.memory_space<vmem>>, vector<1x512xf32>
    %c0_41 = arith.constant 0 : index
    %c0_42 = arith.constant 0 : index
    %71 = vector.load %arg13[%c0_41, %c0_42] : memref<1x512xf32, #tpu.memory_space<vmem>>, vector<1x512xf32>
    %72 = tpu.iota {dimensions = array<i32: 0>} : vector<8x512xi32>
    %c4_i32_43 = arith.constant 4 : i32
    %73 = vector.broadcast %c4_i32_43 : i32 to vector<8x512xi32>
    %74 = arith.cmpi slt, %72, %73 : vector<8x512xi32>
    %cst_44 = arith.constant 0.000000e+00 : f32
    %75 = vector.broadcast %cst_44 : f32 to vector<8x512xf32>
    %76 = arith.select %74, %69, %75 : vector<8x512xi1>, vector<8x512xf32>
    %cst_45 = arith.constant dense<0.000000e+00> : vector<512xf32>
    %77 = vector.multi_reduction <add>, %76, %cst_45 [0] : vector<8x512xf32> to vector<512xf32>
    %78 = vector.shape_cast %77 : vector<512xf32> to vector<1x512xf32>
    %cst_46 = arith.constant 2.500000e-01 : f32
    %79 = vector.broadcast %cst_46 : f32 to vector<1x512xf32>
    %80 = arith.mulf %78, %79 : vector<1x512xf32>
    %81 = arith.mulf %76, %76 : vector<8x512xf32>
    %cst_47 = arith.constant dense<0.000000e+00> : vector<512xf32>
    %82 = vector.multi_reduction <add>, %81, %cst_47 [0] : vector<8x512xf32> to vector<512xf32>
    %83 = vector.shape_cast %82 : vector<512xf32> to vector<1x512xf32>
    %cst_48 = arith.constant 2.500000e-01 : f32
    %84 = vector.broadcast %cst_48 : f32 to vector<1x512xf32>
    %85 = arith.mulf %83, %84 : vector<1x512xf32>
    %86 = arith.mulf %80, %80 : vector<1x512xf32>
    %87 = arith.subf %85, %86 : vector<1x512xf32>
    %cst_49 = arith.constant 8.000000e-01 : f32
    %88 = vector.broadcast %cst_49 : f32 to vector<1x512xf32>
    %89 = arith.addf %87, %88 : vector<1x512xf32>
    %90 = math.rsqrt %89 : vector<1x512xf32>
    %91 = arith.mulf %70, %90 : vector<1x512xf32>
    %92 = arith.mulf %80, %91 : vector<1x512xf32>
    %93 = arith.subf %71, %92 : vector<1x512xf32>
    %94 = vector.broadcast %91 : vector<1x512xf32> to vector<8x512xf32>
    %95 = arith.mulf %69, %94 : vector<8x512xf32>
    %96 = vector.broadcast %93 : vector<1x512xf32> to vector<8x512xf32>
    %97 = arith.addf %95, %96 : vector<8x512xf32>
    %cst_50 = arith.constant 0.000000e+00 : f32
    %98 = vector.broadcast %cst_50 : f32 to vector<8x512xf32>
    %99 = arith.cmpf ogt, %97, %98 : vector<8x512xf32>
    %cst_51 = arith.constant 2.000000e-01 : f32
    %100 = vector.broadcast %cst_51 : f32 to vector<8x512xf32>
    %101 = arith.mulf %100, %97 : vector<8x512xf32>
    %102 = arith.select %99, %97, %101 : vector<8x512xi1>, vector<8x512xf32>
    %103 = arith.truncf %102 : vector<8x512xf32> to vector<8x512xbf16>
    %c0_52 = arith.constant 0 : index
    %c0_53 = arith.constant 0 : index
    %104 = vector.load %arg14[%c0_52, %c0_53] : memref<512x1024xbf16, #tpu.memory_space<vmem>>, vector<512x1024xbf16>
    %cst_54 = arith.constant dense<0.000000e+00> : vector<8x1024xf32>
    %105 = tpu.matmul %103, %104, %cst_54 {dimension_numbers = #tpu.dot_dimension_numbers<[1], [0], [0], [1], [0, 0, 1, 1], [], []>} : vector<8x512xbf16>, vector<512x1024xbf16>, vector<8x1024xf32> -> vector<8x1024xf32>
    %c0_55 = arith.constant 0 : index
    %c0_56 = arith.constant 0 : index
    %106 = vector.load %arg15[%c0_55, %c0_56] : memref<1x1024xf32, #tpu.memory_space<vmem>>, vector<1x1024xf32>
    %107 = vector.broadcast %106 : vector<1x1024xf32> to vector<8x1024xf32>
    %108 = arith.addf %105, %107 : vector<8x1024xf32>
    %c0_57 = arith.constant 0 : index
    %c0_58 = arith.constant 0 : index
    %109 = vector.load %arg16[%c0_57, %c0_58] : memref<1x1024xf32, #tpu.memory_space<vmem>>, vector<1x1024xf32>
    %c0_59 = arith.constant 0 : index
    %c0_60 = arith.constant 0 : index
    %110 = vector.load %arg17[%c0_59, %c0_60] : memref<1x1024xf32, #tpu.memory_space<vmem>>, vector<1x1024xf32>
    %111 = tpu.iota {dimensions = array<i32: 0>} : vector<8x1024xi32>
    %c4_i32_61 = arith.constant 4 : i32
    %112 = vector.broadcast %c4_i32_61 : i32 to vector<8x1024xi32>
    %113 = arith.cmpi slt, %111, %112 : vector<8x1024xi32>
    %cst_62 = arith.constant 0.000000e+00 : f32
    %114 = vector.broadcast %cst_62 : f32 to vector<8x1024xf32>
    %115 = arith.select %113, %108, %114 : vector<8x1024xi1>, vector<8x1024xf32>
    %cst_63 = arith.constant dense<0.000000e+00> : vector<1024xf32>
    %116 = vector.multi_reduction <add>, %115, %cst_63 [0] : vector<8x1024xf32> to vector<1024xf32>
    %117 = vector.shape_cast %116 : vector<1024xf32> to vector<1x1024xf32>
    %cst_64 = arith.constant 2.500000e-01 : f32
    %118 = vector.broadcast %cst_64 : f32 to vector<1x1024xf32>
    %119 = arith.mulf %117, %118 : vector<1x1024xf32>
    %120 = arith.mulf %115, %115 : vector<8x1024xf32>
    %cst_65 = arith.constant dense<0.000000e+00> : vector<1024xf32>
    %121 = vector.multi_reduction <add>, %120, %cst_65 [0] : vector<8x1024xf32> to vector<1024xf32>
    %122 = vector.shape_cast %121 : vector<1024xf32> to vector<1x1024xf32>
    %cst_66 = arith.constant 2.500000e-01 : f32
    %123 = vector.broadcast %cst_66 : f32 to vector<1x1024xf32>
    %124 = arith.mulf %122, %123 : vector<1x1024xf32>
    %125 = arith.mulf %119, %119 : vector<1x1024xf32>
    %126 = arith.subf %124, %125 : vector<1x1024xf32>
    %cst_67 = arith.constant 8.000000e-01 : f32
    %127 = vector.broadcast %cst_67 : f32 to vector<1x1024xf32>
    %128 = arith.addf %126, %127 : vector<1x1024xf32>
    %129 = math.rsqrt %128 : vector<1x1024xf32>
    %130 = arith.mulf %109, %129 : vector<1x1024xf32>
    %131 = arith.mulf %119, %130 : vector<1x1024xf32>
    %132 = arith.subf %110, %131 : vector<1x1024xf32>
    %133 = vector.broadcast %130 : vector<1x1024xf32> to vector<8x1024xf32>
    %134 = arith.mulf %108, %133 : vector<8x1024xf32>
    %135 = vector.broadcast %132 : vector<1x1024xf32> to vector<8x1024xf32>
    %136 = arith.addf %134, %135 : vector<8x1024xf32>
    %cst_68 = arith.constant 0.000000e+00 : f32
    %137 = vector.broadcast %cst_68 : f32 to vector<8x1024xf32>
    %138 = arith.cmpf ogt, %136, %137 : vector<8x1024xf32>
    %cst_69 = arith.constant 2.000000e-01 : f32
    %139 = vector.broadcast %cst_69 : f32 to vector<8x1024xf32>
    %140 = arith.mulf %139, %136 : vector<8x1024xf32>
    %141 = arith.select %138, %136, %140 : vector<8x1024xi1>, vector<8x1024xf32>
    %142 = arith.truncf %141 : vector<8x1024xf32> to vector<8x1024xbf16>
    %c0_70 = arith.constant 0 : index
    %c0_71 = arith.constant 0 : index
    %143 = vector.load %arg18[%c0_70, %c0_71] : memref<1024x256xbf16, #tpu.memory_space<vmem>>, vector<1024x256xbf16>
    %cst_72 = arith.constant dense<0.000000e+00> : vector<8x256xf32>
    %144 = tpu.matmul %142, %143, %cst_72 {dimension_numbers = #tpu.dot_dimension_numbers<[1], [0], [0], [1], [0, 0, 1, 1], [], []>} : vector<8x1024xbf16>, vector<1024x256xbf16>, vector<8x256xf32> -> vector<8x256xf32>
    %c0_73 = arith.constant 0 : index
    %c0_74 = arith.constant 0 : index
    %145 = vector.load %arg19[%c0_73, %c0_74] : memref<1x256xf32, #tpu.memory_space<vmem>>, vector<1x256xf32>
    %146 = vector.broadcast %145 : vector<1x256xf32> to vector<8x256xf32>
    %147 = arith.addf %144, %146 : vector<8x256xf32>
    %148 = math.tanh %147 : vector<8x256xf32>
    %c0_75 = arith.constant 0 : index
    %c0_76 = arith.constant 0 : index
    %149 = vector.load %arg20[%c0_75, %c0_76] : memref<8x256xf32, #tpu.memory_space<vmem>>, vector<8x256xf32>
    tpu.vector_store %arg20[%c0_75, %c0_76], %148 {strides = array<i32>} : memref<8x256xf32, #tpu.memory_space<vmem>>, vector<8x256xf32>,
    return
  }
}

</mosaic_0001>

<llo_original>
// kernel: generator_forward.1
$region0: #{generator_forward.1}
  #allocation0 [shape = 'u32[]', space=smem, size = 0x4, offset = 0x4, fixed_abs, tag = 'smem constant byte address 0x4 - core index']
  #allocation1 [shape = 'u32[144,128]{1,0:T(1,128)}', space=vmem, size = 0x12000, scoped, tag = 'internal scratch']
  %s0 = inlined_call_operand.vmem [shape: f32[8,24], index: 0, kind: input, shape index: {}]
  %s1 = inlined_call_operand.vmem [shape: s32[8,1], index: 1, kind: input, shape index: {}]
  %s2 = inlined_call_operand.vmem [shape: f32[8,8], index: 2, kind: input, shape index: {}]
  %s3 = inlined_call_operand.vmem [shape: bf16[8,128], index: 3, kind: input, shape index: {}]
  %s4 = inlined_call_operand.vmem [shape: bf16[24,128], index: 4, kind: input, shape index: {}]
  %s5 = inlined_call_operand.hbm [shape: f32[1,128], index: 5, kind: input, shape index: {}]
  %s6 = inlined_call_operand.hbm [shape: bf16[128,256], index: 6, kind: input, shape index: {}]
  %s7 = inlined_call_operand.hbm [shape: f32[1,256], index: 7, kind: input, shape index: {}]
  %s8 = inlined_call_operand.hbm [shape: f32[1,256], index: 8, kind: input, shape index: {}]
  %s9 = inlined_call_operand.hbm [shape: f32[1,256], index: 9, kind: input, shape index: {}]
  %s10 = inlined_call_operand.hbm [shape: bf16[256,512], index: 10, kind: input, shape index: {}]
  %s11 = inlined_call_operand.hbm [shape: f32[1,512], index: 11, kind: input, shape index: {}]
  %s12 = inlined_call_operand.vmem [shape: f32[1,512], index: 12, kind: input, shape index: {}]
  %s13 = inlined_call_operand.hbm [shape: f32[1,512], index: 13, kind: input, shape index: {}]
  %s14 = inlined_call_operand.hbm [shape: bf16[512,1024], index: 14, kind: input, shape index: {}]
  %s15 = inlined_call_operand.vmem [shape: f32[1,1024], index: 15, kind: input, shape index: {}]
  %s16 = inlined_call_operand.vmem [shape: f32[1,1024], index: 16, kind: input, shape index: {}]
  %s17 = inlined_call_operand.hbm [shape: f32[1,1024], index: 17, kind: input, shape index: {}]
  %s18 = inlined_call_operand.hbm [shape: bf16[1024,256], index: 18, kind: input, shape index: {}]
  %s19 = inlined_call_operand.hbm [shape: f32[1,256], index: 19, kind: input, shape index: {}]
  %s20 = inlined_call_operand.vmem [shape: f32[8,256], index: 20, kind: output, shape index: {}]
  %s21 = sld [smem:[#allocation0]]
  $region138: #{generator_forward.1} parent=0
    _
  %s23 = ssub.s32 1, %s21
  %s24 = scalar_select 0, %s23, %s21
  $region1: #{generator_forward.1} parent=0
    #allocation2 [shape = 'u8[512]{0}', space=vmem, size = 0x400, scoped, tag = 'input window, operand 5, single buffered']
    #allocation3 [shape = 's32[1]{0}', space=sflag, size = 0x4, scoped, tag = 'scoped memory for generator_forward.1']
    #allocation4 [shape = 'u8[65536]{0}', space=vmem, size = 0x10000, scoped, tag = 'input window, operand 6, single buffered']
    #allocation5 [shape = 's32[1]{0}', space=sflag, size = 0x4, scoped, tag = 'scoped memory for generator_forward.1']
    #allocation6 [shape = 'u8[1024]{0}', space=vmem, size = 0x400, scoped, tag = 'input window, operand 7, single buffered']
    #allocation7 [shape = 'u8[1024]{0}', space=vmem, size = 0x400, scoped, tag = 'input window, operand 8, single buffered']
    #allocation8 [shape = 's32[1]{0}', space=sflag, size = 0x4, scoped, tag = 'scoped memory for generator_forward.1']
    #allocation9 [shape = 'u8[1024]{0}', space=vmem, size = 0x400, scoped, tag = 'input window, operand 9, single buffered']
    #allocation10 [shape = 'u8[262144]{0}', space=vmem, size = 0x40000, scoped, tag = 'input window, operand 10, single buffered']
    #allocation11 [shape = 's32[1]{0}', space=sflag, size = 0x4, scoped, tag = 'scoped memory for generator_forward.1']
    #allocation12 [shape = 'u8[2048]{0}', space=vmem, size = 0x800, scoped, tag = 'input window, operand 11, single buffered']
    #allocation13 [shape = 'u8[2048]{0}', space=vmem, size = 0x800, scoped, tag = 'input window, operand 13, single buffered']
    #allocation14 [shape = 's32[1]{0}', space=sflag, size = 0x4, scoped, tag = 'scoped memory for generator_forward.1']
    #allocation15 [shape = 'u8[1048576]{0}', space=vmem, size = 0x100000, scoped, tag = 'input window, operand 14, single buffered']
    #allocation16 [shape = 'u8[4096]{0}', space=vmem, size = 0x1000, scoped, tag = 'input window, operand 17, single buffered']
    #allocation17 [shape = 's32[1]{0}', space=sflag, size = 0x4, scoped, tag = 'scoped memory for generator_forward.1']
    #allocation18 [shape = 'u8[524288]{0}', space=vmem, size = 0x80000, scoped, tag = 'input window, operand 18, single buffered']
    #allocation19 [shape = 'u8[1024]{0}', space=vmem, size = 0x400, scoped, tag = 'input window, operand 19, single buffered']
    #allocation20 [shape = 's32[1]{0}', space=sflag, size = 0x4, scoped, tag = 'scoped memory for generator_forward.1']
    %25 = vsyncpa [#allocation3], 0
    %26 = vsyncpa [#allocation5], 0
    %27 = vsyncpa [#allocation8], 0
    %28 = vsyncpa [#allocation11], 0
    %29 = vsyncpa [#allocation14], 0
    %30 = vsyncpa [#allocation17], 0
    %31 = vsyncpa [#allocation20], 0
    // Predicated region
    $region2: #{generator_forward.1} parent=1 // pred_check
      _
    $region3: #{generator_forward.1} parent=1 // pred_check_branch
      %33 = sbr.rel (0) target = $region5
    $region4: #{generator_forward.1} parent=1 // pred_region
      _
    $region5: #{generator_forward.1} parent=1 // pred_fallthru
      _
    // Predicated region
    $region6: #{generator_forward.1} parent=1 // pred_check
      _
    $region7: #{generator_forward.1} parent=1 // pred_check_branch
      %35 = sbr.rel (0) target = $region9
    $region8: #{generator_forward.1} parent=1 // pred_region
      _
    $region9: #{generator_forward.1} parent=1 // pred_fallthru
      _
    // Predicated region
    $region10: #{generator_forward.1} parent=1 // pred_check
      _
    $region11: #{generator_forward.1} parent=1 // pred_check_branch
      %37 = sbr.rel (0) target = $region13
    $region12: #{generator_forward.1} parent=1 // pred_region
      _
    $region13: #{generator_forward.1} parent=1 // pred_fallthru
      _
    // Predicated region
    $region14: #{generator_forward.1} parent=1 // pred_check
      _
    $region15: #{generator_forward.1} parent=1 // pred_check_branch
      %39 = sbr.rel (0) target = $region17
    $region16: #{generator_forward.1} parent=1 // pred_region
      _
    $region17: #{generator_forward.1} parent=1 // pred_fallthru
      _
    // Predicated region
    $region18: #{generator_forward.1} parent=1 // pred_check
      _
    $region19: #{generator_forward.1} parent=1 // pred_check_branch
      %41 = sbr.rel (0) target = $region21
    $region20: #{generator_forward.1} parent=1 // pred_region
      _
    $region21: #{generator_forward.1} parent=1 // pred_fallthru
      _
    // Predicated region
    $region22: #{generator_forward.1} parent=1 // pred_check
      _
    $region23: #{generator_forward.1} parent=1 // pred_check_branch
      %43 = sbr.rel (0) target = $region25
    $region24: #{generator_forward.1} parent=1 // pred_region
      %s45 = ssub.s32 16, 16
      %46 = vsyncadd [#allocation3], %s45
      %s48 = sshll.u32 [#allocation2], 4
      %s49 = int_to_ptr.vmem [resolvable:$true] %s48
      %51 = dma.hbm_to_vmem [thread:$0]  %s5, 16, %s49, [#allocation3]
    $region25: #{generator_forward.1} parent=1 // pred_fallthru
      _
    // Predicated region
    $region26: #{generator_forward.1} parent=1 // pred_check
      _
    $region27: #{generator_forward.1} parent=1 // pred_check_branch
      %53 = sbr.rel (0) target = $region29
    $region28: #{generator_forward.1} parent=1 // pred_region
      %s55 = ssub.s32 2048, 2048
      %56 = vsyncadd [#allocation5], %s55
      %s57 = sshll.u32 [#allocation4], 4
      %s58 = int_to_ptr.vmem [resolvable:$true] %s57
      %63 = dma.hbm_to_vmem [thread:$0]  %s6, 2048, %s58, [#allocation5], 128, 128, 8
    $region29: #{generator_forward.1} parent=1 // pred_fallthru
      _
    // Predicated region
    $region30: #{generator_forward.1} parent=1 // pred_check
      _
    $region31: #{generator_forward.1} parent=1 // pred_check_branch
      %65 = sbr.rel (0) target = $region33
    $region32: #{generator_forward.1} parent=1 // pred_region
      %s67 = ssub.s32 32, 32
      %68 = vsyncadd [#allocation5], %s67
      %s70 = sshll.u32 [#allocation6], 4
      %s71 = int_to_ptr.vmem [resolvable:$true] %s70
      %73 = dma.hbm_to_vmem [thread:$0]  %s7, 32, %s71, [#allocation5]
    $region33: #{generator_forward.1} parent=1 // pred_fallthru
      _
    // Predicated region
    $region34: #{generator_forward.1} parent=1 // pred_check
      _
    $region35: #{generator_forward.1} parent=1 // pred_check_branch
      %75 = sbr.rel (0) target = $region37
    $region36: #{generator_forward.1} parent=1 // pred_region
      %s77 = ssub.s32 32, 32
      %78 = vsyncadd [#allocation8], %s77
      %s80 = sshll.u32 [#allocation7], 4
      %s81 = int_to_ptr.vmem [resolvable:$true] %s80
      %83 = dma.hbm_to_vmem [thread:$0]  %s8, 32, %s81, [#allocation8]
    $region37: #{generator_forward.1} parent=1 // pred_fallthru
      _
    // Predicated region
    $region38: #{generator_forward.1} parent=1 // pred_check
      _
    $region39: #{generator_forward.1} parent=1 // pred_check_branch
      %85 = sbr.rel (0) target = $region41
    $region40: #{generator_forward.1} parent=1 // pred_region
      %s87 = ssub.s32 32, 32
      %88 = vsyncadd [#allocation8], %s87
      %s90 = sshll.u32 [#allocation9], 4
      %s91 = int_to_ptr.vmem [resolvable:$true] %s90
      %93 = dma.hbm_to_vmem [thread:$0]  %s9, 32, %s91, [#allocation8]
    $region41: #{generator_forward.1} parent=1 // pred_fallthru
      _
    // Predicated region
    $region42: #{generator_forward.1} parent=1 // pred_check
      _
    $region43: #{generator_forward.1} parent=1 // pred_check_branch
      %95 = sbr.rel (0) target = $region45
    $region44: #{generator_forward.1} parent=1 // pred_region
      %s97 = ssub.s32 8192, 8192
      %98 = vsyncadd [#allocation11], %s97
      %s99 = sshll.u32 [#allocation10], 4
      %s100 = int_to_ptr.vmem [resolvable:$true] %s99
      %105 = dma.hbm_to_vmem [thread:$0]  %s10, 8192, %s100, [#allocation11], 256, 256, 16
    $region45: #{generator_forward.1} parent=1 // pred_fallthru
      _
    // Predicated region
    $region46: #{generator_forward.1} parent=1 // pred_check
      _
    $region47: #{generator_forward.1} parent=1 // pred_check_branch
      %107 = sbr.rel (0) target = $region49
    $region48: #{generator_forward.1} parent=1 // pred_region
      %s109 = ssub.s32 64, 64
      %110 = vsyncadd [#allocation11], %s109
      %s112 = sshll.u32 [#allocation12], 4
      %s113 = int_to_ptr.vmem [resolvable:$true] %s112
      %115 = dma.hbm_to_vmem [thread:$0]  %s11, 64, %s113, [#allocation11]
    $region49: #{generator_forward.1} parent=1 // pred_fallthru
      _
    // Predicated region
    $region50: #{generator_forward.1} parent=1 // pred_check
      _
    $region51: #{generator_forward.1} parent=1 // pred_check_branch
      %117 = sbr.rel (0) target = $region53
    $region52: #{generator_forward.1} parent=1 // pred_region
      _
    $region53: #{generator_forward.1} parent=1 // pred_fallthru
      _
    // Predicated region
    $region54: #{generator_forward.1} parent=1 // pred_check
      _
    $region55: #{generator_forward.1} parent=1 // pred_check_branch
      %119 = sbr.rel (0) target = $region57
    $region56: #{generator_forward.1} parent=1 // pred_region
      %s121 = ssub.s32 64, 64
      %122 = vsyncadd [#allocation14], %s121
      %s124 = sshll.u32 [#allocation13], 4
      %s125 = int_to_ptr.vmem [resolvable:$true] %s124
      %127 = dma.hbm_to_vmem [thread:$0]  %s13, 64, %s125, [#allocation14]
    $region57: #{generator_forward.1} parent=1 // pred_fallthru
      _
    // Predicated region
    $region58: #{generator_forward.1} parent=1 // pred_check
      _
    $region59: #{generator_forward.1} parent=1 // pred_check_branch
      %129 = sbr.rel (0) target = $region61
    $region60: #{generator_forward.1} parent=1 // pred_region
      %s131 = ssub.s32 32768, 32768
      %132 = vsyncadd [#allocation14], %s131
      %s133 = sshll.u32 [#allocation15], 4
      %s134 = int_to_ptr.vmem [resolvable:$true] %s133
      %139 = dma.hbm_to_vmem [thread:$0]  %s14, 32768, %s134, [#allocation14], 512, 512, 32
    $region61: #{generator_forward.1} parent=1 // pred_fallthru
      _
    // Predicated region
    $region62: #{generator_forward.1} parent=1 // pred_check
      _
    $region63: #{generator_forward.1} parent=1 // pred_check_branch
      %141 = sbr.rel (0) target = $region65
    $region64: #{generator_forward.1} parent=1 // pred_region
      _
    $region65: #{generator_forward.1} parent=1 // pred_fallthru
      _
    // Predicated region
    $region66: #{generator_forward.1} parent=1 // pred_check
      _
    $region67: #{generator_forward.1} parent=1 // pred_check_branch
      %143 = sbr.rel (0) target = $region69
    $region68: #{generator_forward.1} parent=1 // pred_region
      _
    $region69: #{generator_forward.1} parent=1 // pred_fallthru
      _
    // Predicated region
    $region70: #{generator_forward.1} parent=1 // pred_check
      _
    $region71: #{generator_forward.1} parent=1 // pred_check_branch
      %145 = sbr.rel (0) target = $region73
    $region72: #{generator_forward.1} parent=1 // pred_region
      %s147 = ssub.s32 128, 128
      %148 = vsyncadd [#allocation17], %s147
      %s150 = sshll.u32 [#allocation16], 4
      %s151 = int_to_ptr.vmem [resolvable:$true] %s150
      %153 = dma.hbm_to_vmem [thread:$0]  %s17, 128, %s151, [#allocation17]
    $region73: #{generator_forward.1} parent=1 // pred_fallthru
      _
    // Predicated region
    $region74: #{generator_forward.1} parent=1 // pred_check
      _
    $region75: #{generator_forward.1} parent=1 // pred_check_branch
      %155 = sbr.rel (0) target = $region77
    $region76: #{generator_forward.1} parent=1 // pred_region
      %s157 = ssub.s32 16384, 16384
      %158 = vsyncadd [#allocation17], %s157
      %s159 = sshll.u32 [#allocation18], 4
      %s160 = int_to_ptr.vmem [resolvable:$true] %s159
      %165 = dma.hbm_to_vmem [thread:$0]  %s18, 16384, %s160, [#allocation17], 128, 128, 8
    $region77: #{generator_forward.1} parent=1 // pred_fallthru
      _
    // Predicated region
    $region78: #{generator_forward.1} parent=1 // pred_check
      _
    $region79: #{generator_forward.1} parent=1 // pred_check_branch
      %167 = sbr.rel (0) target = $region81
    $region80: #{generator_forward.1} parent=1 // pred_region
      %s169 = ssub.s32 32, 32
      %170 = vsyncadd [#allocation20], %s169
      %s172 = sshll.u32 [#allocation19], 4
      %s173 = int_to_ptr.vmem [resolvable:$true] %s172
      %175 = dma.hbm_to_vmem [thread:$0]  %s19, 32, %s173, [#allocation20]
    $region81: #{generator_forward.1} parent=1 // pred_fallthru
      _
    // Predicated region
    $region82: #{generator_forward.1} parent=1 // pred_check
      _
    $region83: #{generator_forward.1} parent=1 // pred_check_branch
      %177 = sbr.rel (0) target = $region85
    $region84: #{generator_forward.1} parent=1 // pred_region
      %178 = dma.done [#allocation3], 16
    $region85: #{generator_forward.1} parent=1 // pred_fallthru
      _
    // Predicated region
    $region86: #{generator_forward.1} parent=1 // pred_check
      _
    $region87: #{generator_forward.1} parent=1 // pred_check_branch
      %180 = sbr.rel (0) target = $region89
    $region88: #{generator_forward.1} parent=1 // pred_region
      %181 = dma.done [#allocation5], 2048
    $region89: #{generator_forward.1} parent=1 // pred_fallthru
      _
    // Predicated region
    $region90: #{generator_forward.1} parent=1 // pred_check
      _
    $region91: #{generator_forward.1} parent=1 // pred_check_branch
      %183 = sbr.rel (0) target = $region93
    $region92: #{generator_forward.1} parent=1 // pred_region
      %184 = dma.done [#allocation5], 32
    $region93: #{generator_forward.1} parent=1 // pred_fallthru
      _
    // Predicated region
    $region94: #{generator_forward.1} parent=1 // pred_check
      _
    $region95: #{generator_forward.1} parent=1 // pred_check_branch
      %186 = sbr.rel (0) target = $region97
    $region96: #{generator_forward.1} parent=1 // pred_region
      %187 = dma.done [#allocation8], 32
    $region97: #{generator_forward.1} parent=1 // pred_fallthru
      _
    // Predicated region
    $region98: #{generator_forward.1} parent=1 // pred_check
      _
    $region99: #{generator_forward.1} parent=1 // pred_check_branch
      %189 = sbr.rel (0) target = $region101
    $region100: #{generator_forward.1} parent=1 // pred_region
      %190 = dma.done [#allocation8], 32
    $region101: #{generator_forward.1} parent=1 // pred_fallthru
      _
    // Predicated region
    $region102: #{generator_forward.1} parent=1 // pred_check
      _
    $region103: #{generator_forward.1} parent=1 // pred_check_branch
      %192 = sbr.rel (0) target = $region105
    $region104: #{generator_forward.1} parent=1 // pred_region
      %193 = dma.done [#allocation11], 8192
    $region105: #{generator_forward.1} parent=1 // pred_fallthru
      _
    // Predicated region
    $region106: #{generator_forward.1} parent=1 // pred_check
      _
    $region107: #{generator_forward.1} parent=1 // pred_check_branch
      %195 = sbr.rel (0) target = $region109
    $region108: #{generator_forward.1} parent=1 // pred_region
      %196 = dma.done [#allocation11], 64
    $region109: #{generator_forward.1} parent=1 // pred_fallthru
      _
    // Predicated region
    $region110: #{generator_forward.1} parent=1 // pred_check
      _
    $region111: #{generator_forward.1} parent=1 // pred_check_branch
      %198 = sbr.rel (0) target = $region113
    $region112: #{generator_forward.1} parent=1 // pred_region
      %199 = dma.done [#allocation14], 64
    $region113: #{generator_forward.1} parent=1 // pred_fallthru
      _
    // Predicated region
    $region114: #{generator_forward.1} parent=1 // pred_check
      _
    $region115: #{generator_forward.1} parent=1 // pred_check_branch
      %201 = sbr.rel (0) target = $region117
    $region116: #{generator_forward.1} parent=1 // pred_region
      %202 = dma.done [#allocation14], 32768
    $region117: #{generator_forward.1} parent=1 // pred_fallthru
      _
    // Predicated region
    $region118: #{generator_forward.1} parent=1 // pred_check
      _
    $region119: #{generator_forward.1} parent=1 // pred_check_branch
      %204 = sbr.rel (0) target = $region121
    $region120: #{generator_forward.1} parent=1 // pred_region
      %205 = dma.done [#allocation17], 128
    $region121: #{generator_forward.1} parent=1 // pred_fallthru
      _
    // Predicated region
    $region122: #{generator_forward.1} parent=1 // pred_check
      _
    $region123: #{generator_forward.1} parent=1 // pred_check_branch
      %207 = sbr.rel (0) target = $region125
    $region124: #{generator_forward.1} parent=1 // pred_region
      %208 = dma.done [#allocation17], 16384
    $region125: #{generator_forward.1} parent=1 // pred_fallthru
      _
    // Predicated region
    $region126: #{generator_forward.1} parent=1 // pred_check
      _
    $region127: #{generator_forward.1} parent=1 // pred_check_branch
      %210 = sbr.rel (0) target = $region129
    $region128: #{generator_forward.1} parent=1 // pred_region
      %211 = dma.done [#allocation20], 32
    $region129: #{generator_forward.1} parent=1 // pred_fallthru
      _
    %v213 = vld [vmem:[%s1] sm:$0xff]
    %v214 = vlaneseq
    %v215 = vand.u32 %v214, 127
    %216 = vset.pattern.permute.xlu0 0
    %217 = vperm.xlu0 %216, %v213
    %v218 = vpop.permute.xlu0 %217
    %vm219 = vcmp.eq.s32.totalorder %v218, %v215
    %v220 = vsel %vm219, 1.0, 0.0
    %v221 = vld [vmem:[%s2] sm:$0xff]
    %vm222 = vcmask 64512
    %v224 = vsel %vm222, %v220, 0
    %226 = vmatprep.subr.mxu0 0.0
    %227 = vmatpush1.msra.mxu0 0.0
    %228 = vmatprep.subr.mxu0 0.0
    %229 = vmatpush1.msra.mxu0 0.0
    %230 = vmatprep.subr.mxu0 0.0
    %231 = vmatpush1.msra.mxu0 0.0
    %232 = vmatprep.subr.mxu0 0.0
    %233 = vmatpush1.msra.mxu0 0.0
    %234 = vmatprep.subr.mxu0 0.0
    %235 = vmatpush1.msra.mxu0 0.0
    %236 = vmatprep.subr.mxu0 0.0
    %237 = vmatpush1.msra.mxu0 0.0
    %238 = vmatprep.subr.mxu0 0.0
    %239 = vmatpush1.msra.mxu0 0.0
    %240 = vmatprep.subr.mxu0 0.0
    %241 = vmatpush1.msra.mxu0 0.0
    %242 = vmatprep.subr.mxu0 0.0
    %243 = vmatpush1.msra.mxu0 0.0
    %244 = vmatprep.subr.mxu0 0.0
    %245 = vmatpush1.msra.mxu0 0.0
    %246 = vmatprep.subr.mxu0 0.0
    %247 = vmatpush1.msra.mxu0 0.0
    %248 = vmatprep.subr.mxu0 0.0
    %249 = vmatpush1.msra.mxu0 0.0
    %250 = vmatprep.subr.mxu0 0.0
    %251 = vmatpush1.msra.mxu0 0.0
    %252 = vmatprep.subr.mxu0 0.0
    %253 = vmatpush1.msra.mxu0 0.0
    %254 = vmatprep.subr.mxu0 0.0
    %255 = vmatpush1.msra.mxu0 0.0
    %256 = vmatprep.subr.mxu0 0.0
    %257 = vmatpush1.msra.mxu0 %v221
    %258 = vmatprep.subr.mxu0 0.0
    %259 = vmatpush2.msra.mxu0 0.0
    %260 = vmatprep.subr.mxu0 0.0
    %261 = vmatpush2.msra.mxu0 0.0
    %262 = vmatprep.subr.mxu0 0.0
    %263 = vmatpush2.msra.mxu0 0.0
    %264 = vmatprep.subr.mxu0 0.0
    %265 = vmatpush2.msra.mxu0 0.0
    %266 = vmatprep.subr.mxu0 0.0
    %267 = vmatpush2.msra.mxu0 0.0
    %268 = vmatprep.subr.mxu0 0.0
    %269 = vmatpush2.msra.mxu0 0.0
    %270 = vmatprep.subr.mxu0 0.0
    %271 = vmatpush2.msra.mxu0 0.0
    %272 = vmatprep.subr.mxu0 0.0
    %273 = vmatpush2.msra.mxu0 0.0
    %274 = vmatprep.subr.mxu0 0.0
    %275 = vmatpush2.msra.mxu0 0.0
    %276 = vmatprep.subr.mxu0 0.0
    %277 = vmatpush2.msra.mxu0 0.0
    %278 = vmatprep.subr.mxu0 0.0
    %279 = vmatpush2.msra.mxu0 0.0
    %280 = vmatprep.subr.mxu0 0.0
    %281 = vmatpush2.msra.mxu0 0.0
    %282 = vmatprep.subr.mxu0 0.0
    %283 = vmatpush2.msra.mxu0 0.0
    %284 = vmatprep.subr.mxu0 0.0
    %285 = vmatpush2.msra.mxu0 0.0
    %286 = vmatprep.subr.mxu0 0.0
    %287 = vmatpush2.msra.mxu0 0.0
    %288 = vmatprep.subr.mxu0 0.0
    %289 = vmatpush2.msra.mxu0 0.0
    %290 = vmatprep.mubr.f32.mxu0 0.0
    %291 = vmatmul.mubr.f32.gmra.mxu0 %v224
    %v292 = vpop.f32.mrf.mxu0
    %v293 = vadd.f32 0.0, %v292
    %v294 = vpop.f32.mrf.mxu0
    %295 = vdwg.mxu0
    %v296 = vpack.c.bf16 %v293, %v293
    %v297 = vld [vmem:[%s3] sm:$0xf]
    %v298 = vld [vmem:[%s0] sm:$0xff]
    %v299 = vpack.c.bf16 %v298, %v298
    %v300 = vld [vmem:[%s4] sm:$0xf]
    %v301 = vld [vmem:[%s4 + $0x4] sm:$0xf]
    %v302 = vld [vmem:[%s4 + $0x8] sm:$0xf]
    %v306 = vunpack.c.l.b16 %v300
    %v307 = vunpack.c.l.b16 %v301
    %v308 = vunpack.c.l.b16 %v302
    %v309 = vpack.c.b16 %v307, %v306
    %v310 = vpack.c.b16 %v308, %v308
    %vm312 = vcmask 195584
    %v314 = vsel %vm312, %v299, 0
    %vm316 = vcmask 1043456
    %v318 = vsel %vm316, %v310, 0
    %320 = vmatprep.subr.bf16.mxu0 0
    %321 = vmatpush1.bf16.msra.mxu0 0
    %322 = vmatprep.subr.bf16.mxu0 0
    %323 = vmatpush1.bf16.msra.mxu0 0
    %324 = vmatprep.subr.bf16.mxu0 0
    %325 = vmatpush1.bf16.msra.mxu0 0
    %326 = vmatprep.subr.bf16.mxu0 0
    %327 = vmatpush1.bf16.msra.mxu0 0
    %328 = vmatprep.subr.bf16.mxu0 0
    %329 = vmatpush1.bf16.msra.mxu0 0
    %330 = vmatprep.subr.bf16.mxu0 0
    %331 = vmatpush1.bf16.msra.mxu0 0
    %332 = vmatprep.subr.bf16.mxu0 0
    %333 = vmatpush1.bf16.msra.mxu0 %v318
    %334 = vmatprep.subr.bf16.mxu0 0
    %335 = vmatpush1.bf16.msra.mxu0 %v309
    %336 = vmatprep.subr.bf16.mxu0 0
    %337 = vmatpush2.bf16.msra.mxu0 0
    %338 = vmatprep.subr.bf16.mxu0 0
    %339 = vmatpush2.bf16.msra.mxu0 0
    %340 = vmatprep.subr.bf16.mxu0 0
    %341 = vmatpush2.bf16.msra.mxu0 0
    %342 = vmatprep.subr.bf16.mxu0 0
    %343 = vmatpush2.bf16.msra.mxu0 0
    %344 = vmatprep.subr.bf16.mxu0 0
    %345 = vmatpush2.bf16.msra.mxu0 0
    %346 = vmatprep.subr.bf16.mxu0 0
    %347 = vmatpush2.bf16.msra.mxu0 0
    %348 = vmatprep.subr.bf16.mxu0 0
    %349 = vmatpush2.bf16.msra.mxu0 0
    %350 = vmatprep.subr.bf16.mxu0 0
    %351 = vmatpush2.bf16.msra.mxu0 0
    %352 = vmatprep.mubr.bf16.mxu0 0
    %353 = vmatmul.mubr.bf16.gmra.mxu0 %v314
    %v354 = vpop.f32.mrf.mxu0
    %v355 = vadd.f32 0.0, %v354
    %v356 = vpop.f32.mrf.mxu0
    %v357 = vpop.f32.mrf.mxu0
    %v358 = vpop.f32.mrf.mxu0
    %359 = vdwg.mxu0
    %v361 = vsel %vm222, %v296, 0
    %v364 = vsel %vm316, %v297, 0
    %366 = vmatprep.subr.bf16.mxu0 0
    %367 = vmatpush1.bf16.msra.mxu0 0
    %368 = vmatprep.subr.bf16.mxu0 0
    %369 = vmatpush1.bf16.msra.mxu0 0
    %370 = vmatprep.subr.bf16.mxu0 0
    %371 = vmatpush1.bf16.msra.mxu0 0
    %372 = vmatprep.subr.bf16.mxu0 0
    %373 = vmatpush1.bf16.msra.mxu0 0
    %374 = vmatprep.subr.bf16.mxu0 0
    %375 = vmatpush1.bf16.msra.mxu0 0
    %376 = vmatprep.subr.bf16.mxu0 0
    %377 = vmatpush1.bf16.msra.mxu0 0
    %378 = vmatprep.subr.bf16.mxu0 0
    %379 = vmatpush1.bf16.msra.mxu0 0
    %380 = vmatprep.subr.bf16.mxu0 0
    %381 = vmatpush1.bf16.msra.mxu0 %v364
    %382 = vmatprep.subr.bf16.mxu0 0
    %383 = vmatpush2.bf16.msra.mxu0 0
    %384 = vmatprep.subr.bf16.mxu0 0
    %385 = vmatpush2.bf16.msra.mxu0 0
    %386 = vmatprep.subr.bf16.mxu0 0
    %387 = vmatpush2.bf16.msra.mxu0 0
    %388 = vmatprep.subr.bf16.mxu0 0
    %389 = vmatpush2.bf16.msra.mxu0 0
    %390 = vmatprep.subr.bf16.mxu0 0
    %391 = vmatpush2.bf16.msra.mxu0 0
    %392 = vmatprep.subr.bf16.mxu0 0
    %393 = vmatpush2.bf16.msra.mxu0 0
    %394 = vmatprep.subr.bf16.mxu0 0
    %395 = vmatpush2.bf16.msra.mxu0 0
    %396 = vmatprep.subr.bf16.mxu0 0
    %397 = vmatpush2.bf16.msra.mxu0 0
    %398 = vmatprep.mubr.bf16.mxu0 0
    %399 = vmatmul.mubr.bf16.gmra.mxu0 %v361
    %v400 = vpop.f32.mrf.mxu0
    %v401 = vadd.f32 %v355, %v400
    %v402 = vpop.f32.mrf.mxu0
    %v403 = vpop.f32.mrf.mxu0
    %v404 = vpop.f32.mrf.mxu0
    %405 = vdwg.mxu0
    %v406 = vld [vmem:[#allocation2] sm:$0x1]
    %v408 = vlaneseq
    %v409 = vshrl.u32 %v408, 7
    %v410 = vsub.s32 0, %v409
    %v411 = vrot.slane %v406, %v410
    %v413 = vadd.f32 %v401, %v411
    %vm414 = vcmp.gt.f32.partialorder %v413, 0.0
    %v415 = vmul.f32 %v413, 0.2
    %v416 = vsel %vm414, %v413, %v415
    %v417 = vpack.c.bf16 %v416, %v416
    %v418 = vld [vmem:[#allocation4] sm:$0xff]
    %v419 = vld [vmem:[#allocation4 + $0x8] sm:$0xff]
    %v420 = vld [vmem:[#allocation4 + $0x10] sm:$0xff]
    %v421 = vld [vmem:[#allocation4 + $0x18] sm:$0xff]
    %v422 = vld [vmem:[#allocation4 + $0x20] sm:$0xff]
    %v423 = vld [vmem:[#allocation4 + $0x28] sm:$0xff]
    %v424 = vld [vmem:[#allocation4 + $0x30] sm:$0xff]
    %v425 = vld [vmem:[#allocation4 + $0x38] sm:$0xff]
    %v426 = vld [vmem:[#allocation4 + $0x40] sm:$0xff]
    %v427 = vld [vmem:[#allocation4 + $0x48] sm:$0xff]
    %v428 = vld [vmem:[#allocation4 + $0x50] sm:$0xff]
    %v429 = vld [vmem:[#allocation4 + $0x58] sm:$0xff]
    %v430 = vld [vmem:[#allocation4 + $0x60] sm:$0xff]
    %v431 = vld [vmem:[#allocation4 + $0x68] sm:$0xff]
    %v432 = vld [vmem:[#allocation4 + $0x70] sm:$0xff]
    %v433 = vld [vmem:[#allocation4 + $0x78] sm:$0xff]
    %v434 = vld [vmem:[#allocation6] sm:$0x3]
    %v436 = vlaneseq
    %v437 = vshrl.u32 %v436, 7
    %v438 = vsub.s32 0, %v437
    %v439 = vrot.slane %v434, %v438
    %v440 = vlaneseq
    %v441 = vshrl.u32 %v440, 7
    %v442 = vsub.s32 1, %v441
    %v443 = vrot.slane %v434, %v442
    %v462 = vunpack.c.l.b16 %v418
    %v463 = vunpack.c.h.b16 %v418
    %v464 = vunpack.c.l.b16 %v419
    %v465 = vunpack.c.h.b16 %v419
    %v466 = vunpack.c.l.b16 %v420
    %v467 = vunpack.c.h.b16 %v420
    %v468 = vunpack.c.l.b16 %v421
    %v469 = vunpack.c.h.b16 %v421
    %v470 = vunpack.c.l.b16 %v422
    %v471 = vunpack.c.h.b16 %v422
    %v472 = vunpack.c.l.b16 %v423
    %v473 = vunpack.c.h.b16 %v423
    %v474 = vunpack.c.l.b16 %v424
    %v475 = vunpack.c.h.b16 %v424
    %v476 = vunpack.c.l.b16 %v425
    %v477 = vunpack.c.h.b16 %v425
    %v478 = vunpack.c.l.b16 %v426
    %v479 = vunpack.c.h.b16 %v426
    %v480 = vunpack.c.l.b16 %v427
    %v481 = vunpack.c.h.b16 %v427
    %v482 = vunpack.c.l.b16 %v428
    %v483 = vunpack.c.h.b16 %v428
    %v484 = vunpack.c.l.b16 %v429
    %v485 = vunpack.c.h.b16 %v429
    %v486 = vunpack.c.l.b16 %v430
    %v487 = vunpack.c.h.b16 %v430
    %v488 = vunpack.c.l.b16 %v431
    %v489 = vunpack.c.h.b16 %v431
    %v490 = vunpack.c.l.b16 %v432
    %v491 = vunpack.c.h.b16 %v432
    %v492 = vunpack.c.l.b16 %v433
    %v493 = vunpack.c.h.b16 %v433
    %v494 = vpack.c.b16 %v464, %v462
    %v495 = vpack.c.b16 %v465, %v463
    %v496 = vpack.c.b16 %v468, %v466
    %v497 = vpack.c.b16 %v469, %v467
    %v498 = vpack.c.b16 %v472, %v470
    %v499 = vpack.c.b16 %v473, %v471
    %v500 = vpack.c.b16 %v476, %v474
    %v501 = vpack.c.b16 %v477, %v475
    %v502 = vpack.c.b16 %v480, %v478
    %v503 = vpack.c.b16 %v481, %v479
    %v504 = vpack.c.b16 %v484, %v482
    %v505 = vpack.c.b16 %v485, %v483
    %v506 = vpack.c.b16 %v488, %v486
    %v507 = vpack.c.b16 %v489, %v487
    %v508 = vpack.c.b16 %v492, %v490
    %v509 = vpack.c.b16 %v493, %v491
    %526 = vmatprep.subr.bf16.mxu0 %v509
    %527 = vmatpush1.bf16.msra.mxu0 %v508
    %528 = vmatprep.subr.bf16.mxu0 %v507
    %529 = vmatpush1.bf16.msra.mxu0 %v506
    %530 = vmatprep.subr.bf16.mxu0 %v505
    %531 = vmatpush1.bf16.msra.mxu0 %v504
    %532 = vmatprep.subr.bf16.mxu0 %v503
    %533 = vmatpush1.bf16.msra.mxu0 %v502
    %534 = vmatprep.subr.bf16.mxu0 %v501
    %535 = vmatpush1.bf16.msra.mxu0 %v500
    %536 = vmatprep.subr.bf16.mxu0 %v499
    %537 = vmatpush1.bf16.msra.mxu0 %v498
    %538 = vmatprep.subr.bf16.mxu0 %v497
    %539 = vmatpush1.bf16.msra.mxu0 %v496
    %540 = vmatprep.subr.bf16.mxu0 %v495
    %541 = vmatpush1.bf16.msra.mxu0 %v494
    %542 = vmatprep.subr.bf16.mxu0 0
    %543 = vmatpush2.bf16.msra.mxu0 0
    %544 = vmatprep.subr.bf16.mxu0 0
    %545 = vmatpush2.bf16.msra.mxu0 0
    %546 = vmatprep.subr.bf16.mxu0 0
    %547 = vmatpush2.bf16.msra.mxu0 0
    %548 = vmatprep.subr.bf16.mxu0 0
    %549 = vmatpush2.bf16.msra.mxu0 0
    %550 = vmatprep.subr.bf16.mxu0 0
    %551 = vmatpush2.bf16.msra.mxu0 0
    %552 = vmatprep.subr.bf16.mxu0 0
    %553 = vmatpush2.bf16.msra.mxu0 0
    %554 = vmatprep.subr.bf16.mxu0 0
    %555 = vmatpush2.bf16.msra.mxu0 0
    %556 = vmatprep.subr.bf16.mxu0 0
    %557 = vmatpush2.bf16.msra.mxu0 0
    %558 = vmatprep.mubr.bf16.mxu0 0
    %559 = vmatmul.mubr.bf16.gmra.mxu0 %v417
    %v560 = vpop.f32.mrf.mxu0
    %v561 = vadd.f32 %v439, %v560
    %v562 = vpop.f32.mrf.mxu0
    %v563 = vadd.f32 %v443, %v562
    %v564 = vpop.f32.mrf.mxu0
    %v565 = vpop.f32.mrf.mxu0
    %566 = vdwg.mxu0
    %v567 = vld [vmem:[#allocation7] sm:$0x3]
    %v568 = vld [vmem:[#allocation9] sm:$0x3]
    %v569 = vlaneseq
    %v570 = vshrl.u32 %v569, 7
    %vm571 = vcmp.lt.s32.totalorder %v570, 4
    %v572 = vsel %vm571, %v561, 0.0
    %v573 = vsel %vm571, %v563, 0.0
    %v574 = vrot.slane %v572, 4
    %v575 = vadd.f32 %v572, %v574
    %v576 = vrot.slane %v575, 2
    %v577 = vadd.f32 %v575, %v576
    %v578 = vrot.slane %v577, 1
    %v579 = vadd.f32 %v577, %v578
    %v580 = vrot.slane %v573, 4
    %v581 = vadd.f32 %v573, %v580
    %v582 = vrot.slane %v581, 2
    %v583 = vadd.f32 %v581, %v582
    %v584 = vrot.slane %v583, 1
    %v585 = vadd.f32 %v583, %v584
    %v586 = vmul.f32 %v579, 0.25
    %v587 = vmul.f32 %v585, 0.25
    %v588 = vmul.f32 %v572, %v572
    %v589 = vmul.f32 %v573, %v573
    %v590 = vrot.slane %v588, 4
    %v591 = vadd.f32 %v588, %v590
    %v592 = vrot.slane %v591, 2
    %v593 = vadd.f32 %v591, %v592
    %v594 = vrot.slane %v593, 1
    %v595 = vadd.f32 %v593, %v594
    %v596 = vrot.slane %v589, 4
    %v597 = vadd.f32 %v589, %v596
    %v598 = vrot.slane %v597, 2
    %v599 = vadd.f32 %v597, %v598
    %v600 = vrot.slane %v599, 1
    %v601 = vadd.f32 %v599, %v600
    %v602 = vmul.f32 %v595, 0.25
    %v603 = vmul.f32 %v601, 0.25
    %v604 = vmul.f32 %v586, %v586
    %v605 = vmul.f32 %v587, %v587
    %v606 = vsub.f32 %v602, %v604
    %v607 = vsub.f32 %v603, %v605
    %v608 = vadd.f32 %v606, 0.8
    %v609 = vadd.f32 %v607, 0.8
    %v610 = vrsqrt.pop %v608
    %v611 = vrsqrt.pop %v609
    %v614 = vcombine.low %v610, %v611
    %v616 = vunpack.c.l.s4 1966171168
    %v617 = vunpack.c.0.s8 %v616
    %v618 = vlaneseq
    %v619 = vshrl.u32 %v618, 7
    %v620 = vsub.s32 %v617, %v619
    %v621 = vrot.slane %v614, %v620
    %v623 = vunpack.c.l.s4 1966171168
    %v624 = vunpack.c.0.s8 %v623
    %v625 = vlaneseq
    %v626 = vshrl.u32 %v625, 7
    %v627 = vsub.s32 %v624, %v626
    %v628 = vrot.slane %v621, %v627
    %v630 = vmul.f32 %v567, %v628
    %v632 = vlaneseq
    %v633 = vshrl.u32 %v632, 7
    %v634 = vsub.s32 0, %v633
    %v635 = vrot.slane %v630, %v634
    %v636 = vlaneseq
    %v637 = vshrl.u32 %v636, 7
    %v638 = vsub.s32 1, %v637
    %v639 = vrot.slane %v630, %v638
    %v642 = vmul.f32 %v586, %v635
    %v643 = vmul.f32 %v587, %v639
    %v646 = vcombine.low %v642, %v643
    %v648 = vunpack.c.l.s4 1966171168
    %v649 = vunpack.c.0.s8 %v648
    %v650 = vlaneseq
    %v651 = vshrl.u32 %v650, 7
    %v652 = vsub.s32 %v649, %v651
    %v653 = vrot.slane %v646, %v652
    %v655 = vunpack.c.l.s4 1966171168
    %v656 = vunpack.c.0.s8 %v655
    %v657 = vlaneseq
    %v658 = vshrl.u32 %v657, 7
    %v659 = vsub.s32 %v656, %v658
    %v660 = vrot.slane %v653, %v659
    %v662 = vsub.f32 %v568, %v660
    %v663 = vmul.f32 %v561, %v635
    %v664 = vmul.f32 %v563, %v639
    %v666 = vlaneseq
    %v667 = vshrl.u32 %v666, 7
    %v668 = vsub.s32 0, %v667
    %v669 = vrot.slane %v662, %v668
    %v670 = vlaneseq
    %v671 = vshrl.u32 %v670, 7
    %v672 = vsub.s32 1, %v671
    %v673 = vrot.slane %v662, %v672
    %v676 = vadd.f32 %v663, %v669
    %v677 = vadd.f32 %v664, %v673
    %vm678 = vcmp.gt.f32.partialorder %v676, 0.0
    %vm679 = vcmp.gt.f32.partialorder %v677, 0.0
    %v680 = vmul.f32 %v676, 0.2
    %v681 = vmul.f32 %v677, 0.2
    %v682 = vsel %vm678, %v676, %v680
    %v683 = vsel %vm679, %v677, %v681
    %v684 = vpack.c.bf16 %v682, %v682
    %v685 = vpack.c.bf16 %v683, %v683
    %v686 = vld [vmem:[#allocation10] sm:$0xff]
    %v687 = vld [vmem:[#allocation10 + $0x8] sm:$0xff]
    %v688 = vld [vmem:[#allocation10 + $0x10] sm:$0xff]
    %v689 = vld [vmem:[#allocation10 + $0x18] sm:$0xff]
    %v690 = vld [vmem:[#allocation10 + $0x20] sm:$0xff]
    %v691 = vld [vmem:[#allocation10 + $0x28] sm:$0xff]
    %v692 = vld [vmem:[#allocation10 + $0x30] sm:$0xff]
    %v693 = vld [vmem:[#allocation10 + $0x38] sm:$0xff]
    %v694 = vld [vmem:[#allocation10 + $0x40] sm:$0xff]
    %v695 = vld [vmem:[#allocation10 + $0x48] sm:$0xff]
    %v696 = vld [vmem:[#allocation10 + $0x50] sm:$0xff]
    %v697 = vld [vmem:[#allocation10 + $0x58] sm:$0xff]
    %v698 = vld [vmem:[#allocation10 + $0x60] sm:$0xff]
    %v699 = vld [vmem:[#allocation10 + $0x68] sm:$0xff]
    %v700 = vld [vmem:[#allocation10 + $0x70] sm:$0xff]
    %v701 = vld [vmem:[#allocation10 + $0x78] sm:$0xff]
    %v702 = vld [vmem:[#allocation10 + $0x80] sm:$0xff]
    %v703 = vld [vmem:[#allocation10 + $0x88] sm:$0xff]
    %v704 = vld [vmem:[#allocation10 + $0x90] sm:$0xff]
    %v705 = vld [vmem:[#allocation10 + $0x98] sm:$0xff]
    %v706 = vld [vmem:[#allocation10 + $0xa0] sm:$0xff]
    %v707 = vld [vmem:[#allocation10 + $0xa8] sm:$0xff]
    %v708 = vld [vmem:[#allocation10 + $0xb0] sm:$0xff]
    %v709 = vld [vmem:[#allocation10 + $0xb8] sm:$0xff]
    %v710 = vld [vmem:[#allocation10 + $0xc0] sm:$0xff]
    %v711 = vld [vmem:[#allocation10 + $0xc8] sm:$0xff]
    %v712 = vld [vmem:[#allocation10 + $0xd0] sm:$0xff]
    %v713 = vld [vmem:[#allocation10 + $0xd8] sm:$0xff]
    %v714 = vld [vmem:[#allocation10 + $0xe0] sm:$0xff]
    %v715 = vld [vmem:[#allocation10 + $0xe8] sm:$0xff]
    %v716 = vld [vmem:[#allocation10 + $0xf0] sm:$0xff]
    %v717 = vld [vmem:[#allocation10 + $0xf8] sm:$0xff]
    %v718 = vld [vmem:[#allocation10 + $0x100] sm:$0xff]
    %v719 = vld [vmem:[#allocation10 + $0x108] sm:$0xff]
    %v720 = vld [vmem:[#allocation10 + $0x110] sm:$0xff]
    %v721 = vld [vmem:[#allocation10 + $0x118] sm:$0xff]
    %v722 = vld [vmem:[#allocation10 + $0x120] sm:$0xff]
    %v723 = vld [vmem:[#allocation10 + $0x128] sm:$0xff]
    %v724 = vld [vmem:[#allocation10 + $0x130] sm:$0xff]
    %v725 = vld [vmem:[#allocation10 + $0x138] sm:$0xff]
    %v726 = vld [vmem:[#allocation10 + $0x140] sm:$0xff]
    %v727 = vld [vmem:[#allocation10 + $0x148] sm:$0xff]
    %v728 = vld [vmem:[#allocation10 + $0x150] sm:$0xff]
    %v729 = vld [vmem:[#allocation10 + $0x158] sm:$0xff]
    %v730 = vld [vmem:[#allocation10 + $0x160] sm:$0xff]
    %v731 = vld [vmem:[#allocation10 + $0x168] sm:$0xff]
    %v732 = vld [vmem:[#allocation10 + $0x170] sm:$0xff]
    %v733 = vld [vmem:[#allocation10 + $0x178] sm:$0xff]
    %v734 = vld [vmem:[#allocation10 + $0x180] sm:$0xff]
    %v735 = vld [vmem:[#allocation10 + $0x188] sm:$0xff]
    %v736 = vld [vmem:[#allocation10 + $0x190] sm:$0xff]
    %v737 = vld [vmem:[#allocation10 + $0x198] sm:$0xff]
    %v738 = vld [vmem:[#allocation10 + $0x1a0] sm:$0xff]
    %v739 = vld [vmem:[#allocation10 + $0x1a8] sm:$0xff]
    %v740 = vld [vmem:[#allocation10 + $0x1b0] sm:$0xff]
    %v741 = vld [vmem:[#allocation10 + $0x1b8] sm:$0xff]
    %v742 = vld [vmem:[#allocation10 + $0x1c0] sm:$0xff]
    %v743 = vld [vmem:[#allocation10 + $0x1c8] sm:$0xff]
    %v744 = vld [vmem:[#allocation10 + $0x1d0] sm:$0xff]
    %v745 = vld [vmem:[#allocation10 + $0x1d8] sm:$0xff]
    %v746 = vld [vmem:[#allocation10 + $0x1e0] sm:$0xff]
    %v747 = vld [vmem:[#allocation10 + $0x1e8] sm:$0xff]
    %v748 = vld [vmem:[#allocation10 + $0x1f0] sm:$0xff]
    %v749 = vld [vmem:[#allocation10 + $0x1f8] sm:$0xff]
    %v750 = vld [vmem:[#allocation12] sm:$0xf]
    %v752 = vlaneseq
    %v753 = vshrl.u32 %v752, 7
    %v754 = vsub.s32 0, %v753
    %v755 = vrot.slane %v750, %v754
    %v756 = vlaneseq
    %v757 = vshrl.u32 %v756, 7
    %v758 = vsub.s32 1, %v757
    %v759 = vrot.slane %v750, %v758
    %v760 = vlaneseq
    %v761 = vshrl.u32 %v760, 7
    %v762 = vsub.s32 2, %v761
    %v763 = vrot.slane %v750, %v762
    %v764 = vlaneseq
    %v765 = vshrl.u32 %v764, 7
    %v766 = vsub.s32 3, %v765
    %v767 = vrot.slane %v750, %v766
    %v836 = vunpack.c.l.b16 %v686
    %v837 = vunpack.c.h.b16 %v686
    %v838 = vunpack.c.l.b16 %v687
    %v839 = vunpack.c.h.b16 %v687
    %v840 = vunpack.c.l.b16 %v688
    %v841 = vunpack.c.h.b16 %v688
    %v842 = vunpack.c.l.b16 %v689
    %v843 = vunpack.c.h.b16 %v689
    %v844 = vunpack.c.l.b16 %v690
    %v845 = vunpack.c.h.b16 %v690
    %v846 = vunpack.c.l.b16 %v691
    %v847 = vunpack.c.h.b16 %v691
    %v848 = vunpack.c.l.b16 %v692
    %v849 = vunpack.c.h.b16 %v692
    %v850 = vunpack.c.l.b16 %v693
    %v851 = vunpack.c.h.b16 %v693
    %v852 = vunpack.c.l.b16 %v694
    %v853 = vunpack.c.h.b16 %v694
    %v854 = vunpack.c.l.b16 %v695
    %v855 = vunpack.c.h.b16 %v695
    %v856 = vunpack.c.l.b16 %v696
    %v857 = vunpack.c.h.b16 %v696
    %v858 = vunpack.c.l.b16 %v697
    %v859 = vunpack.c.h.b16 %v697
    %v860 = vunpack.c.l.b16 %v698
    %v861 = vunpack.c.h.b16 %v698
    %v862 = vunpack.c.l.b16 %v699
    %v863 = vunpack.c.h.b16 %v699
    %v864 = vunpack.c.l.b16 %v700
    %v865 = vunpack.c.h.b16 %v700
    %v866 = vunpack.c.l.b16 %v701
    %v867 = vunpack.c.h.b16 %v701
    %v868 = vunpack.c.l.b16 %v702
    %v869 = vunpack.c.h.b16 %v702
    %v870 = vunpack.c.l.b16 %v703
    %v871 = vunpack.c.h.b16 %v703
    %v872 = vunpack.c.l.b16 %v704
    %v873 = vunpack.c.h.b16 %v704
    %v874 = vunpack.c.l.b16 %v705
    %v875 = vunpack.c.h.b16 %v705
    %v876 = vunpack.c.l.b16 %v706
    %v877 = vunpack.c.h.b16 %v706
    %v878 = vunpack.c.l.b16 %v707
    %v879 = vunpack.c.h.b16 %v707
    %v880 = vunpack.c.l.b16 %v708
    %v881 = vunpack.c.h.b16 %v708
    %v882 = vunpack.c.l.b16 %v709
    %v883 = vunpack.c.h.b16 %v709
    %v884 = vunpack.c.l.b16 %v710
    %v885 = vunpack.c.h.b16 %v710
    %v886 = vunpack.c.l.b16 %v711
    %v887 = vunpack.c.h.b16 %v711
    %v888 = vunpack.c.l.b16 %v712
    %v889 = vunpack.c.h.b16 %v712
    %v890 = vunpack.c.l.b16 %v713
    %v891 = vunpack.c.h.b16 %v713
    %v892 = vunpack.c.l.b16 %v714
    %v893 = vunpack.c.h.b16 %v714
    %v894 = vunpack.c.l.b16 %v715
    %v895 = vunpack.c.h.b16 %v715
    %v896 = vunpack.c.l.b16 %v716
    %v897 = vunpack.c.h.b16 %v716
    %v898 = vunpack.c.l.b16 %v717
    %v899 = vunpack.c.h.b16 %v717
    %v900 = vunpack.c.l.b16 %v718
    %v901 = vunpack.c.h.b16 %v718
    %v902 = vunpack.c.l.b16 %v719
    %v903 = vunpack.c.h.b16 %v719
    %v904 = vunpack.c.l.b16 %v720
    %v905 = vunpack.c.h.b16 %v720
    %v906 = vunpack.c.l.b16 %v721
    %v907 = vunpack.c.h.b16 %v721
    %v908 = vunpack.c.l.b16 %v722
    %v909 = vunpack.c.h.b16 %v722
    %v910 = vunpack.c.l.b16 %v723
    %v911 = vunpack.c.h.b16 %v723
    %v912 = vunpack.c.l.b16 %v724
    %v913 = vunpack.c.h.b16 %v724
    %v914 = vunpack.c.l.b16 %v725
    %v915 = vunpack.c.h.b16 %v725
    %v916 = vunpack.c.l.b16 %v726
    %v917 = vunpack.c.h.b16 %v726
    %v918 = vunpack.c.l.b16 %v727
    %v919 = vunpack.c.h.b16 %v727
    %v920 = vunpack.c.l.b16 %v728
    %v921 = vunpack.c.h.b16 %v728
    %v922 = vunpack.c.l.b16 %v729
    %v923 = vunpack.c.h.b16 %v729
    %v924 = vunpack.c.l.b16 %v730
    %v925 = vunpack.c.h.b16 %v730
    %v926 = vunpack.c.l.b16 %v731
    %v927 = vunpack.c.h.b16 %v731
    %v928 = vunpack.c.l.b16 %v732
    %v929 = vunpack.c.h.b16 %v732
    %v930 = vunpack.c.l.b16 %v733
    %v931 = vunpack.c.h.b16 %v733
    %v932 = vunpack.c.l.b16 %v734
    %v933 = vunpack.c.h.b16 %v734
    %v934 = vunpack.c.l.b16 %v735
    %v935 = vunpack.c.h.b16 %v735
    %v936 = vunpack.c.l.b16 %v736
    %v937 = vunpack.c.h.b16 %v736
    %v938 = vunpack.c.l.b16 %v737
    %v939 = vunpack.c.h.b16 %v737
    %v940 = vunpack.c.l.b16 %v738
    %v941 = vunpack.c.h.b16 %v738
    %v942 = vunpack.c.l.b16 %v739
    %v943 = vunpack.c.h.b16 %v739
    %v944 = vunpack.c.l.b16 %v740
    %v945 = vunpack.c.h.b16 %v740
    %v946 = vunpack.c.l.b16 %v741
    %v947 = vunpack.c.h.b16 %v741
    %v948 = vunpack.c.l.b16 %v742
    %v949 = vunpack.c.h.b16 %v742
    %v950 = vunpack.c.l.b16 %v743
    %v951 = vunpack.c.h.b16 %v743
    %v952 = vunpack.c.l.b16 %v744
    %v953 = vunpack.c.h.b16 %v744
    %v954 = vunpack.c.l.b16 %v745
    %v955 = vunpack.c.h.b16 %v745
    %v956 = vunpack.c.l.b16 %v746
    %v957 = vunpack.c.h.b16 %v746
    %v958 = vunpack.c.l.b16 %v747
    %v959 = vunpack.c.h.b16 %v747
    %v960 = vunpack.c.l.b16 %v748
    %v961 = vunpack.c.h.b16 %v748
    %v962 = vunpack.c.l.b16 %v749
    %v963 = vunpack.c.h.b16 %v749
    %v964 = vpack.c.b16 %v840, %v836
    %v965 = vpack.c.b16 %v841, %v837
    %v966 = vpack.c.b16 %v842, %v838
    %v967 = vpack.c.b16 %v843, %v839
    %v968 = vpack.c.b16 %v848, %v844
    %v969 = vpack.c.b16 %v849, %v845
    %v970 = vpack.c.b16 %v850, %v846
    %v971 = vpack.c.b16 %v851, %v847
    %v972 = vpack.c.b16 %v856, %v852
    %v973 = vpack.c.b16 %v857, %v853
    %v974 = vpack.c.b16 %v858, %v854
    %v975 = vpack.c.b16 %v859, %v855
    %v976 = vpack.c.b16 %v864, %v860
    %v977 = vpack.c.b16 %v865, %v861
    %v978 = vpack.c.b16 %v866, %v862
    %v979 = vpack.c.b16 %v867, %v863
    %v980 = vpack.c.b16 %v872, %v868
    %v981 = vpack.c.b16 %v873, %v869
    %v982 = vpack.c.b16 %v874, %v870
    %v983 = vpack.c.b16 %v875, %v871
    %v984 = vpack.c.b16 %v880, %v876
    %v985 = vpack.c.b16 %v881, %v877
    %v986 = vpack.c.b16 %v882, %v878
    %v987 = vpack.c.b16 %v883, %v879
    %v988 = vpack.c.b16 %v888, %v884
    %v989 = vpack.c.b16 %v889, %v885
    %v990 = vpack.c.b16 %v890, %v886
    %v991 = vpack.c.b16 %v891, %v887
    %v992 = vpack.c.b16 %v896, %v892
    %v993 = vpack.c.b16 %v897, %v893
    %v994 = vpack.c.b16 %v898, %v894
    %v995 = vpack.c.b16 %v899, %v895
    %v996 = vpack.c.b16 %v904, %v900
    %v997 = vpack.c.b16 %v905, %v901
    %v998 = vpack.c.b16 %v906, %v902
    %v999 = vpack.c.b16 %v907, %v903
    %v1000 = vpack.c.b16 %v912, %v908
    %v1001 = vpack.c.b16 %v913, %v909
    %v1002 = vpack.c.b16 %v914, %v910
    %v1003 = vpack.c.b16 %v915, %v911
    %v1004 = vpack.c.b16 %v920, %v916
    %v1005 = vpack.c.b16 %v921, %v917
    %v1006 = vpack.c.b16 %v922, %v918
    %v1007 = vpack.c.b16 %v923, %v919
    %v1008 = vpack.c.b16 %v928, %v924
    %v1009 = vpack.c.b16 %v929, %v925
    %v1010 = vpack.c.b16 %v930, %v926
    %v1011 = vpack.c.b16 %v931, %v927
    %v1012 = vpack.c.b16 %v936, %v932
    %v1013 = vpack.c.b16 %v937, %v933
    %v1014 = vpack.c.b16 %v938, %v934
    %v1015 = vpack.c.b16 %v939, %v935
    %v1016 = vpack.c.b16 %v944, %v940
    %v1017 = vpack.c.b16 %v945, %v941
    %v1018 = vpack.c.b16 %v946, %v942
    %v1019 = vpack.c.b16 %v947, %v943
    %v1020 = vpack.c.b16 %v952, %v948
    %v1021 = vpack.c.b16 %v953, %v949
    %v1022 = vpack.c.b16 %v954, %v950
    %v1023 = vpack.c.b16 %v955, %v951
    %v1024 = vpack.c.b16 %v960, %v956
    %v1025 = vpack.c.b16 %v961, %v957
    %v1026 = vpack.c.b16 %v962, %v958
    %v1027 = vpack.c.b16 %v963, %v959
    %1092 = vmatprep.subr.bf16.mxu0 %v993
    %1093 = vmatpush1.bf16.msra.mxu0 %v992
    %1094 = vmatprep.subr.bf16.mxu0 %v989
    %1095 = vmatpush1.bf16.msra.mxu0 %v988
    %1096 = vmatprep.subr.bf16.mxu0 %v985
    %1097 = vmatpush1.bf16.msra.mxu0 %v984
    %1098 = vmatprep.subr.bf16.mxu0 %v981
    %1099 = vmatpush1.bf16.msra.mxu0 %v980
    %1100 = vmatprep.subr.bf16.mxu0 %v977
    %1101 = vmatpush1.bf16.msra.mxu0 %v976
    %1102 = vmatprep.subr.bf16.mxu0 %v973
    %1103 = vmatpush1.bf16.msra.mxu0 %v972
    %1104 = vmatprep.subr.bf16.mxu0 %v969
    %1105 = vmatpush1.bf16.msra.mxu0 %v968
    %1106 = vmatprep.subr.bf16.mxu0 %v965
    %1107 = vmatpush1.bf16.msra.mxu0 %v964
    %1108 = vmatprep.subr.bf16.mxu0 %v1025
    %1109 = vmatpush2.bf16.msra.mxu0 %v1024
    %1110 = vmatprep.subr.bf16.mxu0 %v1021
    %1111 = vmatpush2.bf16.msra.mxu0 %v1020
    %1112 = vmatprep.subr.bf16.mxu0 %v1017
    %1113 = vmatpush2.bf16.msra.mxu0 %v1016
    %1114 = vmatprep.subr.bf16.mxu0 %v1013
    %1115 = vmatpush2.bf16.msra.mxu0 %v1012
    %1116 = vmatprep.subr.bf16.mxu0 %v1009
    %1117 = vmatpush2.bf16.msra.mxu0 %v1008
    %1118 = vmatprep.subr.bf16.mxu0 %v1005
    %1119 = vmatpush2.bf16.msra.mxu0 %v1004
    %1120 = vmatprep.subr.bf16.mxu0 %v1001
    %1121 = vmatpush2.bf16.msra.mxu0 %v1000
    %1122 = vmatprep.subr.bf16.mxu0 %v997
    %1123 = vmatpush2.bf16.msra.mxu0 %v996
    %1124 = vmatprep.mubr.bf16.mxu0 %v685
    %1125 = vmatmul.mubr.bf16.gmra.mxu0 %v684
    %v1126 = vpop.f32.mrf.mxu0
    %v1127 = vadd.f32 %v755, %v1126
    %v1128 = vpop.f32.mrf.mxu0
    %v1129 = vadd.f32 %v759, %v1128
    %v1130 = vpop.f32.mrf.mxu0
    %v1131 = vpop.f32.mrf.mxu0
    %1132 = vdwg.mxu0
    %1133 = vmatprep.subr.bf16.mxu0 %v995
    %1134 = vmatpush1.bf16.msra.mxu0 %v994
    %1135 = vmatprep.subr.bf16.mxu0 %v991
    %1136 = vmatpush1.bf16.msra.mxu0 %v990
    %1137 = vmatprep.subr.bf16.mxu0 %v987
    %1138 = vmatpush1.bf16.msra.mxu0 %v986
    %1139 = vmatprep.subr.bf16.mxu0 %v983
    %1140 = vmatpush1.bf16.msra.mxu0 %v982
    %1141 = vmatprep.subr.bf16.mxu0 %v979
    %1142 = vmatpush1.bf16.msra.mxu0 %v978
    %1143 = vmatprep.subr.bf16.mxu0 %v975
    %1144 = vmatpush1.bf16.msra.mxu0 %v974
    %1145 = vmatprep.subr.bf16.mxu0 %v971
    %1146 = vmatpush1.bf16.msra.mxu0 %v970
    %1147 = vmatprep.subr.bf16.mxu0 %v967
    %1148 = vmatpush1.bf16.msra.mxu0 %v966
    %1149 = vmatprep.subr.bf16.mxu0 %v1027
    %1150 = vmatpush2.bf16.msra.mxu0 %v1026
    %1151 = vmatprep.subr.bf16.mxu0 %v1023
    %1152 = vmatpush2.bf16.msra.mxu0 %v1022
    %1153 = vmatprep.subr.bf16.mxu0 %v1019
    %1154 = vmatpush2.bf16.msra.mxu0 %v1018
    %1155 = vmatprep.subr.bf16.mxu0 %v1015
    %1156 = vmatpush2.bf16.msra.mxu0 %v1014
    %1157 = vmatprep.subr.bf16.mxu0 %v1011
    %1158 = vmatpush2.bf16.msra.mxu0 %v1010
    %1159 = vmatprep.subr.bf16.mxu0 %v1007
    %1160 = vmatpush2.bf16.msra.mxu0 %v1006
    %1161 = vmatprep.subr.bf16.mxu0 %v1003
    %1162 = vmatpush2.bf16.msra.mxu0 %v1002
    %1163 = vmatprep.subr.bf16.mxu0 %v999
    %1164 = vmatpush2.bf16.msra.mxu0 %v998
    %1165 = vmatprep.mubr.bf16.mxu0 %v685
    %1166 = vmatmul.mubr.bf16.gmra.mxu0 %v684
    %v1167 = vpop.f32.mrf.mxu0
    %v1168 = vadd.f32 %v763, %v1167
    %v1169 = vpop.f32.mrf.mxu0
    %v1170 = vadd.f32 %v767, %v1169
    %v1171 = vpop.f32.mrf.mxu0
    %v1172 = vpop.f32.mrf.mxu0
    %1173 = vdwg.mxu0
    %v1174 = vld [vmem:[%s12] sm:$0xf]
    %v1175 = vld [vmem:[#allocation13] sm:$0xf]
    %v1176 = vsel %vm571, %v1127, 0.0
    %v1177 = vsel %vm571, %v1129, 0.0
    %v1178 = vsel %vm571, %v1168, 0.0
    %v1179 = vsel %vm571, %v1170, 0.0
    %v1180 = vrot.slane %v1176, 4
    %v1181 = vadd.f32 %v1176, %v1180
    %v1182 = vrot.slane %v1181, 2
    %v1183 = vadd.f32 %v1181, %v1182
    %v1184 = vrot.slane %v1183, 1
    %v1185 = vadd.f32 %v1183, %v1184
    %v1186 = vrot.slane %v1177, 4
    %v1187 = vadd.f32 %v1177, %v1186
    %v1188 = vrot.slane %v1187, 2
    %v1189 = vadd.f32 %v1187, %v1188
    %v1190 = vrot.slane %v1189, 1
    %v1191 = vadd.f32 %v1189, %v1190
    %v1192 = vrot.slane %v1178, 4
    %v1193 = vadd.f32 %v1178, %v1192
    %v1194 = vrot.slane %v1193, 2
    %v1195 = vadd.f32 %v1193, %v1194
    %v1196 = vrot.slane %v1195, 1
    %v1197 = vadd.f32 %v1195, %v1196
    %v1198 = vrot.slane %v1179, 4
    %v1199 = vadd.f32 %v1179, %v1198
    %v1200 = vrot.slane %v1199, 2
    %v1201 = vadd.f32 %v1199, %v1200
    %v1202 = vrot.slane %v1201, 1
    %v1203 = vadd.f32 %v1201, %v1202
    %v1204 = vmul.f32 %v1185, 0.25
    %v1205 = vmul.f32 %v1191, 0.25
    %v1206 = vmul.f32 %v1197, 0.25
    %v1207 = vmul.f32 %v1203, 0.25
    %v1208 = vmul.f32 %v1176, %v1176
    %v1209 = vmul.f32 %v1177, %v1177
    %v1210 = vmul.f32 %v1178, %v1178
    %v1211 = vmul.f32 %v1179, %v1179
    %v1212 = vrot.slane %v1208, 4
    %v1213 = vadd.f32 %v1208, %v1212
    %v1214 = vrot.slane %v1213, 2
    %v1215 = vadd.f32 %v1213, %v1214
    %v1216 = vrot.slane %v1215, 1
    %v1217 = vadd.f32 %v1215, %v1216
    %v1218 = vrot.slane %v1209, 4
    %v1219 = vadd.f32 %v1209, %v1218
    %v1220 = vrot.slane %v1219, 2
    %v1221 = vadd.f32 %v1219, %v1220
    %v1222 = vrot.slane %v1221, 1
    %v1223 = vadd.f32 %v1221, %v1222
    %v1224 = vrot.slane %v1210, 4
    %v1225 = vadd.f32 %v1210, %v1224
    %v1226 = vrot.slane %v1225, 2
    %v1227 = vadd.f32 %v1225, %v1226
    %v1228 = vrot.slane %v1227, 1
    %v1229 = vadd.f32 %v1227, %v1228
    %v1230 = vrot.slane %v1211, 4
    %v1231 = vadd.f32 %v1211, %v1230
    %v1232 = vrot.slane %v1231, 2
    %v1233 = vadd.f32 %v1231, %v1232
    %v1234 = vrot.slane %v1233, 1
    %v1235 = vadd.f32 %v1233, %v1234
    %v1236 = vmul.f32 %v1217, 0.25
    %v1237 = vmul.f32 %v1223, 0.25
    %v1238 = vmul.f32 %v1229, 0.25
    %v1239 = vmul.f32 %v1235, 0.25
    %v1240 = vmul.f32 %v1204, %v1204
    %v1241 = vmul.f32 %v1205, %v1205
    %v1242 = vmul.f32 %v1206, %v1206
    %v1243 = vmul.f32 %v1207, %v1207
    %v1244 = vsub.f32 %v1236, %v1240
    %v1245 = vsub.f32 %v1237, %v1241
    %v1246 = vsub.f32 %v1238, %v1242
    %v1247 = vsub.f32 %v1239, %v1243
    %v1248 = vadd.f32 %v1244, 0.8
    %v1249 = vadd.f32 %v1245, 0.8
    %v1250 = vadd.f32 %v1246, 0.8
    %v1251 = vadd.f32 %v1247, 0.8
    %v1252 = vrsqrt.pop %v1248
    %v1253 = vrsqrt.pop %v1249
    %v1254 = vrsqrt.pop %v1250
    %v1255 = vrsqrt.pop %v1251
    %v1260 = vcombine.low %v1252, %v1253
    %v1261 = vcombine.low %v1254, %v1255
    %v1263 = vunpack.c.l.s4 1966171168
    %v1264 = vunpack.c.0.s8 %v1263
    %v1265 = vlaneseq
    %v1266 = vshrl.u32 %v1265, 7
    %v1267 = vsub.s32 %v1264, %v1266
    %v1268 = vrot.slane %v1260, %v1267
    %v1270 = vunpack.c.l.s4 1966171168
    %v1271 = vunpack.c.0.s8 %v1270
    %v1272 = vlaneseq
    %v1273 = vshrl.u32 %v1272, 7
    %v1274 = vsub.s32 %v1271, %v1273
    %v1275 = vrot.slane %v1261, %v1274
    %v1276 = vcombine.low %v1268, %v1275
    %v1278 = vunpack.c.l.s4 1966171168
    %v1279 = vunpack.c.0.s8 %v1278
    %v1280 = vlaneseq
    %v1281 = vshrl.u32 %v1280, 7
    %v1282 = vsub.s32 %v1279, %v1281
    %v1283 = vrot.slane %v1276, %v1282
    %v1285 = vmul.f32 %v1174, %v1283
    %v1287 = vlaneseq
    %v1288 = vshrl.u32 %v1287, 7
    %v1289 = vsub.s32 0, %v1288
    %v1290 = vrot.slane %v1285, %v1289
    %v1291 = vlaneseq
    %v1292 = vshrl.u32 %v1291, 7
    %v1293 = vsub.s32 1, %v1292
    %v1294 = vrot.slane %v1285, %v1293
    %v1295 = vlaneseq
    %v1296 = vshrl.u32 %v1295, 7
    %v1297 = vsub.s32 2, %v1296
    %v1298 = vrot.slane %v1285, %v1297
    %v1299 = vlaneseq
    %v1300 = vshrl.u32 %v1299, 7
    %v1301 = vsub.s32 3, %v1300
    %v1302 = vrot.slane %v1285, %v1301
    %v1307 = vmul.f32 %v1204, %v1290
    %v1308 = vmul.f32 %v1205, %v1294
    %v1309 = vmul.f32 %v1206, %v1298
    %v1310 = vmul.f32 %v1207, %v1302
    %v1315 = vcombine.low %v1307, %v1308
    %v1316 = vcombine.low %v1309, %v1310
    %v1318 = vunpack.c.l.s4 1966171168
    %v1319 = vunpack.c.0.s8 %v1318
    %v1320 = vlaneseq
    %v1321 = vshrl.u32 %v1320, 7
    %v1322 = vsub.s32 %v1319, %v1321
    %v1323 = vrot.slane %v1315, %v1322
    %v1325 = vunpack.c.l.s4 1966171168
    %v1326 = vunpack.c.0.s8 %v1325
    %v1327 = vlaneseq
    %v1328 = vshrl.u32 %v1327, 7
    %v1329 = vsub.s32 %v1326, %v1328
    %v1330 = vrot.slane %v1316, %v1329
    %v1331 = vcombine.low %v1323, %v1330
    %v1333 = vunpack.c.l.s4 1966171168
    %v1334 = vunpack.c.0.s8 %v1333
    %v1335 = vlaneseq
    %v1336 = vshrl.u32 %v1335, 7
    %v1337 = vsub.s32 %v1334, %v1336
    %v1338 = vrot.slane %v1331, %v1337
    %v1340 = vsub.f32 %v1175, %v1338
    %v1341 = vmul.f32 %v1127, %v1290
    %v1342 = vmul.f32 %v1129, %v1294
    %v1343 = vmul.f32 %v1168, %v1298
    %v1344 = vmul.f32 %v1170, %v1302
    %v1346 = vlaneseq
    %v1347 = vshrl.u32 %v1346, 7
    %v1348 = vsub.s32 0, %v1347
    %v1349 = vrot.slane %v1340, %v1348
    %v1350 = vlaneseq
    %v1351 = vshrl.u32 %v1350, 7
    %v1352 = vsub.s32 1, %v1351
    %v1353 = vrot.slane %v1340, %v1352
    %v1354 = vlaneseq
    %v1355 = vshrl.u32 %v1354, 7
    %v1356 = vsub.s32 2, %v1355
    %v1357 = vrot.slane %v1340, %v1356
    %v1358 = vlaneseq
    %v1359 = vshrl.u32 %v1358, 7
    %v1360 = vsub.s32 3, %v1359
    %v1361 = vrot.slane %v1340, %v1360
    %v1366 = vadd.f32 %v1341, %v1349
    %v1367 = vadd.f32 %v1342, %v1353
    %v1368 = vadd.f32 %v1343, %v1357
    %v1369 = vadd.f32 %v1344, %v1361
    %vm1370 = vcmp.gt.f32.partialorder %v1366, 0.0
    %vm1371 = vcmp.gt.f32.partialorder %v1367, 0.0
    %vm1372 = vcmp.gt.f32.partialorder %v1368, 0.0
    %vm1373 = vcmp.gt.f32.partialorder %v1369, 0.0
    %v1374 = vmul.f32 %v1366, 0.2
    %v1375 = vmul.f32 %v1367, 0.2
    %v1376 = vmul.f32 %v1368, 0.2
    %v1377 = vmul.f32 %v1369, 0.2
    %v1378 = vsel %vm1370, %v1366, %v1374
    %v1379 = vsel %vm1371, %v1367, %v1375
    %v1380 = vsel %vm1372, %v1368, %v1376
    %v1381 = vsel %vm1373, %v1369, %v1377
    %v1382 = vpack.c.bf16 %v1378, %v1378
    %v1383 = vpack.c.bf16 %v1379, %v1379
    %v1384 = vpack.c.bf16 %v1380, %v1380
    %v1385 = vpack.c.bf16 %v1381, %v1381
    %v1386 = vld [vmem:[#allocation15] sm:$0xff]
    %v1387 = vld [vmem:[#allocation15 + $0x8] sm:$0xff]
    %v1388 = vld [vmem:[#allocation15 + $0x10] sm:$0xff]
    %v1389 = vld [vmem:[#allocation15 + $0x18] sm:$0xff]
    %v1390 = vld [vmem:[#allocation15 + $0x20] sm:$0xff]
    %v1391 = vld [vmem:[#allocation15 + $0x28] sm:$0xff]
    %v1392 = vld [vmem:[#allocation15 + $0x30] sm:$0xff]
    %v1393 = vld [vmem:[#allocation15 + $0x38] sm:$0xff]
    %v1394 = vld [vmem:[#allocation15 + $0x40] sm:$0xff]
    %v1395 = vld [vmem:[#allocation15 + $0x48] sm:$0xff]
    %v1396 = vld [vmem:[#allocation15 + $0x50] sm:$0xff]
    %v1397 = vld [vmem:[#allocation15 + $0x58] sm:$0xff]
    %v1398 = vld [vmem:[#allocation15 + $0x60] sm:$0xff]
    %v1399 = vld [vmem:[#allocation15 + $0x68] sm:$0xff]
    %v1400 = vld [vmem:[#allocation15 + $0x70] sm:$0xff]
    %v1401 = vld [vmem:[#allocation15 + $0x78] sm:$0xff]
    %v1402 = vld [vmem:[#allocation15 + $0x80] sm:$0xff]
    %v1403 = vld [vmem:[#allocation15 + $0x88] sm:$0xff]
    %v1404 = vld [vmem:[#allocation15 + $0x90] sm:$0xff]
    %v1405 = vld [vmem:[#allocation15 + $0x98] sm:$0xff]
    %v1406 = vld [vmem:[#allocation15 + $0xa0] sm:$0xff]
    %v1407 = vld [vmem:[#allocation15 + $0xa8] sm:$0xff]
    %v1408 = vld [vmem:[#allocation15 + $0xb0] sm:$0xff]
    %v1409 = vld [vmem:[#allocation15 + $0xb8] sm:$0xff]
    %v1410 = vld [vmem:[#allocation15 + $0xc0] sm:$0xff]
    %v1411 = vld [vmem:[#allocation15 + $0xc8] sm:$0xff]
    %v1412 = vld [vmem:[#allocation15 + $0xd0] sm:$0xff]
    %v1413 = vld [vmem:[#allocation15 + $0xd8] sm:$0xff]
    %v1414 = vld [vmem:[#allocation15 + $0xe0] sm:$0xff]
    %v1415 = vld [vmem:[#allocation15 + $0xe8] sm:$0xff]
    %v1416 = vld [vmem:[#allocation15 + $0xf0] sm:$0xff]
    %v1417 = vld [vmem:[#allocation15 + $0xf8] sm:$0xff]
    %v1418 = vld [vmem:[#allocation15 + $0x100] sm:$0xff]
    %v1419 = vld [vmem:[#allocation15 + $0x108] sm:$0xff]
    %v1420 = vld [vmem:[#allocation15 + $0x110] sm:$0xff]
    %v1421 = vld [vmem:[#allocation15 + $0x118] sm:$0xff]
    %v1422 = vld [vmem:[#allocation15 + $0x120] sm:$0xff]
    %v1423 = vld [vmem:[#allocation15 + $0x128] sm:$0xff]
    %v1424 = vld [vmem:[#allocation15 + $0x130] sm:$0xff]
    %v1425 = vld [vmem:[#allocation15 + $0x138] sm:$0xff]
    %v1426 = vld [vmem:[#allocation15 + $0x140] sm:$0xff]
    %v1427 = vld [vmem:[#allocation15 + $0x148] sm:$0xff]
    %v1428 = vld [vmem:[#allocation15 + $0x150] sm:$0xff]
    %v1429 = vld [vmem:[#allocation15 + $0x158] sm:$0xff]
    %v1430 = vld [vmem:[#allocation15 + $0x160] sm:$0xff]
    %v1431 = vld [vmem:[#allocation15 + $0x168] sm:$0xff]
    %v1432 = vld [vmem:[#allocation15 + $0x170] sm:$0xff]
    %v1433 = vld [vmem:[#allocation15 + $0x178] sm:$0xff]
    %v1434 = vld [vmem:[#allocation15 + $0x180] sm:$0xff]
    %v1435 = vld [vmem:[#allocation15 + $0x188] sm:$0xff]
    %v1436 = vld [vmem:[#allocation15 + $0x190] sm:$0xff]
    %v1437 = vld [vmem:[#allocation15 + $0x198] sm:$0xff]
    %v1438 = vld [vmem:[#allocation15 + $0x1a0] sm:$0xff]
    %v1439 = vld [vmem:[#allocation15 + $0x1a8] sm:$0xff]
    %v1440 = vld [vmem:[#allocation15 + $0x1b0] sm:$0xff]
    %v1441 = vld [vmem:[#allocation15 + $0x1b8] sm:$0xff]
    %v1442 = vld [vmem:[#allocation15 + $0x1c0] sm:$0xff]
    %v1443 = vld [vmem:[#allocation15 + $0x1c8] sm:$0xff]
    %v1444 = vld [vmem:[#allocation15 + $0x1d0] sm:$0xff]
    %v1445 = vld [vmem:[#allocation15 + $0x1d8] sm:$0xff]
    %v1446 = vld [vmem:[#allocation15 + $0x1e0] sm:$0xff]
    %v1447 = vld [vmem:[#allocation15 + $0x1e8] sm:$0xff]
    %v1448 = vld [vmem:[#allocation15 + $0x1f0] sm:$0xff]
    %v1449 = vld [vmem:[#allocation15 + $0x1f8] sm:$0xff]
    %v1450 = vld [vmem:[#allocation15 + $0x200] sm:$0xff]
    %v1451 = vld [vmem:[#allocation15 + $0x208] sm:$0xff]
    %v1452 = vld [vmem:[#allocation15 + $0x210] sm:$0xff]
    %v1453 = vld [vmem:[#allocation15 + $0x218] sm:$0xff]
    %v1454 = vld [vmem:[#allocation15 + $0x220] sm:$0xff]
    %v1455 = vld [vmem:[#allocation15 + $0x228] sm:$0xff]
    %v1456 = vld [vmem:[#allocation15 + $0x230] sm:$0xff]
    %v1457 = vld [vmem:[#allocation15 + $0x238] sm:$0xff]
    %v1458 = vld [vmem:[#allocation15 + $0x240] sm:$0xff]
    %v1459 = vld [vmem:[#allocation15 + $0x248] sm:$0xff]
    %v1460 = vld [vmem:[#allocation15 + $0x250] sm:$0xff]
    %v1461 = vld [vmem:[#allocation15 + $0x258] sm:$0xff]
    %v1462 = vld [vmem:[#allocation15 + $0x260] sm:$0xff]
    %v1463 = vld [vmem:[#allocation15 + $0x268] sm:$0xff]
    %v1464 = vld [vmem:[#allocation15 + $0x270] sm:$0xff]
    %v1465 = vld [vmem:[#allocation15 + $0x278] sm:$0xff]
    %v1466 = vld [vmem:[#allocation15 + $0x280] sm:$0xff]
    %v1467 = vld [vmem:[#allocation15 + $0x288] sm:$0xff]
    %v1468 = vld [vmem:[#allocation15 + $0x290] sm:$0xff]
    %v1469 = vld [vmem:[#allocation15 + $0x298] sm:$0xff]
    %v1470 = vld [vmem:[#allocation15 + $0x2a0] sm:$0xff]
    %v1471 = vld [vmem:[#allocation15 + $0x2a8] sm:$0xff]
    %v1472 = vld [vmem:[#allocation15 + $0x2b0] sm:$0xff]
    %v1473 = vld [vmem:[#allocation15 + $0x2b8] sm:$0xff]
    %v1474 = vld [vmem:[#allocation15 + $0x2c0] sm:$0xff]
    %v1475 = vld [vmem:[#allocation15 + $0x2c8] sm:$0xff]
    %v1476 = vld [vmem:[#allocation15 + $0x2d0] sm:$0xff]
    %v1477 = vld [vmem:[#allocation15 + $0x2d8] sm:$0xff]
    %v1478 = vld [vmem:[#allocation15 + $0x2e0] sm:$0xff]
    %v1479 = vld [vmem:[#allocation15 + $0x2e8] sm:$0xff]
    %v1480 = vld [vmem:[#allocation15 + $0x2f0] sm:$0xff]
    %v1481 = vld [vmem:[#allocation15 + $0x2f8] sm:$0xff]
    %v1482 = vld [vmem:[#allocation15 + $0x300] sm:$0xff]
    %v1483 = vld [vmem:[#allocation15 + $0x308] sm:$0xff]
    %v1484 = vld [vmem:[#allocation15 + $0x310] sm:$0xff]
    %v1485 = vld [vmem:[#allocation15 + $0x318] sm:$0xff]
    %v1486 = vld [vmem:[#allocation15 + $0x320] sm:$0xff]
    %v1487 = vld [vmem:[#allocation15 + $0x328] sm:$0xff]
    %v1488 = vld [vmem:[#allocation15 + $0x330] sm:$0xff]
    %v1489 = vld [vmem:[#allocation15 + $0x338] sm:$0xff]
    %v1490 = vld [vmem:[#allocation15 + $0x340] sm:$0xff]
    %v1491 = vld [vmem:[#allocation15 + $0x348] sm:$0xff]
    %v1492 = vld [vmem:[#allocation15 + $0x350] sm:$0xff]
    %v1493 = vld [vmem:[#allocation15 + $0x358] sm:$0xff]
    %v1494 = vld [vmem:[#allocation15 + $0x360] sm:$0xff]
    %v1495 = vld [vmem:[#allocation15 + $0x368] sm:$0xff]
    %v1496 = vld [vmem:[#allocation15 + $0x370] sm:$0xff]
    %v1497 = vld [vmem:[#allocation15 + $0x378] sm:$0xff]
    %v1498 = vld [vmem:[#allocation15 + $0x380] sm:$0xff]
    %v1499 = vld [vmem:[#allocation15 + $0x388] sm:$0xff]
    %v1500 = vld [vmem:[#allocation15 + $0x390] sm:$0xff]
    %v1501 = vld [vmem:[#allocation15 + $0x398] sm:$0xff]
    %v1502 = vld [vmem:[#allocation15 + $0x3a0] sm:$0xff]
    %v1503 = vld [vmem:[#allocation15 + $0x3a8] sm:$0xff]
    %v1504 = vld [vmem:[#allocation15 + $0x3b0] sm:$0xff]
    %v1505 = vld [vmem:[#allocation15 + $0x3b8] sm:$0xff]
    %v1506 = vld [vmem:[#allocation15 + $0x3c0] sm:$0xff]
    %v1507 = vld [vmem:[#allocation15 + $0x3c8] sm:$0xff]
    %v1508 = vld [vmem:[#allocation15 + $0x3d0] sm:$0xff]
    %v1509 = vld [vmem:[#allocation15 + $0x3d8] sm:$0xff]
    %v1510 = vld [vmem:[#allocation15 + $0x3e0] sm:$0xff]
    %v1511 = vld [vmem:[#allocation15 + $0x3e8] sm:$0xff]
    %v1512 = vld [vmem:[#allocation15 + $0x3f0] sm:$0xff]
    %v1513 = vld [vmem:[#allocation15 + $0x3f8] sm:$0xff]
    %v1514 = vld [vmem:[#allocation15 + $0x400] sm:$0xff]
    %v1515 = vld [vmem:[#allocation15 + $0x408] sm:$0xff]
    %v1516 = vld [vmem:[#allocation15 + $0x410] sm:$0xff]
    %v1517 = vld [vmem:[#allocation15 + $0x418] sm:$0xff]
    %v1518 = vld [vmem:[#allocation15 + $0x420] sm:$0xff]
    %v1519 = vld [vmem:[#allocation15 + $0x428] sm:$0xff]
    %v1520 = vld [vmem:[#allocation15 + $0x430] sm:$0xff]
    %v1521 = vld [vmem:[#allocation15 + $0x438] sm:$0xff]
    %v1522 = vld [vmem:[#allocation15 + $0x440] sm:$0xff]
    %v1523 = vld [vmem:[#allocation15 + $0x448] sm:$0xff]
    %v1524 = vld [vmem:[#allocation15 + $0x450] sm:$0xff]
    %v1525 = vld [vmem:[#allocation15 + $0x458] sm:$0xff]
    %v1526 = vld [vmem:[#allocation15 + $0x460] sm:$0xff]
    %v1527 = vld [vmem:[#allocation15 + $0x468] sm:$0xff]
    %v1528 = vld [vmem:[#allocation15 + $0x470] sm:$0xff]
    %v1529 = vld [vmem:[#allocation15 + $0x478] sm:$0xff]
    %v1530 = vld [vmem:[#allocation15 + $0x480] sm:$0xff]
    %v1531 = vld [vmem:[#allocation15 + $0x488] sm:$0xff]
    %v1532 = vld [vmem:[#allocation15 + $0x490] sm:$0xff]
    %v1533 = vld [vmem:[#allocation15 + $0x498] sm:$0xff]
    %v1534 = vld [vmem:[#allocation15 + $0x4a0] sm:$0xff]
    %v1535 = vld [vmem:[#allocation15 + $0x4a8] sm:$0xff]
    %v1536 = vld [vmem:[#allocation15 + $0x4b0] sm:$0xff]
    %v1537 = vld [vmem:[#allocation15 + $0x4b8] sm:$0xff]
    %v1538 = vld [vmem:[#allocation15 + $0x4c0] sm:$0xff]
    %v1539 = vld [vmem:[#allocation15 + $0x4c8] sm:$0xff]
    %v1540 = vld [vmem:[#allocation15 + $0x4d0] sm:$0xff]
    %v1541 = vld [vmem:[#allocation15 + $0x4d8] sm:$0xff]
    %v1542 = vld [vmem:[#allocation15 + $0x4e0] sm:$0xff]
    %v1543 = vld [vmem:[#allocation15 + $0x4e8] sm:$0xff]
    %v1544 = vld [vmem:[#allocation15 + $0x4f0] sm:$0xff]
    %v1545 = vld [vmem:[#allocation15 + $0x4f8] sm:$0xff]
    %v1546 = vld [vmem:[#allocation15 + $0x500] sm:$0xff]
    %v1547 = vld [vmem:[#allocation15 + $0x508] sm:$0xff]
    %v1548 = vld [vmem:[#allocation15 + $0x510] sm:$0xff]
    %v1549 = vld [vmem:[#allocation15 + $0x518] sm:$0xff]
    %v1550 = vld [vmem:[#allocation15 + $0x520] sm:$0xff]
    %v1551 = vld [vmem:[#allocation15 + $0x528] sm:$0xff]
    %v1552 = vld [vmem:[#allocation15 + $0x530] sm:$0xff]
    %v1553 = vld [vmem:[#allocation15 + $0x538] sm:$0xff]
    %v1554 = vld [vmem:[#allocation15 + $0x540] sm:$0xff]
    %v1555 = vld [vmem:[#allocation15 + $0x548] sm:$0xff]
    %v1556 = vld [vmem:[#allocation15 + $0x550] sm:$0xff]
    %v1557 = vld [vmem:[#allocation15 + $0x558] sm:$0xff]
    %v1558 = vld [vmem:[#allocation15 + $0x560] sm:$0xff]
    %v1559 = vld [vmem:[#allocation15 + $0x568] sm:$0xff]
    %v1560 = vld [vmem:[#allocation15 + $0x570] sm:$0xff]
    %v1561 = vld [vmem:[#allocation15 + $0x578] sm:$0xff]
    %v1562 = vld [vmem:[#allocation15 + $0x580] sm:$0xff]
    %v1563 = vld [vmem:[#allocation15 + $0x588] sm:$0xff]
    %v1564 = vld [vmem:[#allocation15 + $0x590] sm:$0xff]
    %v1565 = vld [vmem:[#allocation15 + $0x598] sm:$0xff]
    %v1566 = vld [vmem:[#allocation15 + $0x5a0] sm:$0xff]
    %v1567 = vld [vmem:[#allocation15 + $0x5a8] sm:$0xff]
    %v1568 = vld [vmem:[#allocation15 + $0x5b0] sm:$0xff]
    %v1569 = vld [vmem:[#allocation15 + $0x5b8] sm:$0xff]
    %v1570 = vld [vmem:[#allocation15 + $0x5c0] sm:$0xff]
    %v1571 = vld [vmem:[#allocation15 + $0x5c8] sm:$0xff]
    %v1572 = vld [vmem:[#allocation15 + $0x5d0] sm:$0xff]
    %v1573 = vld [vmem:[#allocation15 + $0x5d8] sm:$0xff]
    %v1574 = vld [vmem:[#allocation15 + $0x5e0] sm:$0xff]
    %v1575 = vld [vmem:[#allocation15 + $0x5e8] sm:$0xff]
    %v1576 = vld [vmem:[#allocation15 + $0x5f0] sm:$0xff]
    %v1577 = vld [vmem:[#allocation15 + $0x5f8] sm:$0xff]
    %v1578 = vld [vmem:[#allocation15 + $0x600] sm:$0xff]
    %v1579 = vld [vmem:[#allocation15 + $0x608] sm:$0xff]
    %v1580 = vld [vmem:[#allocation15 + $0x610] sm:$0xff]
    %v1581 = vld [vmem:[#allocation15 + $0x618] sm:$0xff]
    %v1582 = vld [vmem:[#allocation15 + $0x620] sm:$0xff]
    %v1583 = vld [vmem:[#allocation15 + $0x628] sm:$0xff]
    %v1584 = vld [vmem:[#allocation15 + $0x630] sm:$0xff]
    %v1585 = vld [vmem:[#allocation15 + $0x638] sm:$0xff]
    %v1586 = vld [vmem:[#allocation15 + $0x640] sm:$0xff]
    %v1587 = vld [vmem:[#allocation15 + $0x648] sm:$0xff]
    %v1588 = vld [vmem:[#allocation15 + $0x650] sm:$0xff]
    %v1589 = vld [vmem:[#allocation15 + $0x658] sm:$0xff]
    %v1590 = vld [vmem:[#allocation15 + $0x660] sm:$0xff]
    %v1591 = vld [vmem:[#allocation15 + $0x668] sm:$0xff]
    %v1592 = vld [vmem:[#allocation15 + $0x670] sm:$0xff]
    %v1593 = vld [vmem:[#allocation15 + $0x678] sm:$0xff]
    %v1594 = vld [vmem:[#allocation15 + $0x680] sm:$0xff]
    %v1595 = vld [vmem:[#allocation15 + $0x688] sm:$0xff]
    %v1596 = vld [vmem:[#allocation15 + $0x690] sm:$0xff]
    %v1597 = vld [vmem:[#allocation15 + $0x698] sm:$0xff]
    %v1598 = vld [vmem:[#allocation15 + $0x6a0] sm:$0xff]
    %v1599 = vld [vmem:[#allocation15 + $0x6a8] sm:$0xff]
    %v1600 = vld [vmem:[#allocation15 + $0x6b0] sm:$0xff]
    %v1601 = vld [vmem:[#allocation15 + $0x6b8] sm:$0xff]
    %v1602 = vld [vmem:[#allocation15 + $0x6c0] sm:$0xff]
    %v1603 = vld [vmem:[#allocation15 + $0x6c8] sm:$0xff]
    %v1604 = vld [vmem:[#allocation15 + $0x6d0] sm:$0xff]
    %v1605 = vld [vmem:[#allocation15 + $0x6d8] sm:$0xff]
    %v1606 = vld [vmem:[#allocation15 + $0x6e0] sm:$0xff]
    %v1607 = vld [vmem:[#allocation15 + $0x6e8] sm:$0xff]
    %v1608 = vld [vmem:[#allocation15 + $0x6f0] sm:$0xff]
    %v1609 = vld [vmem:[#allocation15 + $0x6f8] sm:$0xff]
    %v1610 = vld [vmem:[#allocation15 + $0x700] sm:$0xff]
    %v1611 = vld [vmem:[#allocation15 + $0x708] sm:$0xff]
    %v1612 = vld [vmem:[#allocation15 + $0x710] sm:$0xff]
    %v1613 = vld [vmem:[#allocation15 + $0x718] sm:$0xff]
    %v1614 = vld [vmem:[#allocation15 + $0x720] sm:$0xff]
    %v1615 = vld [vmem:[#allocation15 + $0x728] sm:$0xff]
    %v1616 = vld [vmem:[#allocation15 + $0x730] sm:$0xff]
    %v1617 = vld [vmem:[#allocation15 + $0x738] sm:$0xff]
    %v1618 = vld [vmem:[#allocation15 + $0x740] sm:$0xff]
    %v1619 = vld [vmem:[#allocation15 + $0x748] sm:$0xff]
    %v1620 = vld [vmem:[#allocation15 + $0x750] sm:$0xff]
    %v1621 = vld [vmem:[#allocation15 + $0x758] sm:$0xff]
    %v1622 = vld [vmem:[#allocation15 + $0x760] sm:$0xff]
    %v1623 = vld [vmem:[#allocation15 + $0x768] sm:$0xff]
    %v1624 = vld [vmem:[#allocation15 + $0x770] sm:$0xff]
    %v1625 = vld [vmem:[#allocation15 + $0x778] sm:$0xff]
    %v1626 = vld [vmem:[#allocation15 + $0x780] sm:$0xff]
    %v1627 = vld [vmem:[#allocation15 + $0x788] sm:$0xff]
    %v1628 = vld [vmem:[#allocation15 + $0x790] sm:$0xff]
    %v1629 = vld [vmem:[#allocation15 + $0x798] sm:$0xff]
    %v1630 = vld [vmem:[#allocation15 + $0x7a0] sm:$0xff]
    %v1631 = vld [vmem:[#allocation15 + $0x7a8] sm:$0xff]
    %v1632 = vld [vmem:[#allocation15 + $0x7b0] sm:$0xff]
    %v1633 = vld [vmem:[#allocation15 + $0x7b8] sm:$0xff]
    %v1634 = vld [vmem:[#allocation15 + $0x7c0] sm:$0xff]
    %v1635 = vld [vmem:[#allocation15 + $0x7c8] sm:$0xff]
    %v1636 = vld [vmem:[#allocation15 + $0x7d0] sm:$0xff]
    %v1637 = vld [vmem:[#allocation15 + $0x7d8] sm:$0xff]
    %v1638 = vld [vmem:[#allocation15 + $0x7e0] sm:$0xff]
    %v1639 = vld [vmem:[#allocation15 + $0x7e8] sm:$0xff]
    %v1640 = vld [vmem:[#allocation15 + $0x7f0] sm:$0xff]
    %v1641 = vld [vmem:[#allocation15 + $0x7f8] sm:$0xff]
    %v1642 = vld [vmem:[%s15] sm:$0xff]
    %v1644 = vlaneseq
    %v1645 = vshrl.u32 %v1644, 7
    %v1646 = vsub.s32 0, %v1645
    %v1647 = vrot.slane %v1642, %v1646
    %v1648 = vlaneseq
    %v1649 = vshrl.u32 %v1648, 7
    %v1650 = vsub.s32 1, %v1649
    %v1651 = vrot.slane %v1642, %v1650
    %v1652 = vlaneseq
    %v1653 = vshrl.u32 %v1652, 7
    %v1654 = vsub.s32 2, %v1653
    %v1655 = vrot.slane %v1642, %v1654
    %v1656 = vlaneseq
    %v1657 = vshrl.u32 %v1656, 7
    %v1658 = vsub.s32 3, %v1657
    %v1659 = vrot.slane %v1642, %v1658
    %v1660 = vlaneseq
    %v1661 = vshrl.u32 %v1660, 7
    %v1662 = vsub.s32 4, %v1661
    %v1663 = vrot.slane %v1642, %v1662
    %v1664 = vlaneseq
    %v1665 = vshrl.u32 %v1664, 7
    %v1666 = vsub.s32 5, %v1665
    %v1667 = vrot.slane %v1642, %v1666
    %v1668 = vlaneseq
    %v1669 = vshrl.u32 %v1668, 7
    %v1670 = vsub.s32 6, %v1669
    %v1671 = vrot.slane %v1642, %v1670
    %v1672 = vlaneseq
    %v1673 = vshrl.u32 %v1672, 7
    %v1674 = vsub.s32 7, %v1673
    %v1675 = vrot.slane %v1642, %v1674
    %v1940 = vunpack.c.l.b16 %v1386
    %v1941 = vunpack.c.h.b16 %v1386
    %v1942 = vunpack.c.l.b16 %v1387
    %v1943 = vunpack.c.h.b16 %v1387
    %v1944 = vunpack.c.l.b16 %v1388
    %v1945 = vunpack.c.h.b16 %v1388
    %v1946 = vunpack.c.l.b16 %v1389
    %v1947 = vunpack.c.h.b16 %v1389
    %v1948 = vunpack.c.l.b16 %v1390
    %v1949 = vunpack.c.h.b16 %v1390
    %v1950 = vunpack.c.l.b16 %v1391
    %v1951 = vunpack.c.h.b16 %v1391
    %v1952 = vunpack.c.l.b16 %v1392
    %v1953 = vunpack.c.h.b16 %v1392
    %v1954 = vunpack.c.l.b16 %v1393
    %v1955 = vunpack.c.h.b16 %v1393
    %v1956 = vunpack.c.l.b16 %v1394
    %v1957 = vunpack.c.h.b16 %v1394
    %v1958 = vunpack.c.l.b16 %v1395
    %v1959 = vunpack.c.h.b16 %v1395
    %v1960 = vunpack.c.l.b16 %v1396
    %v1961 = vunpack.c.h.b16 %v1396
    %v1962 = vunpack.c.l.b16 %v1397
    %v1963 = vunpack.c.h.b16 %v1397
    %v1964 = vunpack.c.l.b16 %v1398
    %v1965 = vunpack.c.h.b16 %v1398
    %v1966 = vunpack.c.l.b16 %v1399
    %v1967 = vunpack.c.h.b16 %v1399
    %v1968 = vunpack.c.l.b16 %v1400
    %v1969 = vunpack.c.h.b16 %v1400
    %v1970 = vunpack.c.l.b16 %v1401
    %v1971 = vunpack.c.h.b16 %v1401
    %v1972 = vunpack.c.l.b16 %v1402
    %v1973 = vunpack.c.h.b16 %v1402
    %v1974 = vunpack.c.l.b16 %v1403
    %v1975 = vunpack.c.h.b16 %v1403
    %v1976 = vunpack.c.l.b16 %v1404
    %v1977 = vunpack.c.h.b16 %v1404
    %v1978 = vunpack.c.l.b16 %v1405
    %v1979 = vunpack.c.h.b16 %v1405
    %v1980 = vunpack.c.l.b16 %v1406
    %v1981 = vunpack.c.h.b16 %v1406
    %v1982 = vunpack.c.l.b16 %v1407
    %v1983 = vunpack.c.h.b16 %v1407
    %v1984 = vunpack.c.l.b16 %v1408
    %v1985 = vunpack.c.h.b16 %v1408
    %v1986 = vunpack.c.l.b16 %v1409
    %v1987 = vunpack.c.h.b16 %v1409
    %v1988 = vunpack.c.l.b16 %v1410
    %v1989 = vunpack.c.h.b16 %v1410
    %v1990 = vunpack.c.l.b16 %v1411
    %v1991 = vunpack.c.h.b16 %v1411
    %v1992 = vunpack.c.l.b16 %v1412
    %v1993 = vunpack.c.h.b16 %v1412
    %v1994 = vunpack.c.l.b16 %v1413
    %v1995 = vunpack.c.h.b16 %v1413
    %v1996 = vunpack.c.l.b16 %v1414
    %v1997 = vunpack.c.h.b16 %v1414
    %v1998 = vunpack.c.l.b16 %v1415
    %v1999 = vunpack.c.h.b16 %v1415
    %v2000 = vunpack.c.l.b16 %v1416
    %v2001 = vunpack.c.h.b16 %v1416
    %v2002 = vunpack.c.l.b16 %v1417
    %v2003 = vunpack.c.h.b16 %v1417
    %v2004 = vunpack.c.l.b16 %v1418
    %v2005 = vunpack.c.h.b16 %v1418
    %v2006 = vunpack.c.l.b16 %v1419
    %v2007 = vunpack.c.h.b16 %v1419
    %v2008 = vunpack.c.l.b16 %v1420
    %v2009 = vunpack.c.h.b16 %v1420
    %v2010 = vunpack.c.l.b16 %v1421
    %v2011 = vunpack.c.h.b16 %v1421
    %v2012 = vunpack.c.l.b16 %v1422
    %v2013 = vunpack.c.h.b16 %v1422
    %v2014 = vunpack.c.l.b16 %v1423
    %v2015 = vunpack.c.h.b16 %v1423
    %v2016 = vunpack.c.l.b16 %v1424
    %v2017 = vunpack.c.h.b16 %v1424
    %v2018 = vunpack.c.l.b16 %v1425
    %v2019 = vunpack.c.h.b16 %v1425
    %v2020 = vunpack.c.l.b16 %v1426
    %v2021 = vunpack.c.h.b16 %v1426
    %v2022 = vunpack.c.l.b16 %v1427
    %v2023 = vunpack.c.h.b16 %v1427
    %v2024 = vunpack.c.l.b16 %v1428
    %v2025 = vunpack.c.h.b16 %v1428
    %v2026 = vunpack.c.l.b16 %v1429
    %v2027 = vunpack.c.h.b16 %v1429
    %v2028 = vunpack.c.l.b16 %v1430
    %v2029 = vunpack.c.h.b16 %v1430
    %v2030 = vunpack.c.l.b16 %v1431
    %v2031 = vunpack.c.h.b16 %v1431
    %v2032 = vunpack.c.l.b16 %v1432
    %v2033 = vunpack.c.h.b16 %v1432
    %v2034 = vunpack.c.l.b16 %v1433
    %v2035 = vunpack.c.h.b16 %v1433
    %v2036 = vunpack.c.l.b16 %v1434
    %v2037 = vunpack.c.h.b16 %v1434
    %v2038 = vunpack.c.l.b16 %v1435
    %v2039 = vunpack.c.h.b16 %v1435
    %v2040 = vunpack.c.l.b16 %v1436
    %v2041 = vunpack.c.h.b16 %v1436
    %v2042 = vunpack.c.l.b16 %v1437
    %v2043 = vunpack.c.h.b16 %v1437
    %v2044 = vunpack.c.l.b16 %v1438
    %v2045 = vunpack.c.h.b16 %v1438
    %v2046 = vunpack.c.l.b16 %v1439
    %v2047 = vunpack.c.h.b16 %v1439
    %v2048 = vunpack.c.l.b16 %v1440
    %v2049 = vunpack.c.h.b16 %v1440
    %v2050 = vunpack.c.l.b16 %v1441
    %v2051 = vunpack.c.h.b16 %v1441
    %v2052 = vunpack.c.l.b16 %v1442
    %v2053 = vunpack.c.h.b16 %v1442
    %v2054 = vunpack.c.l.b16 %v1443
    %v2055 = vunpack.c.h.b16 %v1443
    %v2056 = vunpack.c.l.b16 %v1444
    %v2057 = vunpack.c.h.b16 %v1444
    %v2058 = vunpack.c.l.b16 %v1445
    %v2059 = vunpack.c.h.b16 %v1445
    %v2060 = vunpack.c.l.b16 %v1446
    %v2061 = vunpack.c.h.b16 %v1446
    %v2062 = vunpack.c.l.b16 %v1447
    %v2063 = vunpack.c.h.b16 %v1447
    %v2064 = vunpack.c.l.b16 %v1448
    %v2065 = vunpack.c.h.b16 %v1448
    %v2066 = vunpack.c.l.b16 %v1449
    %v2067 = vunpack.c.h.b16 %v1449
    %v2068 = vunpack.c.l.b16 %v1450
    %v2069 = vunpack.c.h.b16 %v1450
    %v2070 = vunpack.c.l.b16 %v1451
    %v2071 = vunpack.c.h.b16 %v1451
    %v2072 = vunpack.c.l.b16 %v1452
    %v2073 = vunpack.c.h.b16 %v1452
    %v2074 = vunpack.c.l.b16 %v1453
    %v2075 = vunpack.c.h.b16 %v1453
    %v2076 = vunpack.c.l.b16 %v1454
    %v2077 = vunpack.c.h.b16 %v1454
    %v2078 = vunpack.c.l.b16 %v1455
    %v2079 = vunpack.c.h.b16 %v1455
    %v2080 = vunpack.c.l.b16 %v1456
    %v2081 = vunpack.c.h.b16 %v1456
    %v2082 = vunpack.c.l.b16 %v1457
    %v2083 = vunpack.c.h.b16 %v1457
    %v2084 = vunpack.c.l.b16 %v1458
    %v2085 = vunpack.c.h.b16 %v1458
    %v2086 = vunpack.c.l.b16 %v1459
    %v2087 = vunpack.c.h.b16 %v1459
    %v2088 = vunpack.c.l.b16 %v1460
    %v2089 = vunpack.c.h.b16 %v1460
    %v2090 = vunpack.c.l.b16 %v1461
    %v2091 = vunpack.c.h.b16 %v1461
    %v2092 = vunpack.c.l.b16 %v1462
    %v2093 = vunpack.c.h.b16 %v1462
    %v2094 = vunpack.c.l.b16 %v1463
    %v2095 = vunpack.c.h.b16 %v1463
    %v2096 = vunpack.c.l.b16 %v1464
    %v2097 = vunpack.c.h.b16 %v1464
    %v2098 = vunpack.c.l.b16 %v1465
    %v2099 = vunpack.c.h.b16 %v1465
    %v2100 = vunpack.c.l.b16 %v1466
    %v2101 = vunpack.c.h.b16 %v1466
    %v2102 = vunpack.c.l.b16 %v1467
    %v2103 = vunpack.c.h.b16 %v1467
    %v2104 = vunpack.c.l.b16 %v1468
    %v2105 = vunpack.c.h.b16 %v1468
    %v2106 = vunpack.c.l.b16 %v1469
    %v2107 = vunpack.c.h.b16 %v1469
    %v2108 = vunpack.c.l.b16 %v1470
    %v2109 = vunpack.c.h.b16 %v1470
    %v2110 = vunpack.c.l.b16 %v1471
    %v2111 = vunpack.c.h.b16 %v1471
    %v2112 = vunpack.c.l.b16 %v1472
    %v2113 = vunpack.c.h.b16 %v1472
    %v2114 = vunpack.c.l.b16 %v1473
    %v2115 = vunpack.c.h.b16 %v1473
    %v2116 = vunpack.c.l.b16 %v1474
    %v2117 = vunpack.c.h.b16 %v1474
    %v2118 = vunpack.c.l.b16 %v1475
    %v2119 = vunpack.c.h.b16 %v1475
    %v2120 = vunpack.c.l.b16 %v1476
    %v2121 = vunpack.c.h.b16 %v1476
    %v2122 = vunpack.c.l.b16 %v1477
    %v2123 = vunpack.c.h.b16 %v1477
    %v2124 = vunpack.c.l.b16 %v1478
    %v2125 = vunpack.c.h.b16 %v1478
    %v2126 = vunpack.c.l.b16 %v1479
    %v2127 = vunpack.c.h.b16 %v1479
    %v2128 = vunpack.c.l.b16 %v1480
    %v2129 = vunpack.c.h.b16 %v1480
    %v2130 = vunpack.c.l.b16 %v1481
    %v2131 = vunpack.c.h.b16 %v1481
    %v2132 = vunpack.c.l.b16 %v1482
    %v2133 = vunpack.c.h.b16 %v1482
    %v2134 = vunpack.c.l.b16 %v1483
    %v2135 = vunpack.c.h.b16 %v1483
    %v2136 = vunpack.c.l.b16 %v1484
    %v2137 = vunpack.c.h.b16 %v1484
    %v2138 = vunpack.c.l.b16 %v1485
    %v2139 = vunpack.c.h.b16 %v1485
    %v2140 = vunpack.c.l.b16 %v1486
    %v2141 = vunpack.c.h.b16 %v1486
    %v2142 = vunpack.c.l.b16 %v1487
    %v2143 = vunpack.c.h.b16 %v1487
    %v2144 = vunpack.c.l.b16 %v1488
    %v2145 = vunpack.c.h.b16 %v1488
    %v2146 = vunpack.c.l.b16 %v1489
    %v2147 = vunpack.c.h.b16 %v1489
    %v2148 = vunpack.c.l.b16 %v1490
    %v2149 = vunpack.c.h.b16 %v1490
    %v2150 = vunpack.c.l.b16 %v1491
    %v2151 = vunpack.c.h.b16 %v1491
    %v2152 = vunpack.c.l.b16 %v1492
    %v2153 = vunpack.c.h.b16 %v1492
    %v2154 = vunpack.c.l.b16 %v1493
    %v2155 = vunpack.c.h.b16 %v1493
    %v2156 = vunpack.c.l.b16 %v1494
    %v2157 = vunpack.c.h.b16 %v1494
    %v2158 = vunpack.c.l.b16 %v1495
    %v2159 = vunpack.c.h.b16 %v1495
    %v2160 = vunpack.c.l.b16 %v1496
    %v2161 = vunpack.c.h.b16 %v1496
    %v2162 = vunpack.c.l.b16 %v1497
    %v2163 = vunpack.c.h.b16 %v1497
    %v2164 = vunpack.c.l.b16 %v1498
    %v2165 = vunpack.c.h.b16 %v1498
    %v2166 = vunpack.c.l.b16 %v1499
    %v2167 = vunpack.c.h.b16 %v1499
    %v2168 = vunpack.c.l.b16 %v1500
    %v2169 = vunpack.c.h.b16 %v1500
    %v2170 = vunpack.c.l.b16 %v1501
    %v2171 = vunpack.c.h.b16 %v1501
    %v2172 = vunpack.c.l.b16 %v1502
    %v2173 = vunpack.c.h.b16 %v1502
    %v2174 = vunpack.c.l.b16 %v1503
    %v2175 = vunpack.c.h.b16 %v1503
    %v2176 = vunpack.c.l.b16 %v1504
    %v2177 = vunpack.c.h.b16 %v1504
    %v2178 = vunpack.c.l.b16 %v1505
    %v2179 = vunpack.c.h.b16 %v1505
    %v2180 = vunpack.c.l.b16 %v1506
    %v2181 = vunpack.c.h.b16 %v1506
    %v2182 = vunpack.c.l.b16 %v1507
    %v2183 = vunpack.c.h.b16 %v1507
    %v2184 = vunpack.c.l.b16 %v1508
    %v2185 = vunpack.c.h.b16 %v1508
    %v2186 = vunpack.c.l.b16 %v1509
    %v2187 = vunpack.c.h.b16 %v1509
    %v2188 = vunpack.c.l.b16 %v1510
    %v2189 = vunpack.c.h.b16 %v1510
    %v2190 = vunpack.c.l.b16 %v1511
    %v2191 = vunpack.c.h.b16 %v1511
    %v2192 = vunpack.c.l.b16 %v1512
    %v2193 = vunpack.c.h.b16 %v1512
    %v2194 = vunpack.c.l.b16 %v1513
    %v2195 = vunpack.c.h.b16 %v1513
    %v2196 = vunpack.c.l.b16 %v1514
    %v2197 = vunpack.c.h.b16 %v1514
    %v2198 = vunpack.c.l.b16 %v1515
    %v2199 = vunpack.c.h.b16 %v1515
    %v2200 = vunpack.c.l.b16 %v1516
    %v2201 = vunpack.c.h.b16 %v1516
    %v2202 = vunpack.c.l.b16 %v1517
    %v2203 = vunpack.c.h.b16 %v1517
    %v2204 = vunpack.c.l.b16 %v1518
    %v2205 = vunpack.c.h.b16 %v1518
    %v2206 = vunpack.c.l.b16 %v1519
    %v2207 = vunpack.c.h.b16 %v1519
    %v2208 = vunpack.c.l.b16 %v1520
    %v2209 = vunpack.c.h.b16 %v1520
    %v2210 = vunpack.c.l.b16 %v1521
    %v2211 = vunpack.c.h.b16 %v1521
    %v2212 = vunpack.c.l.b16 %v1522
    %v2213 = vunpack.c.h.b16 %v1522
    %v2214 = vunpack.c.l.b16 %v1523
    %v2215 = vunpack.c.h.b16 %v1523
    %v2216 = vunpack.c.l.b16 %v1524
    %v2217 = vunpack.c.h.b16 %v1524
    %v2218 = vunpack.c.l.b16 %v1525
    %v2219 = vunpack.c.h.b16 %v1525
    %v2220 = vunpack.c.l.b16 %v1526
    %v2221 = vunpack.c.h.b16 %v1526
    %v2222 = vunpack.c.l.b16 %v1527
    %v2223 = vunpack.c.h.b16 %v1527
    %v2224 = vunpack.c.l.b16 %v1528
    %v2225 = vunpack.c.h.b16 %v1528
    %v2226 = vunpack.c.l.b16 %v1529
    %v2227 = vunpack.c.h.b16 %v1529
    %v2228 = vunpack.c.l.b16 %v1530
    %v2229 = vunpack.c.h.b16 %v1530
    %v2230 = vunpack.c.l.b16 %v1531
    %v2231 = vunpack.c.h.b16 %v1531
    %v2232 = vunpack.c.l.b16 %v1532
    %v2233 = vunpack.c.h.b16 %v1532
    %v2234 = vunpack.c.l.b16 %v1533
    %v2235 = vunpack.c.h.b16 %v1533
    %v2236 = vunpack.c.l.b16 %v1534
    %v2237 = vunpack.c.h.b16 %v1534
    %v2238 = vunpack.c.l.b16 %v1535
    %v2239 = vunpack.c.h.b16 %v1535
    %v2240 = vunpack.c.l.b16 %v1536
    %v2241 = vunpack.c.h.b16 %v1536
    %v2242 = vunpack.c.l.b16 %v1537
    %v2243 = vunpack.c.h.b16 %v1537
    %v2244 = vunpack.c.l.b16 %v1538
    %v2245 = vunpack.c.h.b16 %v1538
    %v2246 = vunpack.c.l.b16 %v1539
    %v2247 = vunpack.c.h.b16 %v1539
    %v2248 = vunpack.c.l.b16 %v1540
    %v2249 = vunpack.c.h.b16 %v1540
    %v2250 = vunpack.c.l.b16 %v1541
    %v2251 = vunpack.c.h.b16 %v1541
    %v2252 = vunpack.c.l.b16 %v1542
    %v2253 = vunpack.c.h.b16 %v1542
    %v2254 = vunpack.c.l.b16 %v1543
    %v2255 = vunpack.c.h.b16 %v1543
    %v2256 = vunpack.c.l.b16 %v1544
    %v2257 = vunpack.c.h.b16 %v1544
    %v2258 = vunpack.c.l.b16 %v1545
    %v2259 = vunpack.c.h.b16 %v1545
    %v2260 = vunpack.c.l.b16 %v1546
    %v2261 = vunpack.c.h.b16 %v1546
    %v2262 = vunpack.c.l.b16 %v1547
    %v2263 = vunpack.c.h.b16 %v1547
    %v2264 = vunpack.c.l.b16 %v1548
    %v2265 = vunpack.c.h.b16 %v1548
    %v2266 = vunpack.c.l.b16 %v1549
    %v2267 = vunpack.c.h.b16 %v1549
    %v2268 = vunpack.c.l.b16 %v1550
    %v2269 = vunpack.c.h.b16 %v1550
    %v2270 = vunpack.c.l.b16 %v1551
    %v2271 = vunpack.c.h.b16 %v1551
    %v2272 = vunpack.c.l.b16 %v1552
    %v2273 = vunpack.c.h.b16 %v1552
    %v2274 = vunpack.c.l.b16 %v1553
    %v2275 = vunpack.c.h.b16 %v1553
    %v2276 = vunpack.c.l.b16 %v1554
    %v2277 = vunpack.c.h.b16 %v1554
    %v2278 = vunpack.c.l.b16 %v1555
    %v2279 = vunpack.c.h.b16 %v1555
    %v2280 = vunpack.c.l.b16 %v1556
    %v2281 = vunpack.c.h.b16 %v1556
    %v2282 = vunpack.c.l.b16 %v1557
    %v2283 = vunpack.c.h.b16 %v1557
    %v2284 = vunpack.c.l.b16 %v1558
    %v2285 = vunpack.c.h.b16 %v1558
    %v2286 = vunpack.c.l.b16 %v1559
    %v2287 = vunpack.c.h.b16 %v1559
    %v2288 = vunpack.c.l.b16 %v1560
    %v2289 = vunpack.c.h.b16 %v1560
    %v2290 = vunpack.c.l.b16 %v1561
    %v2291 = vunpack.c.h.b16 %v1561
    %v2292 = vunpack.c.l.b16 %v1562
    %v2293 = vunpack.c.h.b16 %v1562
    %v2294 = vunpack.c.l.b16 %v1563
    %v2295 = vunpack.c.h.b16 %v1563
    %v2296 = vunpack.c.l.b16 %v1564
    %v2297 = vunpack.c.h.b16 %v1564
    %v2298 = vunpack.c.l.b16 %v1565
    %v2299 = vunpack.c.h.b16 %v1565
    %v2300 = vunpack.c.l.b16 %v1566
    %v2301 = vunpack.c.h.b16 %v1566
    %v2302 = vunpack.c.l.b16 %v1567
    %v2303 = vunpack.c.h.b16 %v1567
    %v2304 = vunpack.c.l.b16 %v1568
    %v2305 = vunpack.c.h.b16 %v1568
    %v2306 = vunpack.c.l.b16 %v1569
    %v2307 = vunpack.c.h.b16 %v1569
    %v2308 = vunpack.c.l.b16 %v1570
    %v2309 = vunpack.c.h.b16 %v1570
    %v2310 = vunpack.c.l.b16 %v1571
    %v2311 = vunpack.c.h.b16 %v1571
    %v2312 = vunpack.c.l.b16 %v1572
    %v2313 = vunpack.c.h.b16 %v1572
    %v2314 = vunpack.c.l.b16 %v1573
    %v2315 = vunpack.c.h.b16 %v1573
    %v2316 = vunpack.c.l.b16 %v1574
    %v2317 = vunpack.c.h.b16 %v1574
    %v2318 = vunpack.c.l.b16 %v1575
    %v2319 = vunpack.c.h.b16 %v1575
    %v2320 = vunpack.c.l.b16 %v1576
    %v2321 = vunpack.c.h.b16 %v1576
    %v2322 = vunpack.c.l.b16 %v1577
    %v2323 = vunpack.c.h.b16 %v1577
    %v2324 = vunpack.c.l.b16 %v1578
    %v2325 = vunpack.c.h.b16 %v1578
    %v2326 = vunpack.c.l.b16 %v1579
    %v2327 = vunpack.c.h.b16 %v1579
    %v2328 = vunpack.c.l.b16 %v1580
    %v2329 = vunpack.c.h.b16 %v1580
    %v2330 = vunpack.c.l.b16 %v1581
    %v2331 = vunpack.c.h.b16 %v1581
    %v2332 = vunpack.c.l.b16 %v1582
    %v2333 = vunpack.c.h.b16 %v1582
    %v2334 = vunpack.c.l.b16 %v1583
    %v2335 = vunpack.c.h.b16 %v1583
    %v2336 = vunpack.c.l.b16 %v1584
    %v2337 = vunpack.c.h.b16 %v1584
    %v2338 = vunpack.c.l.b16 %v1585
    %v2339 = vunpack.c.h.b16 %v1585
    %v2340 = vunpack.c.l.b16 %v1586
    %v2341 = vunpack.c.h.b16 %v1586
    %v2342 = vunpack.c.l.b16 %v1587
    %v2343 = vunpack.c.h.b16 %v1587
    %v2344 = vunpack.c.l.b16 %v1588
    %v2345 = vunpack.c.h.b16 %v1588
    %v2346 = vunpack.c.l.b16 %v1589
    %v2347 = vunpack.c.h.b16 %v1589
    %v2348 = vunpack.c.l.b16 %v1590
    %v2349 = vunpack.c.h.b16 %v1590
    %v2350 = vunpack.c.l.b16 %v1591
    %v2351 = vunpack.c.h.b16 %v1591
    %v2352 = vunpack.c.l.b16 %v1592
    %v2353 = vunpack.c.h.b16 %v1592
    %v2354 = vunpack.c.l.b16 %v1593
    %v2355 = vunpack.c.h.b16 %v1593
    %v2356 = vunpack.c.l.b16 %v1594
    %v2357 = vunpack.c.h.b16 %v1594
    %v2358 = vunpack.c.l.b16 %v1595
    %v2359 = vunpack.c.h.b16 %v1595
    %v2360 = vunpack.c.l.b16 %v1596
    %v2361 = vunpack.c.h.b16 %v1596
    %v2362 = vunpack.c.l.b16 %v1597
    %v2363 = vunpack.c.h.b16 %v1597
    %v2364 = vunpack.c.l.b16 %v1598
    %v2365 = vunpack.c.h.b16 %v1598
    %v2366 = vunpack.c.l.b16 %v1599
    %v2367 = vunpack.c.h.b16 %v1599
    %v2368 = vunpack.c.l.b16 %v1600
    %v2369 = vunpack.c.h.b16 %v1600
    %v2370 = vunpack.c.l.b16 %v1601
    %v2371 = vunpack.c.h.b16 %v1601
    %v2372 = vunpack.c.l.b16 %v1602
    %v2373 = vunpack.c.h.b16 %v1602
    %v2374 = vunpack.c.l.b16 %v1603
    %v2375 = vunpack.c.h.b16 %v1603
    %v2376 = vunpack.c.l.b16 %v1604
    %v2377 = vunpack.c.h.b16 %v1604
    %v2378 = vunpack.c.l.b16 %v1605
    %v2379 = vunpack.c.h.b16 %v1605
    %v2380 = vunpack.c.l.b16 %v1606
    %v2381 = vunpack.c.h.b16 %v1606
    %v2382 = vunpack.c.l.b16 %v1607
    %v2383 = vunpack.c.h.b16 %v1607
    %v2384 = vunpack.c.l.b16 %v1608
    %v2385 = vunpack.c.h.b16 %v1608
    %v2386 = vunpack.c.l.b16 %v1609
    %v2387 = vunpack.c.h.b16 %v1609
    %v2388 = vunpack.c.l.b16 %v1610
    %v2389 = vunpack.c.h.b16 %v1610
    %v2390 = vunpack.c.l.b16 %v1611
    %v2391 = vunpack.c.h.b16 %v1611
    %v2392 = vunpack.c.l.b16 %v1612
    %v2393 = vunpack.c.h.b16 %v1612
    %v2394 = vunpack.c.l.b16 %v1613
    %v2395 = vunpack.c.h.b16 %v1613
    %v2396 = vunpack.c.l.b16 %v1614
    %v2397 = vunpack.c.h.b16 %v1614
    %v2398 = vunpack.c.l.b16 %v1615
    %v2399 = vunpack.c.h.b16 %v1615
    %v2400 = vunpack.c.l.b16 %v1616
    %v2401 = vunpack.c.h.b16 %v1616
    %v2402 = vunpack.c.l.b16 %v1617
    %v2403 = vunpack.c.h.b16 %v1617
    %v2404 = vunpack.c.l.b16 %v1618
    %v2405 = vunpack.c.h.b16 %v1618
    %v2406 = vunpack.c.l.b16 %v1619
    %v2407 = vunpack.c.h.b16 %v1619
    %v2408 = vunpack.c.l.b16 %v1620
    %v2409 = vunpack.c.h.b16 %v1620
    %v2410 = vunpack.c.l.b16 %v1621
    %v2411 = vunpack.c.h.b16 %v1621
    %v2412 = vunpack.c.l.b16 %v1622
    %v2413 = vunpack.c.h.b16 %v1622
    %v2414 = vunpack.c.l.b16 %v1623
    %v2415 = vunpack.c.h.b16 %v1623
    %v2416 = vunpack.c.l.b16 %v1624
    %v2417 = vunpack.c.h.b16 %v1624
    %v2418 = vunpack.c.l.b16 %v1625
    %v2419 = vunpack.c.h.b16 %v1625
    %v2420 = vunpack.c.l.b16 %v1626
    %v2421 = vunpack.c.h.b16 %v1626
    %v2422 = vunpack.c.l.b16 %v1627
    %v2423 = vunpack.c.h.b16 %v1627
    %v2424 = vunpack.c.l.b16 %v1628
    %v2425 = vunpack.c.h.b16 %v1628
    %v2426 = vunpack.c.l.b16 %v1629
    %v2427 = vunpack.c.h.b16 %v1629
    %v2428 = vunpack.c.l.b16 %v1630
    %v2429 = vunpack.c.h.b16 %v1630
    %v2430 = vunpack.c.l.b16 %v1631
    %v2431 = vunpack.c.h.b16 %v1631
    %v2432 = vunpack.c.l.b16 %v1632
    %v2433 = vunpack.c.h.b16 %v1632
    %v2434 = vunpack.c.l.b16 %v1633
    %v2435 = vunpack.c.h.b16 %v1633
    %v2436 = vunpack.c.l.b16 %v1634
    %v2437 = vunpack.c.h.b16 %v1634
    %v2438 = vunpack.c.l.b16 %v1635
    %v2439 = vunpack.c.h.b16 %v1635
    %v2440 = vunpack.c.l.b16 %v1636
    %v2441 = vunpack.c.h.b16 %v1636
    %v2442 = vunpack.c.l.b16 %v1637
    %v2443 = vunpack.c.h.b16 %v1637
    %v2444 = vunpack.c.l.b16 %v1638
    %v2445 = vunpack.c.h.b16 %v1638
    %v2446 = vunpack.c.l.b16 %v1639
    %v2447 = vunpack.c.h.b16 %v1639
    %v2448 = vunpack.c.l.b16 %v1640
    %v2449 = vunpack.c.h.b16 %v1640
    %v2450 = vunpack.c.l.b16 %v1641
    %v2451 = vunpack.c.h.b16 %v1641
    %v2452 = vpack.c.b16 %v1948, %v1940
    %v2453 = vpack.c.b16 %v1949, %v1941
    %v2454 = vpack.c.b16 %v1950, %v1942
    %v2455 = vpack.c.b16 %v1951, %v1943
    %v2456 = vpack.c.b16 %v1952, %v1944
    %v2457 = vpack.c.b16 %v1953, %v1945
    %v2458 = vpack.c.b16 %v1954, %v1946
    %v2459 = vpack.c.b16 %v1955, %v1947
    %v2460 = vpack.c.b16 %v1964, %v1956
    %v2461 = vpack.c.b16 %v1965, %v1957
    %v2462 = vpack.c.b16 %v1966, %v1958
    %v2463 = vpack.c.b16 %v1967, %v1959
    %v2464 = vpack.c.b16 %v1968, %v1960
    %v2465 = vpack.c.b16 %v1969, %v1961
    %v2466 = vpack.c.b16 %v1970, %v1962
    %v2467 = vpack.c.b16 %v1971, %v1963
    %v2468 = vpack.c.b16 %v1980, %v1972
    %v2469 = vpack.c.b16 %v1981, %v1973
    %v2470 = vpack.c.b16 %v1982, %v1974
    %v2471 = vpack.c.b16 %v1983, %v1975
    %v2472 = vpack.c.b16 %v1984, %v1976
    %v2473 = vpack.c.b16 %v1985, %v1977
    %v2474 = vpack.c.b16 %v1986, %v1978
    %v2475 = vpack.c.b16 %v1987, %v1979
    %v2476 = vpack.c.b16 %v1996, %v1988
    %v2477 = vpack.c.b16 %v1997, %v1989
    %v2478 = vpack.c.b16 %v1998, %v1990
    %v2479 = vpack.c.b16 %v1999, %v1991
    %v2480 = vpack.c.b16 %v2000, %v1992
    %v2481 = vpack.c.b16 %v2001, %v1993
    %v2482 = vpack.c.b16 %v2002, %v1994
    %v2483 = vpack.c.b16 %v2003, %v1995
    %v2484 = vpack.c.b16 %v2012, %v2004
    %v2485 = vpack.c.b16 %v2013, %v2005
    %v2486 = vpack.c.b16 %v2014, %v2006
    %v2487 = vpack.c.b16 %v2015, %v2007
    %v2488 = vpack.c.b16 %v2016, %v2008
    %v2489 = vpack.c.b16 %v2017, %v2009
    %v2490 = vpack.c.b16 %v2018, %v2010
    %v2491 = vpack.c.b16 %v2019, %v2011
    %v2492 = vpack.c.b16 %v2028, %v2020
    %v2493 = vpack.c.b16 %v2029, %v2021
    %v2494 = vpack.c.b16 %v2030, %v2022
    %v2495 = vpack.c.b16 %v2031, %v2023
    %v2496 = vpack.c.b16 %v2032, %v2024
    %v2497 = vpack.c.b16 %v2033, %v2025
    %v2498 = vpack.c.b16 %v2034, %v2026
    %v2499 = vpack.c.b16 %v2035, %v2027
    %v2500 = vpack.c.b16 %v2044, %v2036
    %v2501 = vpack.c.b16 %v2045, %v2037
    %v2502 = vpack.c.b16 %v2046, %v2038
    %v2503 = vpack.c.b16 %v2047, %v2039
    %v2504 = vpack.c.b16 %v2048, %v2040
    %v2505 = vpack.c.b16 %v2049, %v2041
    %v2506 = vpack.c.b16 %v2050, %v2042
    %v2507 = vpack.c.b16 %v2051, %v2043
    %v2508 = vpack.c.b16 %v2060, %v2052
    %v2509 = vpack.c.b16 %v2061, %v2053
    %v2510 = vpack.c.b16 %v2062, %v2054
    %v2511 = vpack.c.b16 %v2063, %v2055
    %v2512 = vpack.c.b16 %v2064, %v2056
    %v2513 = vpack.c.b16 %v2065, %v2057
    %v2514 = vpack.c.b16 %v2066, %v2058
    %v2515 = vpack.c.b16 %v2067, %v2059
    %v2516 = vpack.c.b16 %v2076, %v2068
    %v2517 = vpack.c.b16 %v2077, %v2069
    %v2518 = vpack.c.b16 %v2078, %v2070
    %v2519 = vpack.c.b16 %v2079, %v2071
    %v2520 = vpack.c.b16 %v2080, %v2072
    %v2521 = vpack.c.b16 %v2081, %v2073
    %v2522 = vpack.c.b16 %v2082, %v2074
    %v2523 = vpack.c.b16 %v2083, %v2075
    %v2524 = vpack.c.b16 %v2092, %v2084
    %v2525 = vpack.c.b16 %v2093, %v2085
    %v2526 = vpack.c.b16 %v2094, %v2086
    %v2527 = vpack.c.b16 %v2095, %v2087
    %v2528 = vpack.c.b16 %v2096, %v2088
    %v2529 = vpack.c.b16 %v2097, %v2089
    %v2530 = vpack.c.b16 %v2098, %v2090
    %v2531 = vpack.c.b16 %v2099, %v2091
    %v2532 = vpack.c.b16 %v2108, %v2100
    %v2533 = vpack.c.b16 %v2109, %v2101
    %v2534 = vpack.c.b16 %v2110, %v2102
    %v2535 = vpack.c.b16 %v2111, %v2103
    %v2536 = vpack.c.b16 %v2112, %v2104
    %v2537 = vpack.c.b16 %v2113, %v2105
    %v2538 = vpack.c.b16 %v2114, %v2106
    %v2539 = vpack.c.b16 %v2115, %v2107
    %v2540 = vpack.c.b16 %v2124, %v2116
    %v2541 = vpack.c.b16 %v2125, %v2117
    %v2542 = vpack.c.b16 %v2126, %v2118
    %v2543 = vpack.c.b16 %v2127, %v2119
    %v2544 = vpack.c.b16 %v2128, %v2120
    %v2545 = vpack.c.b16 %v2129, %v2121
    %v2546 = vpack.c.b16 %v2130, %v2122
    %v2547 = vpack.c.b16 %v2131, %v2123
    %v2548 = vpack.c.b16 %v2140, %v2132
    %v2549 = vpack.c.b16 %v2141, %v2133
    %v2550 = vpack.c.b16 %v2142, %v2134
    %v2551 = vpack.c.b16 %v2143, %v2135
    %v2552 = vpack.c.b16 %v2144, %v2136
    %v2553 = vpack.c.b16 %v2145, %v2137
    %v2554 = vpack.c.b16 %v2146, %v2138
    %v2555 = vpack.c.b16 %v2147, %v2139
    %v2556 = vpack.c.b16 %v2156, %v2148
    %v2557 = vpack.c.b16 %v2157, %v2149
    %v2558 = vpack.c.b16 %v2158, %v2150
    %v2559 = vpack.c.b16 %v2159, %v2151
    %v2560 = vpack.c.b16 %v2160, %v2152
    %v2561 = vpack.c.b16 %v2161, %v2153
    %v2562 = vpack.c.b16 %v2162, %v2154
    %v2563 = vpack.c.b16 %v2163, %v2155
    %v2564 = vpack.c.b16 %v2172, %v2164
    %v2565 = vpack.c.b16 %v2173, %v2165
    %v2566 = vpack.c.b16 %v2174, %v2166
    %v2567 = vpack.c.b16 %v2175, %v2167
    %v2568 = vpack.c.b16 %v2176, %v2168
    %v2569 = vpack.c.b16 %v2177, %v2169
    %v2570 = vpack.c.b16 %v2178, %v2170
    %v2571 = vpack.c.b16 %v2179, %v2171
    %v2572 = vpack.c.b16 %v2188, %v2180
    %v2573 = vpack.c.b16 %v2189, %v2181
    %v2574 = vpack.c.b16 %v2190, %v2182
    %v2575 = vpack.c.b16 %v2191, %v2183
    %v2576 = vpack.c.b16 %v2192, %v2184
    %v2577 = vpack.c.b16 %v2193, %v2185
    %v2578 = vpack.c.b16 %v2194, %v2186
    %v2579 = vpack.c.b16 %v2195, %v2187
    %v2580 = vpack.c.b16 %v2204, %v2196
    %v2581 = vpack.c.b16 %v2205, %v2197
    %v2582 = vpack.c.b16 %v2206, %v2198
    %v2583 = vpack.c.b16 %v2207, %v2199
    %v2584 = vpack.c.b16 %v2208, %v2200
    %v2585 = vpack.c.b16 %v2209, %v2201
    %v2586 = vpack.c.b16 %v2210, %v2202
    %v2587 = vpack.c.b16 %v2211, %v2203
    %v2588 = vpack.c.b16 %v2220, %v2212
    %v2589 = vpack.c.b16 %v2221, %v2213
    %v2590 = vpack.c.b16 %v2222, %v2214
    %v2591 = vpack.c.b16 %v2223, %v2215
    %v2592 = vpack.c.b16 %v2224, %v2216
    %v2593 = vpack.c.b16 %v2225, %v2217
    %v2594 = vpack.c.b16 %v2226, %v2218
    %v2595 = vpack.c.b16 %v2227, %v2219
    %v2596 = vpack.c.b16 %v2236, %v2228
    %v2597 = vpack.c.b16 %v2237, %v2229
    %v2598 = vpack.c.b16 %v2238, %v2230
    %v2599 = vpack.c.b16 %v2239, %v2231
    %v2600 = vpack.c.b16 %v2240, %v2232
    %v2601 = vpack.c.b16 %v2241, %v2233
    %v2602 = vpack.c.b16 %v2242, %v2234
    %v2603 = vpack.c.b16 %v2243, %v2235
    %v2604 = vpack.c.b16 %v2252, %v2244
    %v2605 = vpack.c.b16 %v2253, %v2245
    %v2606 = vpack.c.b16 %v2254, %v2246
    %v2607 = vpack.c.b16 %v2255, %v2247
    %v2608 = vpack.c.b16 %v2256, %v2248
    %v2609 = vpack.c.b16 %v2257, %v2249
    %v2610 = vpack.c.b16 %v2258, %v2250
    %v2611 = vpack.c.b16 %v2259, %v2251
    %v2612 = vpack.c.b16 %v2268, %v2260
    %v2613 = vpack.c.b16 %v2269, %v2261
    %v2614 = vpack.c.b16 %v2270, %v2262
    %v2615 = vpack.c.b16 %v2271, %v2263
    %v2616 = vpack.c.b16 %v2272, %v2264
    %v2617 = vpack.c.b16 %v2273, %v2265
    %v2618 = vpack.c.b16 %v2274, %v2266
    %v2619 = vpack.c.b16 %v2275, %v2267
    %v2620 = vpack.c.b16 %v2284, %v2276
    %v2621 = vpack.c.b16 %v2285, %v2277
    %v2622 = vpack.c.b16 %v2286, %v2278
    %v2623 = vpack.c.b16 %v2287, %v2279
    %v2624 = vpack.c.b16 %v2288, %v2280
    %v2625 = vpack.c.b16 %v2289, %v2281
    %v2626 = vpack.c.b16 %v2290, %v2282
    %v2627 = vpack.c.b16 %v2291, %v2283
    %v2628 = vpack.c.b16 %v2300, %v2292
    %v2629 = vpack.c.b16 %v2301, %v2293
    %v2630 = vpack.c.b16 %v2302, %v2294
    %v2631 = vpack.c.b16 %v2303, %v2295
    %v2632 = vpack.c.b16 %v2304, %v2296
    %v2633 = vpack.c.b16 %v2305, %v2297
    %v2634 = vpack.c.b16 %v2306, %v2298
    %v2635 = vpack.c.b16 %v2307, %v2299
    %v2636 = vpack.c.b16 %v2316, %v2308
    %v2637 = vpack.c.b16 %v2317, %v2309
    %v2638 = vpack.c.b16 %v2318, %v2310
    %v2639 = vpack.c.b16 %v2319, %v2311
    %v2640 = vpack.c.b16 %v2320, %v2312
    %v2641 = vpack.c.b16 %v2321, %v2313
    %v2642 = vpack.c.b16 %v2322, %v2314
    %v2643 = vpack.c.b16 %v2323, %v2315
    %v2644 = vpack.c.b16 %v2332, %v2324
    %v2645 = vpack.c.b16 %v2333, %v2325
    %v2646 = vpack.c.b16 %v2334, %v2326
    %v2647 = vpack.c.b16 %v2335, %v2327
    %v2648 = vpack.c.b16 %v2336, %v2328
    %v2649 = vpack.c.b16 %v2337, %v2329
    %v2650 = vpack.c.b16 %v2338, %v2330
    %v2651 = vpack.c.b16 %v2339, %v2331
    %v2652 = vpack.c.b16 %v2348, %v2340
    %v2653 = vpack.c.b16 %v2349, %v2341
    %v2654 = vpack.c.b16 %v2350, %v2342
    %v2655 = vpack.c.b16 %v2351, %v2343
    %v2656 = vpack.c.b16 %v2352, %v2344
    %v2657 = vpack.c.b16 %v2353, %v2345
    %v2658 = vpack.c.b16 %v2354, %v2346
    %v2659 = vpack.c.b16 %v2355, %v2347
    %v2660 = vpack.c.b16 %v2364, %v2356
    %v2661 = vpack.c.b16 %v2365, %v2357
    %v2662 = vpack.c.b16 %v2366, %v2358
    %v2663 = vpack.c.b16 %v2367, %v2359
    %v2664 = vpack.c.b16 %v2368, %v2360
    %v2665 = vpack.c.b16 %v2369, %v2361
    %v2666 = vpack.c.b16 %v2370, %v2362
    %v2667 = vpack.c.b16 %v2371, %v2363
    %v2668 = vpack.c.b16 %v2380, %v2372
    %v2669 = vpack.c.b16 %v2381, %v2373
    %v2670 = vpack.c.b16 %v2382, %v2374
    %v2671 = vpack.c.b16 %v2383, %v2375
    %v2672 = vpack.c.b16 %v2384, %v2376
    %v2673 = vpack.c.b16 %v2385, %v2377
    %v2674 = vpack.c.b16 %v2386, %v2378
    %v2675 = vpack.c.b16 %v2387, %v2379
    %v2676 = vpack.c.b16 %v2396, %v2388
    %v2677 = vpack.c.b16 %v2397, %v2389
    %v2678 = vpack.c.b16 %v2398, %v2390
    %v2679 = vpack.c.b16 %v2399, %v2391
    %v2680 = vpack.c.b16 %v2400, %v2392
    %v2681 = vpack.c.b16 %v2401, %v2393
    %v2682 = vpack.c.b16 %v2402, %v2394
    %v2683 = vpack.c.b16 %v2403, %v2395
    %v2684 = vpack.c.b16 %v2412, %v2404
    %v2685 = vpack.c.b16 %v2413, %v2405
    %v2686 = vpack.c.b16 %v2414, %v2406
    %v2687 = vpack.c.b16 %v2415, %v2407
    %v2688 = vpack.c.b16 %v2416, %v2408
    %v2689 = vpack.c.b16 %v2417, %v2409
    %v2690 = vpack.c.b16 %v2418, %v2410
    %v2691 = vpack.c.b16 %v2419, %v2411
    %v2692 = vpack.c.b16 %v2428, %v2420
    %v2693 = vpack.c.b16 %v2429, %v2421
    %v2694 = vpack.c.b16 %v2430, %v2422
    %v2695 = vpack.c.b16 %v2431, %v2423
    %v2696 = vpack.c.b16 %v2432, %v2424
    %v2697 = vpack.c.b16 %v2433, %v2425
    %v2698 = vpack.c.b16 %v2434, %v2426
    %v2699 = vpack.c.b16 %v2435, %v2427
    %v2700 = vpack.c.b16 %v2444, %v2436
    %v2701 = vpack.c.b16 %v2445, %v2437
    %v2702 = vpack.c.b16 %v2446, %v2438
    %v2703 = vpack.c.b16 %v2447, %v2439
    %v2704 = vpack.c.b16 %v2448, %v2440
    %v2705 = vpack.c.b16 %v2449, %v2441
    %v2706 = vpack.c.b16 %v2450, %v2442
    %v2707 = vpack.c.b16 %v2451, %v2443
    %2964 = vmatprep.subr.bf16.mxu0 %v2509
    %2965 = vmatpush1.bf16.msra.mxu0 %v2508
    %2966 = vmatprep.subr.bf16.mxu0 %v2501
    %2967 = vmatpush1.bf16.msra.mxu0 %v2500
    %2968 = vmatprep.subr.bf16.mxu0 %v2493
    %2969 = vmatpush1.bf16.msra.mxu0 %v2492
    %2970 = vmatprep.subr.bf16.mxu0 %v2485
    %2971 = vmatpush1.bf16.msra.mxu0 %v2484
    %2972 = vmatprep.subr.bf16.mxu0 %v2477
    %2973 = vmatpush1.bf16.msra.mxu0 %v2476
    %2974 = vmatprep.subr.bf16.mxu0 %v2469
    %2975 = vmatpush1.bf16.msra.mxu0 %v2468
    %2976 = vmatprep.subr.bf16.mxu0 %v2461
    %2977 = vmatpush1.bf16.msra.mxu0 %v2460
    %2978 = vmatprep.subr.bf16.mxu0 %v2453
    %2979 = vmatpush1.bf16.msra.mxu0 %v2452
    %2980 = vmatprep.subr.bf16.mxu0 %v2573
    %2981 = vmatpush2.bf16.msra.mxu0 %v2572
    %2982 = vmatprep.subr.bf16.mxu0 %v2565
    %2983 = vmatpush2.bf16.msra.mxu0 %v2564
    %2984 = vmatprep.subr.bf16.mxu0 %v2557
    %2985 = vmatpush2.bf16.msra.mxu0 %v2556
    %2986 = vmatprep.subr.bf16.mxu0 %v2549
    %2987 = vmatpush2.bf16.msra.mxu0 %v2548
    %2988 = vmatprep.subr.bf16.mxu0 %v2541
    %2989 = vmatpush2.bf16.msra.mxu0 %v2540
    %2990 = vmatprep.subr.bf16.mxu0 %v2533
    %2991 = vmatpush2.bf16.msra.mxu0 %v2532
    %2992 = vmatprep.subr.bf16.mxu0 %v2525
    %2993 = vmatpush2.bf16.msra.mxu0 %v2524
    %2994 = vmatprep.subr.bf16.mxu0 %v2517
    %2995 = vmatpush2.bf16.msra.mxu0 %v2516
    %2996 = vmatprep.mubr.bf16.mxu0 %v1383
    %2997 = vmatmul.mubr.bf16.gmra.mxu0 %v1382
    %v2998 = vpop.f32.mrf.mxu0
    %v2999 = vadd.f32 %v1647, %v2998
    %v3000 = vpop.f32.mrf.mxu0
    %v3001 = vadd.f32 %v1651, %v3000
    %v3002 = vpop.f32.mrf.mxu0
    %v3003 = vpop.f32.mrf.mxu0
    %3004 = vdwg.mxu0
    %3005 = vmatprep.subr.bf16.mxu0 %v2637
    %3006 = vmatpush1.bf16.msra.mxu0 %v2636
    %3007 = vmatprep.subr.bf16.mxu0 %v2629
    %3008 = vmatpush1.bf16.msra.mxu0 %v2628
    %3009 = vmatprep.subr.bf16.mxu0 %v2621
    %3010 = vmatpush1.bf16.msra.mxu0 %v2620
    %3011 = vmatprep.subr.bf16.mxu0 %v2613
    %3012 = vmatpush1.bf16.msra.mxu0 %v2612
    %3013 = vmatprep.subr.bf16.mxu0 %v2605
    %3014 = vmatpush1.bf16.msra.mxu0 %v2604
    %3015 = vmatprep.subr.bf16.mxu0 %v2597
    %3016 = vmatpush1.bf16.msra.mxu0 %v2596
    %3017 = vmatprep.subr.bf16.mxu0 %v2589
    %3018 = vmatpush1.bf16.msra.mxu0 %v2588
    %3019 = vmatprep.subr.bf16.mxu0 %v2581
    %3020 = vmatpush1.bf16.msra.mxu0 %v2580
    %3021 = vmatprep.subr.bf16.mxu0 %v2701
    %3022 = vmatpush2.bf16.msra.mxu0 %v2700
    %3023 = vmatprep.subr.bf16.mxu0 %v2693
    %3024 = vmatpush2.bf16.msra.mxu0 %v2692
    %3025 = vmatprep.subr.bf16.mxu0 %v2685
    %3026 = vmatpush2.bf16.msra.mxu0 %v2684
    %3027 = vmatprep.subr.bf16.mxu0 %v2677
    %3028 = vmatpush2.bf16.msra.mxu0 %v2676
    %3029 = vmatprep.subr.bf16.mxu0 %v2669
    %3030 = vmatpush2.bf16.msra.mxu0 %v2668
    %3031 = vmatprep.subr.bf16.mxu0 %v2661
    %3032 = vmatpush2.bf16.msra.mxu0 %v2660
    %3033 = vmatprep.subr.bf16.mxu0 %v2653
    %3034 = vmatpush2.bf16.msra.mxu0 %v2652
    %3035 = vmatprep.subr.bf16.mxu0 %v2645
    %3036 = vmatpush2.bf16.msra.mxu0 %v2644
    %3037 = vmatprep.mubr.bf16.mxu0 %v1385
    %3038 = vmatmul.mubr.bf16.gmra.mxu0 %v1384
    %v3039 = vpop.f32.mrf.mxu0
    %v3040 = vadd.f32 %v2999, %v3039
    %v3041 = vpop.f32.mrf.mxu0
    %v3042 = vadd.f32 %v3001, %v3041
    %v3043 = vpop.f32.mrf.mxu0
    %v3044 = vpop.f32.mrf.mxu0
    %3045 = vdwg.mxu0
    %3046 = vmatprep.subr.bf16.mxu0 %v2511
    %3047 = vmatpush1.bf16.msra.mxu0 %v2510
    %3048 = vmatprep.subr.bf16.mxu0 %v2503
    %3049 = vmatpush1.bf16.msra.mxu0 %v2502
    %3050 = vmatprep.subr.bf16.mxu0 %v2495
    %3051 = vmatpush1.bf16.msra.mxu0 %v2494
    %3052 = vmatprep.subr.bf16.mxu0 %v2487
    %3053 = vmatpush1.bf16.msra.mxu0 %v2486
    %3054 = vmatprep.subr.bf16.mxu0 %v2479
    %3055 = vmatpush1.bf16.msra.mxu0 %v2478
    %3056 = vmatprep.subr.bf16.mxu0 %v2471
    %3057 = vmatpush1.bf16.msra.mxu0 %v2470
    %3058 = vmatprep.subr.bf16.mxu0 %v2463
    %3059 = vmatpush1.bf16.msra.mxu0 %v2462
    %3060 = vmatprep.subr.bf16.mxu0 %v2455
    %3061 = vmatpush1.bf16.msra.mxu0 %v2454
    %3062 = vmatprep.subr.bf16.mxu0 %v2575
    %3063 = vmatpush2.bf16.msra.mxu0 %v2574
    %3064 = vmatprep.subr.bf16.mxu0 %v2567
    %3065 = vmatpush2.bf16.msra.mxu0 %v2566
    %3066 = vmatprep.subr.bf16.mxu0 %v2559
    %3067 = vmatpush2.bf16.msra.mxu0 %v2558
    %3068 = vmatprep.subr.bf16.mxu0 %v2551
    %3069 = vmatpush2.bf16.msra.mxu0 %v2550
    %3070 = vmatprep.subr.bf16.mxu0 %v2543
    %3071 = vmatpush2.bf16.msra.mxu0 %v2542
    %3072 = vmatprep.subr.bf16.mxu0 %v2535
    %3073 = vmatpush2.bf16.msra.mxu0 %v2534
    %3074 = vmatprep.subr.bf16.mxu0 %v2527
    %3075 = vmatpush2.bf16.msra.mxu0 %v2526
    %3076 = vmatprep.subr.bf16.mxu0 %v2519
    %3077 = vmatpush2.bf16.msra.mxu0 %v2518
    %3078 = vmatprep.mubr.bf16.mxu0 %v1383
    %3079 = vmatmul.mubr.bf16.gmra.mxu0 %v1382
    %v3080 = vpop.f32.mrf.mxu0
    %v3081 = vadd.f32 %v1655, %v3080
    %v3082 = vpop.f32.mrf.mxu0
    %v3083 = vadd.f32 %v1659, %v3082
    %v3084 = vpop.f32.mrf.mxu0
    %v3085 = vpop.f32.mrf.mxu0
    %3086 = vdwg.mxu0
    %3087 = vmatprep.subr.bf16.mxu0 %v2639
    %3088 = vmatpush1.bf16.msra.mxu0 %v2638
    %3089 = vmatprep.subr.bf16.mxu0 %v2631
    %3090 = vmatpush1.bf16.msra.mxu0 %v2630
    %3091 = vmatprep.subr.bf16.mxu0 %v2623
    %3092 = vmatpush1.bf16.msra.mxu0 %v2622
    %3093 = vmatprep.subr.bf16.mxu0 %v2615
    %3094 = vmatpush1.bf16.msra.mxu0 %v2614
    %3095 = vmatprep.subr.bf16.mxu0 %v2607
    %3096 = vmatpush1.bf16.msra.mxu0 %v2606
    %3097 = vmatprep.subr.bf16.mxu0 %v2599
    %3098 = vmatpush1.bf16.msra.mxu0 %v2598
    %3099 = vmatprep.subr.bf16.mxu0 %v2591
    %3100 = vmatpush1.bf16.msra.mxu0 %v2590
    %3101 = vmatprep.subr.bf16.mxu0 %v2583
    %3102 = vmatpush1.bf16.msra.mxu0 %v2582
    %3103 = vmatprep.subr.bf16.mxu0 %v2703
    %3104 = vmatpush2.bf16.msra.mxu0 %v2702
    %3105 = vmatprep.subr.bf16.mxu0 %v2695
    %3106 = vmatpush2.bf16.msra.mxu0 %v2694
    %3107 = vmatprep.subr.bf16.mxu0 %v2687
    %3108 = vmatpush2.bf16.msra.mxu0 %v2686
    %3109 = vmatprep.subr.bf16.mxu0 %v2679
    %3110 = vmatpush2.bf16.msra.mxu0 %v2678
    %3111 = vmatprep.subr.bf16.mxu0 %v2671
    %3112 = vmatpush2.bf16.msra.mxu0 %v2670
    %3113 = vmatprep.subr.bf16.mxu0 %v2663
    %3114 = vmatpush2.bf16.msra.mxu0 %v2662
    %3115 = vmatprep.subr.bf16.mxu0 %v2655
    %3116 = vmatpush2.bf16.msra.mxu0 %v2654
    %3117 = vmatprep.subr.bf16.mxu0 %v2647
    %3118 = vmatpush2.bf16.msra.mxu0 %v2646
    %3119 = vmatprep.mubr.bf16.mxu0 %v1385
    %3120 = vmatmul.mubr.bf16.gmra.mxu0 %v1384
    %v3121 = vpop.f32.mrf.mxu0
    %v3122 = vadd.f32 %v3081, %v3121
    %v3123 = vpop.f32.mrf.mxu0
    %v3124 = vadd.f32 %v3083, %v3123
    %v3125 = vpop.f32.mrf.mxu0
    %v3126 = vpop.f32.mrf.mxu0
    %3127 = vdwg.mxu0
    %3128 = vmatprep.subr.bf16.mxu0 %v2513
    %3129 = vmatpush1.bf16.msra.mxu0 %v2512
    %3130 = vmatprep.subr.bf16.mxu0 %v2505
    %3131 = vmatpush1.bf16.msra.mxu0 %v2504
    %3132 = vmatprep.subr.bf16.mxu0 %v2497
    %3133 = vmatpush1.bf16.msra.mxu0 %v2496
    %3134 = vmatprep.subr.bf16.mxu0 %v2489
    %3135 = vmatpush1.bf16.msra.mxu0 %v2488
    %3136 = vmatprep.subr.bf16.mxu0 %v2481
    %3137 = vmatpush1.bf16.msra.mxu0 %v2480
    %3138 = vmatprep.subr.bf16.mxu0 %v2473
    %3139 = vmatpush1.bf16.msra.mxu0 %v2472
    %3140 = vmatprep.subr.bf16.mxu0 %v2465
    %3141 = vmatpush1.bf16.msra.mxu0 %v2464
    %3142 = vmatprep.subr.bf16.mxu0 %v2457
    %3143 = vmatpush1.bf16.msra.mxu0 %v2456
    %3144 = vmatprep.subr.bf16.mxu0 %v2577
    %3145 = vmatpush2.bf16.msra.mxu0 %v2576
    %3146 = vmatprep.subr.bf16.mxu0 %v2569
    %3147 = vmatpush2.bf16.msra.mxu0 %v2568
    %3148 = vmatprep.subr.bf16.mxu0 %v2561
    %3149 = vmatpush2.bf16.msra.mxu0 %v2560
    %3150 = vmatprep.subr.bf16.mxu0 %v2553
    %3151 = vmatpush2.bf16.msra.mxu0 %v2552
    %3152 = vmatprep.subr.bf16.mxu0 %v2545
    %3153 = vmatpush2.bf16.msra.mxu0 %v2544
    %3154 = vmatprep.subr.bf16.mxu0 %v2537
    %3155 = vmatpush2.bf16.msra.mxu0 %v2536
    %3156 = vmatprep.subr.bf16.mxu0 %v2529
    %3157 = vmatpush2.bf16.msra.mxu0 %v2528
    %3158 = vmatprep.subr.bf16.mxu0 %v2521
    %3159 = vmatpush2.bf16.msra.mxu0 %v2520
    %3160 = vmatprep.mubr.bf16.mxu0 %v1383
    %3161 = vmatmul.mubr.bf16.gmra.mxu0 %v1382
    %v3162 = vpop.f32.mrf.mxu0
    %v3163 = vadd.f32 %v1663, %v3162
    %v3164 = vpop.f32.mrf.mxu0
    %v3165 = vadd.f32 %v1667, %v3164
    %v3166 = vpop.f32.mrf.mxu0
    %v3167 = vpop.f32.mrf.mxu0
    %3168 = vdwg.mxu0
    %3169 = vmatprep.subr.bf16.mxu0 %v2641
    %3170 = vmatpush1.bf16.msra.mxu0 %v2640
    %3171 = vmatprep.subr.bf16.mxu0 %v2633
    %3172 = vmatpush1.bf16.msra.mxu0 %v2632
    %3173 = vmatprep.subr.bf16.mxu0 %v2625
    %3174 = vmatpush1.bf16.msra.mxu0 %v2624
    %3175 = vmatprep.subr.bf16.mxu0 %v2617
    %3176 = vmatpush1.bf16.msra.mxu0 %v2616
    %3177 = vmatprep.subr.bf16.mxu0 %v2609
    %3178 = vmatpush1.bf16.msra.mxu0 %v2608
    %3179 = vmatprep.subr.bf16.mxu0 %v2601
    %3180 = vmatpush1.bf16.msra.mxu0 %v2600
    %3181 = vmatprep.subr.bf16.mxu0 %v2593
    %3182 = vmatpush1.bf16.msra.mxu0 %v2592
    %3183 = vmatprep.subr.bf16.mxu0 %v2585
    %3184 = vmatpush1.bf16.msra.mxu0 %v2584
    %3185 = vmatprep.subr.bf16.mxu0 %v2705
    %3186 = vmatpush2.bf16.msra.mxu0 %v2704
    %3187 = vmatprep.subr.bf16.mxu0 %v2697
    %3188 = vmatpush2.bf16.msra.mxu0 %v2696
    %3189 = vmatprep.subr.bf16.mxu0 %v2689
    %3190 = vmatpush2.bf16.msra.mxu0 %v2688
    %3191 = vmatprep.subr.bf16.mxu0 %v2681
    %3192 = vmatpush2.bf16.msra.mxu0 %v2680
    %3193 = vmatprep.subr.bf16.mxu0 %v2673
    %3194 = vmatpush2.bf16.msra.mxu0 %v2672
    %3195 = vmatprep.subr.bf16.mxu0 %v2665
    %3196 = vmatpush2.bf16.msra.mxu0 %v2664
    %3197 = vmatprep.subr.bf16.mxu0 %v2657
    %3198 = vmatpush2.bf16.msra.mxu0 %v2656
    %3199 = vmatprep.subr.bf16.mxu0 %v2649
    %3200 = vmatpush2.bf16.msra.mxu0 %v2648
    %3201 = vmatprep.mubr.bf16.mxu0 %v1385
    %3202 = vmatmul.mubr.bf16.gmra.mxu0 %v1384
    %v3203 = vpop.f32.mrf.mxu0
    %v3204 = vadd.f32 %v3163, %v3203
    %v3205 = vpop.f32.mrf.mxu0
    %v3206 = vadd.f32 %v3165, %v3205
    %v3207 = vpop.f32.mrf.mxu0
    %v3208 = vpop.f32.mrf.mxu0
    %3209 = vdwg.mxu0
    %3210 = vmatprep.subr.bf16.mxu0 %v2515
    %3211 = vmatpush1.bf16.msra.mxu0 %v2514
    %3212 = vmatprep.subr.bf16.mxu0 %v2507
    %3213 = vmatpush1.bf16.msra.mxu0 %v2506
    %3214 = vmatprep.subr.bf16.mxu0 %v2499
    %3215 = vmatpush1.bf16.msra.mxu0 %v2498
    %3216 = vmatprep.subr.bf16.mxu0 %v2491
    %3217 = vmatpush1.bf16.msra.mxu0 %v2490
    %3218 = vmatprep.subr.bf16.mxu0 %v2483
    %3219 = vmatpush1.bf16.msra.mxu0 %v2482
    %3220 = vmatprep.subr.bf16.mxu0 %v2475
    %3221 = vmatpush1.bf16.msra.mxu0 %v2474
    %3222 = vmatprep.subr.bf16.mxu0 %v2467
    %3223 = vmatpush1.bf16.msra.mxu0 %v2466
    %3224 = vmatprep.subr.bf16.mxu0 %v2459
    %3225 = vmatpush1.bf16.msra.mxu0 %v2458
    %3226 = vmatprep.subr.bf16.mxu0 %v2579
    %3227 = vmatpush2.bf16.msra.mxu0 %v2578
    %3228 = vmatprep.subr.bf16.mxu0 %v2571
    %3229 = vmatpush2.bf16.msra.mxu0 %v2570
    %3230 = vmatprep.subr.bf16.mxu0 %v2563
    %3231 = vmatpush2.bf16.msra.mxu0 %v2562
    %3232 = vmatprep.subr.bf16.mxu0 %v2555
    %3233 = vmatpush2.bf16.msra.mxu0 %v2554
    %3234 = vmatprep.subr.bf16.mxu0 %v2547
    %3235 = vmatpush2.bf16.msra.mxu0 %v2546
    %3236 = vmatprep.subr.bf16.mxu0 %v2539
    %3237 = vmatpush2.bf16.msra.mxu0 %v2538
    %3238 = vmatprep.subr.bf16.mxu0 %v2531
    %3239 = vmatpush2.bf16.msra.mxu0 %v2530
    %3240 = vmatprep.subr.bf16.mxu0 %v2523
    %3241 = vmatpush2.bf16.msra.mxu0 %v2522
    %3242 = vmatprep.mubr.bf16.mxu0 %v1383
    %3243 = vmatmul.mubr.bf16.gmra.mxu0 %v1382
    %v3244 = vpop.f32.mrf.mxu0
    %v3245 = vadd.f32 %v1671, %v3244
    %v3246 = vpop.f32.mrf.mxu0
    %v3247 = vadd.f32 %v1675, %v3246
    %v3248 = vpop.f32.mrf.mxu0
    %v3249 = vpop.f32.mrf.mxu0
    %3250 = vdwg.mxu0
    %3251 = vmatprep.subr.bf16.mxu0 %v2643
    %3252 = vmatpush1.bf16.msra.mxu0 %v2642
    %3253 = vmatprep.subr.bf16.mxu0 %v2635
    %3254 = vmatpush1.bf16.msra.mxu0 %v2634
    %3255 = vmatprep.subr.bf16.mxu0 %v2627
    %3256 = vmatpush1.bf16.msra.mxu0 %v2626
    %3257 = vmatprep.subr.bf16.mxu0 %v2619
    %3258 = vmatpush1.bf16.msra.mxu0 %v2618
    %3259 = vmatprep.subr.bf16.mxu0 %v2611
    %3260 = vmatpush1.bf16.msra.mxu0 %v2610
    %3261 = vmatprep.subr.bf16.mxu0 %v2603
    %3262 = vmatpush1.bf16.msra.mxu0 %v2602
    %3263 = vmatprep.subr.bf16.mxu0 %v2595
    %3264 = vmatpush1.bf16.msra.mxu0 %v2594
    %3265 = vmatprep.subr.bf16.mxu0 %v2587
    %3266 = vmatpush1.bf16.msra.mxu0 %v2586
    %3267 = vmatprep.subr.bf16.mxu0 %v2707
    %3268 = vmatpush2.bf16.msra.mxu0 %v2706
    %3269 = vmatprep.subr.bf16.mxu0 %v2699
    %3270 = vmatpush2.bf16.msra.mxu0 %v2698
    %3271 = vmatprep.subr.bf16.mxu0 %v2691
    %3272 = vmatpush2.bf16.msra.mxu0 %v2690
    %3273 = vmatprep.subr.bf16.mxu0 %v2683
    %3274 = vmatpush2.bf16.msra.mxu0 %v2682
    %3275 = vmatprep.subr.bf16.mxu0 %v2675
    %3276 = vmatpush2.bf16.msra.mxu0 %v2674
    %3277 = vmatprep.subr.bf16.mxu0 %v2667
    %3278 = vmatpush2.bf16.msra.mxu0 %v2666
    %3279 = vmatprep.subr.bf16.mxu0 %v2659
    %3280 = vmatpush2.bf16.msra.mxu0 %v2658
    %3281 = vmatprep.subr.bf16.mxu0 %v2651
    %3282 = vmatpush2.bf16.msra.mxu0 %v2650
    %3283 = vmatprep.mubr.bf16.mxu0 %v1385
    %3284 = vmatmul.mubr.bf16.gmra.mxu0 %v1384
    %v3285 = vpop.f32.mrf.mxu0
    %v3286 = vadd.f32 %v3245, %v3285
    %v3287 = vpop.f32.mrf.mxu0
    %v3288 = vadd.f32 %v3247, %v3287
    %v3289 = vpop.f32.mrf.mxu0
    %v3290 = vpop.f32.mrf.mxu0
    %3291 = vdwg.mxu0
    %v3292 = vld [vmem:[%s16] sm:$0xff]
    %v3293 = vld [vmem:[#allocation16] sm:$0xff]
    %v3294 = vsel %vm571, %v3040, 0.0
    %v3295 = vsel %vm571, %v3042, 0.0
    %v3296 = vsel %vm571, %v3122, 0.0
    %v3297 = vsel %vm571, %v3124, 0.0
    %v3298 = vsel %vm571, %v3204, 0.0
    %v3299 = vsel %vm571, %v3206, 0.0
    %v3300 = vsel %vm571, %v3286, 0.0
    %v3301 = vsel %vm571, %v3288, 0.0
    %v3302 = vrot.slane %v3294, 4
    %v3303 = vadd.f32 %v3294, %v3302
    %v3304 = vrot.slane %v3303, 2
    %v3305 = vadd.f32 %v3303, %v3304
    %v3306 = vrot.slane %v3305, 1
    %v3307 = vadd.f32 %v3305, %v3306
    %v3308 = vrot.slane %v3295, 4
    %v3309 = vadd.f32 %v3295, %v3308
    %v3310 = vrot.slane %v3309, 2
    %v3311 = vadd.f32 %v3309, %v3310
    %v3312 = vrot.slane %v3311, 1
    %v3313 = vadd.f32 %v3311, %v3312
    %v3314 = vrot.slane %v3296, 4
    %v3315 = vadd.f32 %v3296, %v3314
    %v3316 = vrot.slane %v3315, 2
    %v3317 = vadd.f32 %v3315, %v3316
    %v3318 = vrot.slane %v3317, 1
    %v3319 = vadd.f32 %v3317, %v3318
    %v3320 = vrot.slane %v3297, 4
    %v3321 = vadd.f32 %v3297, %v3320
    %v3322 = vrot.slane %v3321, 2
    %v3323 = vadd.f32 %v3321, %v3322
    %v3324 = vrot.slane %v3323, 1
    %v3325 = vadd.f32 %v3323, %v3324
    %v3326 = vrot.slane %v3298, 4
    %v3327 = vadd.f32 %v3298, %v3326
    %v3328 = vrot.slane %v3327, 2
    %v3329 = vadd.f32 %v3327, %v3328
    %v3330 = vrot.slane %v3329, 1
    %v3331 = vadd.f32 %v3329, %v3330
    %v3332 = vrot.slane %v3299, 4
    %v3333 = vadd.f32 %v3299, %v3332
    %v3334 = vrot.slane %v3333, 2
    %v3335 = vadd.f32 %v3333, %v3334
    %v3336 = vrot.slane %v3335, 1
    %v3337 = vadd.f32 %v3335, %v3336
    %v3338 = vrot.slane %v3300, 4
    %v3339 = vadd.f32 %v3300, %v3338
    %v3340 = vrot.slane %v3339, 2
    %v3341 = vadd.f32 %v3339, %v3340
    %v3342 = vrot.slane %v3341, 1
    %v3343 = vadd.f32 %v3341, %v3342
    %v3344 = vrot.slane %v3301, 4
    %v3345 = vadd.f32 %v3301, %v3344
    %v3346 = vrot.slane %v3345, 2
    %v3347 = vadd.f32 %v3345, %v3346
    %v3348 = vrot.slane %v3347, 1
    %v3349 = vadd.f32 %v3347, %v3348
    %v3350 = vmul.f32 %v3307, 0.25
    %v3351 = vmul.f32 %v3313, 0.25
    %v3352 = vmul.f32 %v3319, 0.25
    %v3353 = vmul.f32 %v3325, 0.25
    %v3354 = vmul.f32 %v3331, 0.25
    %v3355 = vmul.f32 %v3337, 0.25
    %v3356 = vmul.f32 %v3343, 0.25
    %v3357 = vmul.f32 %v3349, 0.25
    %v3358 = vmul.f32 %v3294, %v3294
    %v3359 = vmul.f32 %v3295, %v3295
    %v3360 = vmul.f32 %v3296, %v3296
    %v3361 = vmul.f32 %v3297, %v3297
    %v3362 = vmul.f32 %v3298, %v3298
    %v3363 = vmul.f32 %v3299, %v3299
    %v3364 = vmul.f32 %v3300, %v3300
    %v3365 = vmul.f32 %v3301, %v3301
    %v3366 = vrot.slane %v3358, 4
    %v3367 = vadd.f32 %v3358, %v3366
    %v3368 = vrot.slane %v3367, 2
    %v3369 = vadd.f32 %v3367, %v3368
    %v3370 = vrot.slane %v3369, 1
    %v3371 = vadd.f32 %v3369, %v3370
    %v3372 = vrot.slane %v3359, 4
    %v3373 = vadd.f32 %v3359, %v3372
    %v3374 = vrot.slane %v3373, 2
    %v3375 = vadd.f32 %v3373, %v3374
    %v3376 = vrot.slane %v3375, 1
    %v3377 = vadd.f32 %v3375, %v3376
    %v3378 = vrot.slane %v3360, 4
    %v3379 = vadd.f32 %v3360, %v3378
    %v3380 = vrot.slane %v3379, 2
    %v3381 = vadd.f32 %v3379, %v3380
    %v3382 = vrot.slane %v3381, 1
    %v3383 = vadd.f32 %v3381, %v3382
    %v3384 = vrot.slane %v3361, 4
    %v3385 = vadd.f32 %v3361, %v3384
    %v3386 = vrot.slane %v3385, 2
    %v3387 = vadd.f32 %v3385, %v3386
    %v3388 = vrot.slane %v3387, 1
    %v3389 = vadd.f32 %v3387, %v3388
    %v3390 = vrot.slane %v3362, 4
    %v3391 = vadd.f32 %v3362, %v3390
    %v3392 = vrot.slane %v3391, 2
    %v3393 = vadd.f32 %v3391, %v3392
    %v3394 = vrot.slane %v3393, 1
    %v3395 = vadd.f32 %v3393, %v3394
    %v3396 = vrot.slane %v3363, 4
    %v3397 = vadd.f32 %v3363, %v3396
    %v3398 = vrot.slane %v3397, 2
    %v3399 = vadd.f32 %v3397, %v3398
    %v3400 = vrot.slane %v3399, 1
    %v3401 = vadd.f32 %v3399, %v3400
    %v3402 = vrot.slane %v3364, 4
    %v3403 = vadd.f32 %v3364, %v3402
    %v3404 = vrot.slane %v3403, 2
    %v3405 = vadd.f32 %v3403, %v3404
    %v3406 = vrot.slane %v3405, 1
    %v3407 = vadd.f32 %v3405, %v3406
    %v3408 = vrot.slane %v3365, 4
    %v3409 = vadd.f32 %v3365, %v3408
    %v3410 = vrot.slane %v3409, 2
    %v3411 = vadd.f32 %v3409, %v3410
    %v3412 = vrot.slane %v3411, 1
    %v3413 = vadd.f32 %v3411, %v3412
    %v3414 = vmul.f32 %v3371, 0.25
    %v3415 = vmul.f32 %v3377, 0.25
    %v3416 = vmul.f32 %v3383, 0.25
    %v3417 = vmul.f32 %v3389, 0.25
    %v3418 = vmul.f32 %v3395, 0.25
    %v3419 = vmul.f32 %v3401, 0.25
    %v3420 = vmul.f32 %v3407, 0.25
    %v3421 = vmul.f32 %v3413, 0.25
    %v3422 = vmul.f32 %v3350, %v3350
    %v3423 = vmul.f32 %v3351, %v3351
    %v3424 = vmul.f32 %v3352, %v3352
    %v3425 = vmul.f32 %v3353, %v3353
    %v3426 = vmul.f32 %v3354, %v3354
    %v3427 = vmul.f32 %v3355, %v3355
    %v3428 = vmul.f32 %v3356, %v3356
    %v3429 = vmul.f32 %v3357, %v3357
    %v3430 = vsub.f32 %v3414, %v3422
    %v3431 = vsub.f32 %v3415, %v3423
    %v3432 = vsub.f32 %v3416, %v3424
    %v3433 = vsub.f32 %v3417, %v3425
    %v3434 = vsub.f32 %v3418, %v3426
    %v3435 = vsub.f32 %v3419, %v3427
    %v3436 = vsub.f32 %v3420, %v3428
    %v3437 = vsub.f32 %v3421, %v3429
    %v3438 = vadd.f32 %v3430, 0.8
    %v3439 = vadd.f32 %v3431, 0.8
    %v3440 = vadd.f32 %v3432, 0.8
    %v3441 = vadd.f32 %v3433, 0.8
    %v3442 = vadd.f32 %v3434, 0.8
    %v3443 = vadd.f32 %v3435, 0.8
    %v3444 = vadd.f32 %v3436, 0.8
    %v3445 = vadd.f32 %v3437, 0.8
    %v3446 = vrsqrt.pop %v3438
    %v3447 = vrsqrt.pop %v3439
    %v3448 = vrsqrt.pop %v3440
    %v3449 = vrsqrt.pop %v3441
    %v3450 = vrsqrt.pop %v3442
    %v3451 = vrsqrt.pop %v3443
    %v3452 = vrsqrt.pop %v3444
    %v3453 = vrsqrt.pop %v3445
    %v3462 = vcombine.low %v3446, %v3447
    %v3463 = vcombine.low %v3448, %v3449
    %v3464 = vcombine.low %v3450, %v3451
    %v3465 = vcombine.low %v3452, %v3453
    %v3467 = vunpack.c.l.s4 1966171168
    %v3468 = vunpack.c.0.s8 %v3467
    %v3469 = vlaneseq
    %v3470 = vshrl.u32 %v3469, 7
    %v3471 = vsub.s32 %v3468, %v3470
    %v3472 = vrot.slane %v3462, %v3471
    %v3474 = vunpack.c.l.s4 1966171168
    %v3475 = vunpack.c.0.s8 %v3474
    %v3476 = vlaneseq
    %v3477 = vshrl.u32 %v3476, 7
    %v3478 = vsub.s32 %v3475, %v3477
    %v3479 = vrot.slane %v3463, %v3478
    %v3481 = vunpack.c.l.s4 1966171168
    %v3482 = vunpack.c.0.s8 %v3481
    %v3483 = vlaneseq
    %v3484 = vshrl.u32 %v3483, 7
    %v3485 = vsub.s32 %v3482, %v3484
    %v3486 = vrot.slane %v3464, %v3485
    %v3488 = vunpack.c.l.s4 1966171168
    %v3489 = vunpack.c.0.s8 %v3488
    %v3490 = vlaneseq
    %v3491 = vshrl.u32 %v3490, 7
    %v3492 = vsub.s32 %v3489, %v3491
    %v3493 = vrot.slane %v3465, %v3492
    %v3494 = vcombine.low %v3472, %v3479
    %v3495 = vcombine.low %v3486, %v3493
    %v3497 = vunpack.c.l.s4 1966171168
    %v3498 = vunpack.c.0.s8 %v3497
    %v3499 = vlaneseq
    %v3500 = vshrl.u32 %v3499, 7
    %v3501 = vsub.s32 %v3498, %v3500
    %v3502 = vrot.slane %v3494, %v3501
    %v3504 = vunpack.c.l.s4 1966171168
    %v3505 = vunpack.c.0.s8 %v3504
    %v3506 = vlaneseq
    %v3507 = vshrl.u32 %v3506, 7
    %v3508 = vsub.s32 %v3505, %v3507
    %v3509 = vrot.slane %v3495, %v3508
    %v3510 = vcombine.low %v3502, %v3509
    %v3512 = vmul.f32 %v3292, %v3510
    %v3514 = vlaneseq
    %v3515 = vshrl.u32 %v3514, 7
    %v3516 = vsub.s32 0, %v3515
    %v3517 = vrot.slane %v3512, %v3516
    %v3518 = vlaneseq
    %v3519 = vshrl.u32 %v3518, 7
    %v3520 = vsub.s32 1, %v3519
    %v3521 = vrot.slane %v3512, %v3520
    %v3522 = vlaneseq
    %v3523 = vshrl.u32 %v3522, 7
    %v3524 = vsub.s32 2, %v3523
    %v3525 = vrot.slane %v3512, %v3524
    %v3526 = vlaneseq
    %v3527 = vshrl.u32 %v3526, 7
    %v3528 = vsub.s32 3, %v3527
    %v3529 = vrot.slane %v3512, %v3528
    %v3530 = vlaneseq
    %v3531 = vshrl.u32 %v3530, 7
    %v3532 = vsub.s32 4, %v3531
    %v3533 = vrot.slane %v3512, %v3532
    %v3534 = vlaneseq
    %v3535 = vshrl.u32 %v3534, 7
    %v3536 = vsub.s32 5, %v3535
    %v3537 = vrot.slane %v3512, %v3536
    %v3538 = vlaneseq
    %v3539 = vshrl.u32 %v3538, 7
    %v3540 = vsub.s32 6, %v3539
    %v3541 = vrot.slane %v3512, %v3540
    %v3542 = vlaneseq
    %v3543 = vshrl.u32 %v3542, 7
    %v3544 = vsub.s32 7, %v3543
    %v3545 = vrot.slane %v3512, %v3544
    %v3554 = vmul.f32 %v3350, %v3517
    %v3555 = vmul.f32 %v3351, %v3521
    %v3556 = vmul.f32 %v3352, %v3525
    %v3557 = vmul.f32 %v3353, %v3529
    %v3558 = vmul.f32 %v3354, %v3533
    %v3559 = vmul.f32 %v3355, %v3537
    %v3560 = vmul.f32 %v3356, %v3541
    %v3561 = vmul.f32 %v3357, %v3545
    %v3570 = vcombine.low %v3554, %v3555
    %v3571 = vcombine.low %v3556, %v3557
    %v3572 = vcombine.low %v3558, %v3559
    %v3573 = vcombine.low %v3560, %v3561
    %v3575 = vunpack.c.l.s4 1966171168
    %v3576 = vunpack.c.0.s8 %v3575
    %v3577 = vlaneseq
    %v3578 = vshrl.u32 %v3577, 7
    %v3579 = vsub.s32 %v3576, %v3578
    %v3580 = vrot.slane %v3570, %v3579
    %v3582 = vunpack.c.l.s4 1966171168
    %v3583 = vunpack.c.0.s8 %v3582
    %v3584 = vlaneseq
    %v3585 = vshrl.u32 %v3584, 7
    %v3586 = vsub.s32 %v3583, %v3585
    %v3587 = vrot.slane %v3571, %v3586
    %v3589 = vunpack.c.l.s4 1966171168
    %v3590 = vunpack.c.0.s8 %v3589
    %v3591 = vlaneseq
    %v3592 = vshrl.u32 %v3591, 7
    %v3593 = vsub.s32 %v3590, %v3592
    %v3594 = vrot.slane %v3572, %v3593
    %v3596 = vunpack.c.l.s4 1966171168
    %v3597 = vunpack.c.0.s8 %v3596
    %v3598 = vlaneseq
    %v3599 = vshrl.u32 %v3598, 7
    %v3600 = vsub.s32 %v3597, %v3599
    %v3601 = vrot.slane %v3573, %v3600
    %v3602 = vcombine.low %v3580, %v3587
    %v3603 = vcombine.low %v3594, %v3601
    %v3605 = vunpack.c.l.s4 1966171168
    %v3606 = vunpack.c.0.s8 %v3605
    %v3607 = vlaneseq
    %v3608 = vshrl.u32 %v3607, 7
    %v3609 = vsub.s32 %v3606, %v3608
    %v3610 = vrot.slane %v3602, %v3609
    %v3612 = vunpack.c.l.s4 1966171168
    %v3613 = vunpack.c.0.s8 %v3612
    %v3614 = vlaneseq
    %v3615 = vshrl.u32 %v3614, 7
    %v3616 = vsub.s32 %v3613, %v3615
    %v3617 = vrot.slane %v3603, %v3616
    %v3618 = vcombine.low %v3610, %v3617
    %v3620 = vsub.f32 %v3293, %v3618
    %v3621 = vmul.f32 %v3040, %v3517
    %v3622 = vmul.f32 %v3042, %v3521
    %v3623 = vmul.f32 %v3122, %v3525
    %v3624 = vmul.f32 %v3124, %v3529
    %v3625 = vmul.f32 %v3204, %v3533
    %v3626 = vmul.f32 %v3206, %v3537
    %v3627 = vmul.f32 %v3286, %v3541
    %v3628 = vmul.f32 %v3288, %v3545
    %v3630 = vlaneseq
    %v3631 = vshrl.u32 %v3630, 7
    %v3632 = vsub.s32 0, %v3631
    %v3633 = vrot.slane %v3620, %v3632
    %v3634 = vlaneseq
    %v3635 = vshrl.u32 %v3634, 7
    %v3636 = vsub.s32 1, %v3635
    %v3637 = vrot.slane %v3620, %v3636
    %v3638 = vlaneseq
    %v3639 = vshrl.u32 %v3638, 7
    %v3640 = vsub.s32 2, %v3639
    %v3641 = vrot.slane %v3620, %v3640
    %v3642 = vlaneseq
    %v3643 = vshrl.u32 %v3642, 7
    %v3644 = vsub.s32 3, %v3643
    %v3645 = vrot.slane %v3620, %v3644
    %v3646 = vlaneseq
    %v3647 = vshrl.u32 %v3646, 7
    %v3648 = vsub.s32 4, %v3647
    %v3649 = vrot.slane %v3620, %v3648
    %v3650 = vlaneseq
    %v3651 = vshrl.u32 %v3650, 7
    %v3652 = vsub.s32 5, %v3651
    %v3653 = vrot.slane %v3620, %v3652
    %v3654 = vlaneseq
    %v3655 = vshrl.u32 %v3654, 7
    %v3656 = vsub.s32 6, %v3655
    %v3657 = vrot.slane %v3620, %v3656
    %v3658 = vlaneseq
    %v3659 = vshrl.u32 %v3658, 7
    %v3660 = vsub.s32 7, %v3659
    %v3661 = vrot.slane %v3620, %v3660
    %v3670 = vadd.f32 %v3621, %v3633
    %v3671 = vadd.f32 %v3622, %v3637
    %v3672 = vadd.f32 %v3623, %v3641
    %v3673 = vadd.f32 %v3624, %v3645
    %v3674 = vadd.f32 %v3625, %v3649
    %v3675 = vadd.f32 %v3626, %v3653
    %v3676 = vadd.f32 %v3627, %v3657
    %v3677 = vadd.f32 %v3628, %v3661
    %vm3678 = vcmp.gt.f32.partialorder %v3670, 0.0
    %vm3679 = vcmp.gt.f32.partialorder %v3671, 0.0
    %vm3680 = vcmp.gt.f32.partialorder %v3672, 0.0
    %vm3681 = vcmp.gt.f32.partialorder %v3673, 0.0
    %vm3682 = vcmp.gt.f32.partialorder %v3674, 0.0
    %vm3683 = vcmp.gt.f32.partialorder %v3675, 0.0
    %vm3684 = vcmp.gt.f32.partialorder %v3676, 0.0
    %vm3685 = vcmp.gt.f32.partialorder %v3677, 0.0
    %v3686 = vmul.f32 %v3670, 0.2
    %v3687 = vmul.f32 %v3671, 0.2
    %v3688 = vmul.f32 %v3672, 0.2
    %v3689 = vmul.f32 %v3673, 0.2
    %v3690 = vmul.f32 %v3674, 0.2
    %v3691 = vmul.f32 %v3675, 0.2
    %v3692 = vmul.f32 %v3676, 0.2
    %v3693 = vmul.f32 %v3677, 0.2
    %v3694 = vsel %vm3678, %v3670, %v3686
    %v3695 = vsel %vm3679, %v3671, %v3687
    %v3696 = vsel %vm3680, %v3672, %v3688
    %v3697 = vsel %vm3681, %v3673, %v3689
    %v3698 = vsel %vm3682, %v3674, %v3690
    %v3699 = vsel %vm3683, %v3675, %v3691
    %v3700 = vsel %vm3684, %v3676, %v3692
    %v3701 = vsel %vm3685, %v3677, %v3693
    %v3702 = vpack.c.bf16 %v3694, %v3694
    %v3703 = vpack.c.bf16 %v3695, %v3695
    %v3704 = vpack.c.bf16 %v3696, %v3696
    %v3705 = vpack.c.bf16 %v3697, %v3697
    %v3706 = vpack.c.bf16 %v3698, %v3698
    %v3707 = vpack.c.bf16 %v3699, %v3699
    %v3708 = vpack.c.bf16 %v3700, %v3700
    %v3709 = vpack.c.bf16 %v3701, %v3701
    %v3710 = vld [vmem:[#allocation18] sm:$0xff]
    %v3711 = vld [vmem:[#allocation18 + $0x8] sm:$0xff]
    %v3712 = vld [vmem:[#allocation18 + $0x10] sm:$0xff]
    %v3713 = vld [vmem:[#allocation18 + $0x18] sm:$0xff]
    %v3714 = vld [vmem:[#allocation18 + $0x20] sm:$0xff]
    %v3715 = vld [vmem:[#allocation18 + $0x28] sm:$0xff]
    %v3716 = vld [vmem:[#allocation18 + $0x30] sm:$0xff]
    %v3717 = vld [vmem:[#allocation18 + $0x38] sm:$0xff]
    %v3718 = vld [vmem:[#allocation18 + $0x40] sm:$0xff]
    %v3719 = vld [vmem:[#allocation18 + $0x48] sm:$0xff]
    %v3720 = vld [vmem:[#allocation18 + $0x50] sm:$0xff]
    %v3721 = vld [vmem:[#allocation18 + $0x58] sm:$0xff]
    %v3722 = vld [vmem:[#allocation18 + $0x60] sm:$0xff]
    %v3723 = vld [vmem:[#allocation18 + $0x68] sm:$0xff]
    %v3724 = vld [vmem:[#allocation18 + $0x70] sm:$0xff]
    %v3725 = vld [vmem:[#allocation18 + $0x78] sm:$0xff]
    %v3726 = vld [vmem:[#allocation18 + $0x80] sm:$0xff]
    %v3727 = vld [vmem:[#allocation18 + $0x88] sm:$0xff]
    %v3728 = vld [vmem:[#allocation18 + $0x90] sm:$0xff]
    %v3729 = vld [vmem:[#allocation18 + $0x98] sm:$0xff]
    %v3730 = vld [vmem:[#allocation18 + $0xa0] sm:$0xff]
    %v3731 = vld [vmem:[#allocation18 + $0xa8] sm:$0xff]
    %v3732 = vld [vmem:[#allocation18 + $0xb0] sm:$0xff]
    %v3733 = vld [vmem:[#allocation18 + $0xb8] sm:$0xff]
    %v3734 = vld [vmem:[#allocation18 + $0xc0] sm:$0xff]
    %v3735 = vld [vmem:[#allocation18 + $0xc8] sm:$0xff]
    %v3736 = vld [vmem:[#allocation18 + $0xd0] sm:$0xff]
    %v3737 = vld [vmem:[#allocation18 + $0xd8] sm:$0xff]
    %v3738 = vld [vmem:[#allocation18 + $0xe0] sm:$0xff]
    %v3739 = vld [vmem:[#allocation18 + $0xe8] sm:$0xff]
    %v3740 = vld [vmem:[#allocation18 + $0xf0] sm:$0xff]
    %v3741 = vld [vmem:[#allocation18 + $0xf8] sm:$0xff]
    %v3742 = vld [vmem:[#allocation18 + $0x100] sm:$0xff]
    %v3743 = vld [vmem:[#allocation18 + $0x108] sm:$0xff]
    %v3744 = vld [vmem:[#allocation18 + $0x110] sm:$0xff]
    %v3745 = vld [vmem:[#allocation18 + $0x118] sm:$0xff]
    %v3746 = vld [vmem:[#allocation18 + $0x120] sm:$0xff]
    %v3747 = vld [vmem:[#allocation18 + $0x128] sm:$0xff]
    %v3748 = vld [vmem:[#allocation18 + $0x130] sm:$0xff]
    %v3749 = vld [vmem:[#allocation18 + $0x138] sm:$0xff]
    %v3750 = vld [vmem:[#allocation18 + $0x140] sm:$0xff]
    %v3751 = vld [vmem:[#allocation18 + $0x148] sm:$0xff]
    %v3752 = vld [vmem:[#allocation18 + $0x150] sm:$0xff]
    %v3753 = vld [vmem:[#allocation18 + $0x158] sm:$0xff]
    %v3754 = vld [vmem:[#allocation18 + $0x160] sm:$0xff]
    %v3755 = vld [vmem:[#allocation18 + $0x168] sm:$0xff]
    %v3756 = vld [vmem:[#allocation18 + $0x170] sm:$0xff]
    %v3757 = vld [vmem:[#allocation18 + $0x178] sm:$0xff]
    %v3758 = vld [vmem:[#allocation18 + $0x180] sm:$0xff]
    %v3759 = vld [vmem:[#allocation18 + $0x188] sm:$0xff]
    %v3760 = vld [vmem:[#allocation18 + $0x190] sm:$0xff]
    %v3761 = vld [vmem:[#allocation18 + $0x198] sm:$0xff]
    %v3762 = vld [vmem:[#allocation18 + $0x1a0] sm:$0xff]
    %v3763 = vld [vmem:[#allocation18 + $0x1a8] sm:$0xff]
    %v3764 = vld [vmem:[#allocation18 + $0x1b0] sm:$0xff]
    %v3765 = vld [vmem:[#allocation18 + $0x1b8] sm:$0xff]
    %v3766 = vld [vmem:[#allocation18 + $0x1c0] sm:$0xff]
    %v3767 = vld [vmem:[#allocation18 + $0x1c8] sm:$0xff]
    %v3768 = vld [vmem:[#allocation18 + $0x1d0] sm:$0xff]
    %v3769 = vld [vmem:[#allocation18 + $0x1d8] sm:$0xff]
    %v3770 = vld [vmem:[#allocation18 + $0x1e0] sm:$0xff]
    %v3771 = vld [vmem:[#allocation18 + $0x1e8] sm:$0xff]
    %v3772 = vld [vmem:[#allocation18 + $0x1f0] sm:$0xff]
    %v3773 = vld [vmem:[#allocation18 + $0x1f8] sm:$0xff]
    %v3774 = vld [vmem:[#allocation18 + $0x200] sm:$0xff]
    %v3775 = vld [vmem:[#allocation18 + $0x208] sm:$0xff]
    %v3776 = vld [vmem:[#allocation18 + $0x210] sm:$0xff]
    %v3777 = vld [vmem:[#allocation18 + $0x218] sm:$0xff]
    %v3778 = vld [vmem:[#allocation18 + $0x220] sm:$0xff]
    %v3779 = vld [vmem:[#allocation18 + $0x228] sm:$0xff]
    %v3780 = vld [vmem:[#allocation18 + $0x230] sm:$0xff]
    %v3781 = vld [vmem:[#allocation18 + $0x238] sm:$0xff]
    %v3782 = vld [vmem:[#allocation18 + $0x240] sm:$0xff]
    %v3783 = vld [vmem:[#allocation18 + $0x248] sm:$0xff]
    %v3784 = vld [vmem:[#allocation18 + $0x250] sm:$0xff]
    %v3785 = vld [vmem:[#allocation18 + $0x258] sm:$0xff]
    %v3786 = vld [vmem:[#allocation18 + $0x260] sm:$0xff]
    %v3787 = vld [vmem:[#allocation18 + $0x268] sm:$0xff]
    %v3788 = vld [vmem:[#allocation18 + $0x270] sm:$0xff]
    %v3789 = vld [vmem:[#allocation18 + $0x278] sm:$0xff]
    %v3790 = vld [vmem:[#allocation18 + $0x280] sm:$0xff]
    %v3791 = vld [vmem:[#allocation18 + $0x288] sm:$0xff]
    %v3792 = vld [vmem:[#allocation18 + $0x290] sm:$0xff]
    %v3793 = vld [vmem:[#allocation18 + $0x298] sm:$0xff]
    %v3794 = vld [vmem:[#allocation18 + $0x2a0] sm:$0xff]
    %v3795 = vld [vmem:[#allocation18 + $0x2a8] sm:$0xff]
    %v3796 = vld [vmem:[#allocation18 + $0x2b0] sm:$0xff]
    %v3797 = vld [vmem:[#allocation18 + $0x2b8] sm:$0xff]
    %v3798 = vld [vmem:[#allocation18 + $0x2c0] sm:$0xff]
    %v3799 = vld [vmem:[#allocation18 + $0x2c8] sm:$0xff]
    %v3800 = vld [vmem:[#allocation18 + $0x2d0] sm:$0xff]
    %v3801 = vld [vmem:[#allocation18 + $0x2d8] sm:$0xff]
    %v3802 = vld [vmem:[#allocation18 + $0x2e0] sm:$0xff]
    %v3803 = vld [vmem:[#allocation18 + $0x2e8] sm:$0xff]
    %v3804 = vld [vmem:[#allocation18 + $0x2f0] sm:$0xff]
    %v3805 = vld [vmem:[#allocation18 + $0x2f8] sm:$0xff]
    %v3806 = vld [vmem:[#allocation18 + $0x300] sm:$0xff]
    %v3807 = vld [vmem:[#allocation18 + $0x308] sm:$0xff]
    %v3808 = vld [vmem:[#allocation18 + $0x310] sm:$0xff]
    %v3809 = vld [vmem:[#allocation18 + $0x318] sm:$0xff]
    %v3810 = vld [vmem:[#allocation18 + $0x320] sm:$0xff]
    %v3811 = vld [vmem:[#allocation18 + $0x328] sm:$0xff]
    %v3812 = vld [vmem:[#allocation18 + $0x330] sm:$0xff]
    %v3813 = vld [vmem:[#allocation18 + $0x338] sm:$0xff]
    %v3814 = vld [vmem:[#allocation18 + $0x340] sm:$0xff]
    %v3815 = vld [vmem:[#allocation18 + $0x348] sm:$0xff]
    %v3816 = vld [vmem:[#allocation18 + $0x350] sm:$0xff]
    %v3817 = vld [vmem:[#allocation18 + $0x358] sm:$0xff]
    %v3818 = vld [vmem:[#allocation18 + $0x360] sm:$0xff]
    %v3819 = vld [vmem:[#allocation18 + $0x368] sm:$0xff]
    %v3820 = vld [vmem:[#allocation18 + $0x370] sm:$0xff]
    %v3821 = vld [vmem:[#allocation18 + $0x378] sm:$0xff]
    %v3822 = vld [vmem:[#allocation18 + $0x380] sm:$0xff]
    %v3823 = vld [vmem:[#allocation18 + $0x388] sm:$0xff]
    %v3824 = vld [vmem:[#allocation18 + $0x390] sm:$0xff]
    %v3825 = vld [vmem:[#allocation18 + $0x398] sm:$0xff]
    %v3826 = vld [vmem:[#allocation18 + $0x3a0] sm:$0xff]
    %v3827 = vld [vmem:[#allocation18 + $0x3a8] sm:$0xff]
    %v3828 = vld [vmem:[#allocation18 + $0x3b0] sm:$0xff]
    %v3829 = vld [vmem:[#allocation18 + $0x3b8] sm:$0xff]
    %v3830 = vld [vmem:[#allocation18 + $0x3c0] sm:$0xff]
    %v3831 = vld [vmem:[#allocation18 + $0x3c8] sm:$0xff]
    %v3832 = vld [vmem:[#allocation18 + $0x3d0] sm:$0xff]
    %v3833 = vld [vmem:[#allocation18 + $0x3d8] sm:$0xff]
    %v3834 = vld [vmem:[#allocation18 + $0x3e0] sm:$0xff]
    %v3835 = vld [vmem:[#allocation18 + $0x3e8] sm:$0xff]
    %v3836 = vld [vmem:[#allocation18 + $0x3f0] sm:$0xff]
    %v3837 = vld [vmem:[#allocation18 + $0x3f8] sm:$0xff]
    %v3838 = vld [vmem:[#allocation19] sm:$0x3]
    %v3840 = vlaneseq
    %v3841 = vshrl.u32 %v3840, 7
    %v3842 = vsub.s32 0, %v3841
    %v3843 = vrot.slane %v3838, %v3842
    %v3844 = vlaneseq
    %v3845 = vshrl.u32 %v3844, 7
    %v3846 = vsub.s32 1, %v3845
    %v3847 = vrot.slane %v3838, %v3846
    %v3978 = vunpack.c.l.b16 %v3710
    %v3979 = vunpack.c.h.b16 %v3710
    %v3980 = vunpack.c.l.b16 %v3711
    %v3981 = vunpack.c.h.b16 %v3711
    %v3982 = vunpack.c.l.b16 %v3712
    %v3983 = vunpack.c.h.b16 %v3712
    %v3984 = vunpack.c.l.b16 %v3713
    %v3985 = vunpack.c.h.b16 %v3713
    %v3986 = vunpack.c.l.b16 %v3714
    %v3987 = vunpack.c.h.b16 %v3714
    %v3988 = vunpack.c.l.b16 %v3715
    %v3989 = vunpack.c.h.b16 %v3715
    %v3990 = vunpack.c.l.b16 %v3716
    %v3991 = vunpack.c.h.b16 %v3716
    %v3992 = vunpack.c.l.b16 %v3717
    %v3993 = vunpack.c.h.b16 %v3717
    %v3994 = vunpack.c.l.b16 %v3718
    %v3995 = vunpack.c.h.b16 %v3718
    %v3996 = vunpack.c.l.b16 %v3719
    %v3997 = vunpack.c.h.b16 %v3719
    %v3998 = vunpack.c.l.b16 %v3720
    %v3999 = vunpack.c.h.b16 %v3720
    %v4000 = vunpack.c.l.b16 %v3721
    %v4001 = vunpack.c.h.b16 %v3721
    %v4002 = vunpack.c.l.b16 %v3722
    %v4003 = vunpack.c.h.b16 %v3722
    %v4004 = vunpack.c.l.b16 %v3723
    %v4005 = vunpack.c.h.b16 %v3723
    %v4006 = vunpack.c.l.b16 %v3724
    %v4007 = vunpack.c.h.b16 %v3724
    %v4008 = vunpack.c.l.b16 %v3725
    %v4009 = vunpack.c.h.b16 %v3725
    %v4010 = vunpack.c.l.b16 %v3726
    %v4011 = vunpack.c.h.b16 %v3726
    %v4012 = vunpack.c.l.b16 %v3727
    %v4013 = vunpack.c.h.b16 %v3727
    %v4014 = vunpack.c.l.b16 %v3728
    %v4015 = vunpack.c.h.b16 %v3728
    %v4016 = vunpack.c.l.b16 %v3729
    %v4017 = vunpack.c.h.b16 %v3729
    %v4018 = vunpack.c.l.b16 %v3730
    %v4019 = vunpack.c.h.b16 %v3730
    %v4020 = vunpack.c.l.b16 %v3731
    %v4021 = vunpack.c.h.b16 %v3731
    %v4022 = vunpack.c.l.b16 %v3732
    %v4023 = vunpack.c.h.b16 %v3732
    %v4024 = vunpack.c.l.b16 %v3733
    %v4025 = vunpack.c.h.b16 %v3733
    %v4026 = vunpack.c.l.b16 %v3734
    %v4027 = vunpack.c.h.b16 %v3734
    %v4028 = vunpack.c.l.b16 %v3735
    %v4029 = vunpack.c.h.b16 %v3735
    %v4030 = vunpack.c.l.b16 %v3736
    %v4031 = vunpack.c.h.b16 %v3736
    %v4032 = vunpack.c.l.b16 %v3737
    %v4033 = vunpack.c.h.b16 %v3737
    %v4034 = vunpack.c.l.b16 %v3738
    %v4035 = vunpack.c.h.b16 %v3738
    %v4036 = vunpack.c.l.b16 %v3739
    %v4037 = vunpack.c.h.b16 %v3739
    %v4038 = vunpack.c.l.b16 %v3740
    %v4039 = vunpack.c.h.b16 %v3740
    %v4040 = vunpack.c.l.b16 %v3741
    %v4041 = vunpack.c.h.b16 %v3741
    %v4042 = vunpack.c.l.b16 %v3742
    %v4043 = vunpack.c.h.b16 %v3742
    %v4044 = vunpack.c.l.b16 %v3743
    %v4045 = vunpack.c.h.b16 %v3743
    %v4046 = vunpack.c.l.b16 %v3744
    %v4047 = vunpack.c.h.b16 %v3744
    %v4048 = vunpack.c.l.b16 %v3745
    %v4049 = vunpack.c.h.b16 %v3745
    %v4050 = vunpack.c.l.b16 %v3746
    %v4051 = vunpack.c.h.b16 %v3746
    %v4052 = vunpack.c.l.b16 %v3747
    %v4053 = vunpack.c.h.b16 %v3747
    %v4054 = vunpack.c.l.b16 %v3748
    %v4055 = vunpack.c.h.b16 %v3748
    %v4056 = vunpack.c.l.b16 %v3749
    %v4057 = vunpack.c.h.b16 %v3749
    %v4058 = vunpack.c.l.b16 %v3750
    %v4059 = vunpack.c.h.b16 %v3750
    %v4060 = vunpack.c.l.b16 %v3751
    %v4061 = vunpack.c.h.b16 %v3751
    %v4062 = vunpack.c.l.b16 %v3752
    %v4063 = vunpack.c.h.b16 %v3752
    %v4064 = vunpack.c.l.b16 %v3753
    %v4065 = vunpack.c.h.b16 %v3753
    %v4066 = vunpack.c.l.b16 %v3754
    %v4067 = vunpack.c.h.b16 %v3754
    %v4068 = vunpack.c.l.b16 %v3755
    %v4069 = vunpack.c.h.b16 %v3755
    %v4070 = vunpack.c.l.b16 %v3756
    %v4071 = vunpack.c.h.b16 %v3756
    %v4072 = vunpack.c.l.b16 %v3757
    %v4073 = vunpack.c.h.b16 %v3757
    %v4074 = vunpack.c.l.b16 %v3758
    %v4075 = vunpack.c.h.b16 %v3758
    %v4076 = vunpack.c.l.b16 %v3759
    %v4077 = vunpack.c.h.b16 %v3759
    %v4078 = vunpack.c.l.b16 %v3760
    %v4079 = vunpack.c.h.b16 %v3760
    %v4080 = vunpack.c.l.b16 %v3761
    %v4081 = vunpack.c.h.b16 %v3761
    %v4082 = vunpack.c.l.b16 %v3762
    %v4083 = vunpack.c.h.b16 %v3762
    %v4084 = vunpack.c.l.b16 %v3763
    %v4085 = vunpack.c.h.b16 %v3763
    %v4086 = vunpack.c.l.b16 %v3764
    %v4087 = vunpack.c.h.b16 %v3764
    %v4088 = vunpack.c.l.b16 %v3765
    %v4089 = vunpack.c.h.b16 %v3765
    %v4090 = vunpack.c.l.b16 %v3766
    %v4091 = vunpack.c.h.b16 %v3766
    %v4092 = vunpack.c.l.b16 %v3767
    %v4093 = vunpack.c.h.b16 %v3767
    %v4094 = vunpack.c.l.b16 %v3768
    %v4095 = vunpack.c.h.b16 %v3768
    %v4096 = vunpack.c.l.b16 %v3769
    %v4097 = vunpack.c.h.b16 %v3769
    %v4098 = vunpack.c.l.b16 %v3770
    %v4099 = vunpack.c.h.b16 %v3770
    %v4100 = vunpack.c.l.b16 %v3771
    %v4101 = vunpack.c.h.b16 %v3771
    %v4102 = vunpack.c.l.b16 %v3772
    %v4103 = vunpack.c.h.b16 %v3772
    %v4104 = vunpack.c.l.b16 %v3773
    %v4105 = vunpack.c.h.b16 %v3773
    %v4106 = vunpack.c.l.b16 %v3774
    %v4107 = vunpack.c.h.b16 %v3774
    %v4108 = vunpack.c.l.b16 %v3775
    %v4109 = vunpack.c.h.b16 %v3775
    %v4110 = vunpack.c.l.b16 %v3776
    %v4111 = vunpack.c.h.b16 %v3776
    %v4112 = vunpack.c.l.b16 %v3777
    %v4113 = vunpack.c.h.b16 %v3777
    %v4114 = vunpack.c.l.b16 %v3778
    %v4115 = vunpack.c.h.b16 %v3778
    %v4116 = vunpack.c.l.b16 %v3779
    %v4117 = vunpack.c.h.b16 %v3779
    %v4118 = vunpack.c.l.b16 %v3780
    %v4119 = vunpack.c.h.b16 %v3780
    %v4120 = vunpack.c.l.b16 %v3781
    %v4121 = vunpack.c.h.b16 %v3781
    %v4122 = vunpack.c.l.b16 %v3782
    %v4123 = vunpack.c.h.b16 %v3782
    %v4124 = vunpack.c.l.b16 %v3783
    %v4125 = vunpack.c.h.b16 %v3783
    %v4126 = vunpack.c.l.b16 %v3784
    %v4127 = vunpack.c.h.b16 %v3784
    %v4128 = vunpack.c.l.b16 %v3785
    %v4129 = vunpack.c.h.b16 %v3785
    %v4130 = vunpack.c.l.b16 %v3786
    %v4131 = vunpack.c.h.b16 %v3786
    %v4132 = vunpack.c.l.b16 %v3787
    %v4133 = vunpack.c.h.b16 %v3787
    %v4134 = vunpack.c.l.b16 %v3788
    %v4135 = vunpack.c.h.b16 %v3788
    %v4136 = vunpack.c.l.b16 %v3789
    %v4137 = vunpack.c.h.b16 %v3789
    %v4138 = vunpack.c.l.b16 %v3790
    %v4139 = vunpack.c.h.b16 %v3790
    %v4140 = vunpack.c.l.b16 %v3791
    %v4141 = vunpack.c.h.b16 %v3791
    %v4142 = vunpack.c.l.b16 %v3792
    %v4143 = vunpack.c.h.b16 %v3792
    %v4144 = vunpack.c.l.b16 %v3793
    %v4145 = vunpack.c.h.b16 %v3793
    %v4146 = vunpack.c.l.b16 %v3794
    %v4147 = vunpack.c.h.b16 %v3794
    %v4148 = vunpack.c.l.b16 %v3795
    %v4149 = vunpack.c.h.b16 %v3795
    %v4150 = vunpack.c.l.b16 %v3796
    %v4151 = vunpack.c.h.b16 %v3796
    %v4152 = vunpack.c.l.b16 %v3797
    %v4153 = vunpack.c.h.b16 %v3797
    %v4154 = vunpack.c.l.b16 %v3798
    %v4155 = vunpack.c.h.b16 %v3798
    %v4156 = vunpack.c.l.b16 %v3799
    %v4157 = vunpack.c.h.b16 %v3799
    %v4158 = vunpack.c.l.b16 %v3800
    %v4159 = vunpack.c.h.b16 %v3800
    %v4160 = vunpack.c.l.b16 %v3801
    %v4161 = vunpack.c.h.b16 %v3801
    %v4162 = vunpack.c.l.b16 %v3802
    %v4163 = vunpack.c.h.b16 %v3802
    %v4164 = vunpack.c.l.b16 %v3803
    %v4165 = vunpack.c.h.b16 %v3803
    %v4166 = vunpack.c.l.b16 %v3804
    %v4167 = vunpack.c.h.b16 %v3804
    %v4168 = vunpack.c.l.b16 %v3805
    %v4169 = vunpack.c.h.b16 %v3805
    %v4170 = vunpack.c.l.b16 %v3806
    %v4171 = vunpack.c.h.b16 %v3806
    %v4172 = vunpack.c.l.b16 %v3807
    %v4173 = vunpack.c.h.b16 %v3807
    %v4174 = vunpack.c.l.b16 %v3808
    %v4175 = vunpack.c.h.b16 %v3808
    %v4176 = vunpack.c.l.b16 %v3809
    %v4177 = vunpack.c.h.b16 %v3809
    %v4178 = vunpack.c.l.b16 %v3810
    %v4179 = vunpack.c.h.b16 %v3810
    %v4180 = vunpack.c.l.b16 %v3811
    %v4181 = vunpack.c.h.b16 %v3811
    %v4182 = vunpack.c.l.b16 %v3812
    %v4183 = vunpack.c.h.b16 %v3812
    %v4184 = vunpack.c.l.b16 %v3813
    %v4185 = vunpack.c.h.b16 %v3813
    %v4186 = vunpack.c.l.b16 %v3814
    %v4187 = vunpack.c.h.b16 %v3814
    %v4188 = vunpack.c.l.b16 %v3815
    %v4189 = vunpack.c.h.b16 %v3815
    %v4190 = vunpack.c.l.b16 %v3816
    %v4191 = vunpack.c.h.b16 %v3816
    %v4192 = vunpack.c.l.b16 %v3817
    %v4193 = vunpack.c.h.b16 %v3817
    %v4194 = vunpack.c.l.b16 %v3818
    %v4195 = vunpack.c.h.b16 %v3818
    %v4196 = vunpack.c.l.b16 %v3819
    %v4197 = vunpack.c.h.b16 %v3819
    %v4198 = vunpack.c.l.b16 %v3820
    %v4199 = vunpack.c.h.b16 %v3820
    %v4200 = vunpack.c.l.b16 %v3821
    %v4201 = vunpack.c.h.b16 %v3821
    %v4202 = vunpack.c.l.b16 %v3822
    %v4203 = vunpack.c.h.b16 %v3822
    %v4204 = vunpack.c.l.b16 %v3823
    %v4205 = vunpack.c.h.b16 %v3823
    %v4206 = vunpack.c.l.b16 %v3824
    %v4207 = vunpack.c.h.b16 %v3824
    %v4208 = vunpack.c.l.b16 %v3825
    %v4209 = vunpack.c.h.b16 %v3825
    %v4210 = vunpack.c.l.b16 %v3826
    %v4211 = vunpack.c.h.b16 %v3826
    %v4212 = vunpack.c.l.b16 %v3827
    %v4213 = vunpack.c.h.b16 %v3827
    %v4214 = vunpack.c.l.b16 %v3828
    %v4215 = vunpack.c.h.b16 %v3828
    %v4216 = vunpack.c.l.b16 %v3829
    %v4217 = vunpack.c.h.b16 %v3829
    %v4218 = vunpack.c.l.b16 %v3830
    %v4219 = vunpack.c.h.b16 %v3830
    %v4220 = vunpack.c.l.b16 %v3831
    %v4221 = vunpack.c.h.b16 %v3831
    %v4222 = vunpack.c.l.b16 %v3832
    %v4223 = vunpack.c.h.b16 %v3832
    %v4224 = vunpack.c.l.b16 %v3833
    %v4225 = vunpack.c.h.b16 %v3833
    %v4226 = vunpack.c.l.b16 %v3834
    %v4227 = vunpack.c.h.b16 %v3834
    %v4228 = vunpack.c.l.b16 %v3835
    %v4229 = vunpack.c.h.b16 %v3835
    %v4230 = vunpack.c.l.b16 %v3836
    %v4231 = vunpack.c.h.b16 %v3836
    %v4232 = vunpack.c.l.b16 %v3837
    %v4233 = vunpack.c.h.b16 %v3837
    %v4234 = vpack.c.b16 %v3980, %v3978
    %v4235 = vpack.c.b16 %v3981, %v3979
    %v4236 = vpack.c.b16 %v3984, %v3982
    %v4237 = vpack.c.b16 %v3985, %v3983
    %v4238 = vpack.c.b16 %v3988, %v3986
    %v4239 = vpack.c.b16 %v3989, %v3987
    %v4240 = vpack.c.b16 %v3992, %v3990
    %v4241 = vpack.c.b16 %v3993, %v3991
    %v4242 = vpack.c.b16 %v3996, %v3994
    %v4243 = vpack.c.b16 %v3997, %v3995
    %v4244 = vpack.c.b16 %v4000, %v3998
    %v4245 = vpack.c.b16 %v4001, %v3999
    %v4246 = vpack.c.b16 %v4004, %v4002
    %v4247 = vpack.c.b16 %v4005, %v4003
    %v4248 = vpack.c.b16 %v4008, %v4006
    %v4249 = vpack.c.b16 %v4009, %v4007
    %v4250 = vpack.c.b16 %v4012, %v4010
    %v4251 = vpack.c.b16 %v4013, %v4011
    %v4252 = vpack.c.b16 %v4016, %v4014
    %v4253 = vpack.c.b16 %v4017, %v4015
    %v4254 = vpack.c.b16 %v4020, %v4018
    %v4255 = vpack.c.b16 %v4021, %v4019
    %v4256 = vpack.c.b16 %v4024, %v4022
    %v4257 = vpack.c.b16 %v4025, %v4023
    %v4258 = vpack.c.b16 %v4028, %v4026
    %v4259 = vpack.c.b16 %v4029, %v4027
    %v4260 = vpack.c.b16 %v4032, %v4030
    %v4261 = vpack.c.b16 %v4033, %v4031
    %v4262 = vpack.c.b16 %v4036, %v4034
    %v4263 = vpack.c.b16 %v4037, %v4035
    %v4264 = vpack.c.b16 %v4040, %v4038
    %v4265 = vpack.c.b16 %v4041, %v4039
    %v4266 = vpack.c.b16 %v4044, %v4042
    %v4267 = vpack.c.b16 %v4045, %v4043
    %v4268 = vpack.c.b16 %v4048, %v4046
    %v4269 = vpack.c.b16 %v4049, %v4047
    %v4270 = vpack.c.b16 %v4052, %v4050
    %v4271 = vpack.c.b16 %v4053, %v4051
    %v4272 = vpack.c.b16 %v4056, %v4054
    %v4273 = vpack.c.b16 %v4057, %v4055
    %v4274 = vpack.c.b16 %v4060, %v4058
    %v4275 = vpack.c.b16 %v4061, %v4059
    %v4276 = vpack.c.b16 %v4064, %v4062
    %v4277 = vpack.c.b16 %v4065, %v4063
    %v4278 = vpack.c.b16 %v4068, %v4066
    %v4279 = vpack.c.b16 %v4069, %v4067
    %v4280 = vpack.c.b16 %v4072, %v4070
    %v4281 = vpack.c.b16 %v4073, %v4071
    %v4282 = vpack.c.b16 %v4076, %v4074
    %v4283 = vpack.c.b16 %v4077, %v4075
    %v4284 = vpack.c.b16 %v4080, %v4078
    %v4285 = vpack.c.b16 %v4081, %v4079
    %v4286 = vpack.c.b16 %v4084, %v4082
    %v4287 = vpack.c.b16 %v4085, %v4083
    %v4288 = vpack.c.b16 %v4088, %v4086
    %v4289 = vpack.c.b16 %v4089, %v4087
    %v4290 = vpack.c.b16 %v4092, %v4090
    %v4291 = vpack.c.b16 %v4093, %v4091
    %v4292 = vpack.c.b16 %v4096, %v4094
    %v4293 = vpack.c.b16 %v4097, %v4095
    %v4294 = vpack.c.b16 %v4100, %v4098
    %v4295 = vpack.c.b16 %v4101, %v4099
    %v4296 = vpack.c.b16 %v4104, %v4102
    %v4297 = vpack.c.b16 %v4105, %v4103
    %v4298 = vpack.c.b16 %v4108, %v4106
    %v4299 = vpack.c.b16 %v4109, %v4107
    %v4300 = vpack.c.b16 %v4112, %v4110
    %v4301 = vpack.c.b16 %v4113, %v4111
    %v4302 = vpack.c.b16 %v4116, %v4114
    %v4303 = vpack.c.b16 %v4117, %v4115
    %v4304 = vpack.c.b16 %v4120, %v4118
    %v4305 = vpack.c.b16 %v4121, %v4119
    %v4306 = vpack.c.b16 %v4124, %v4122
    %v4307 = vpack.c.b16 %v4125, %v4123
    %v4308 = vpack.c.b16 %v4128, %v4126
    %v4309 = vpack.c.b16 %v4129, %v4127
    %v4310 = vpack.c.b16 %v4132, %v4130
    %v4311 = vpack.c.b16 %v4133, %v4131
    %v4312 = vpack.c.b16 %v4136, %v4134
    %v4313 = vpack.c.b16 %v4137, %v4135
    %v4314 = vpack.c.b16 %v4140, %v4138
    %v4315 = vpack.c.b16 %v4141, %v4139
    %v4316 = vpack.c.b16 %v4144, %v4142
    %v4317 = vpack.c.b16 %v4145, %v4143
    %v4318 = vpack.c.b16 %v4148, %v4146
    %v4319 = vpack.c.b16 %v4149, %v4147
    %v4320 = vpack.c.b16 %v4152, %v4150
    %v4321 = vpack.c.b16 %v4153, %v4151
    %v4322 = vpack.c.b16 %v4156, %v4154
    %v4323 = vpack.c.b16 %v4157, %v4155
    %v4324 = vpack.c.b16 %v4160, %v4158
    %v4325 = vpack.c.b16 %v4161, %v4159
    %v4326 = vpack.c.b16 %v4164, %v4162
    %v4327 = vpack.c.b16 %v4165, %v4163
    %v4328 = vpack.c.b16 %v4168, %v4166
    %v4329 = vpack.c.b16 %v4169, %v4167
    %v4330 = vpack.c.b16 %v4172, %v4170
    %v4331 = vpack.c.b16 %v4173, %v4171
    %v4332 = vpack.c.b16 %v4176, %v4174
    %v4333 = vpack.c.b16 %v4177, %v4175
    %v4334 = vpack.c.b16 %v4180, %v4178
    %v4335 = vpack.c.b16 %v4181, %v4179
    %v4336 = vpack.c.b16 %v4184, %v4182
    %v4337 = vpack.c.b16 %v4185, %v4183
    %v4338 = vpack.c.b16 %v4188, %v4186
    %v4339 = vpack.c.b16 %v4189, %v4187
    %v4340 = vpack.c.b16 %v4192, %v4190
    %v4341 = vpack.c.b16 %v4193, %v4191
    %v4342 = vpack.c.b16 %v4196, %v4194
    %v4343 = vpack.c.b16 %v4197, %v4195
    %v4344 = vpack.c.b16 %v4200, %v4198
    %v4345 = vpack.c.b16 %v4201, %v4199
    %v4346 = vpack.c.b16 %v4204, %v4202
    %v4347 = vpack.c.b16 %v4205, %v4203
    %v4348 = vpack.c.b16 %v4208, %v4206
    %v4349 = vpack.c.b16 %v4209, %v4207
    %v4350 = vpack.c.b16 %v4212, %v4210
    %v4351 = vpack.c.b16 %v4213, %v4211
    %v4352 = vpack.c.b16 %v4216, %v4214
    %v4353 = vpack.c.b16 %v4217, %v4215
    %v4354 = vpack.c.b16 %v4220, %v4218
    %v4355 = vpack.c.b16 %v4221, %v4219
    %v4356 = vpack.c.b16 %v4224, %v4222
    %v4357 = vpack.c.b16 %v4225, %v4223
    %v4358 = vpack.c.b16 %v4228, %v4226
    %v4359 = vpack.c.b16 %v4229, %v4227
    %v4360 = vpack.c.b16 %v4232, %v4230
    %v4361 = vpack.c.b16 %v4233, %v4231
    %4490 = vmatprep.subr.bf16.mxu0 %v4249
    %4491 = vmatpush1.bf16.msra.mxu0 %v4248
    %4492 = vmatprep.subr.bf16.mxu0 %v4247
    %4493 = vmatpush1.bf16.msra.mxu0 %v4246
    %4494 = vmatprep.subr.bf16.mxu0 %v4245
    %4495 = vmatpush1.bf16.msra.mxu0 %v4244
    %4496 = vmatprep.subr.bf16.mxu0 %v4243
    %4497 = vmatpush1.bf16.msra.mxu0 %v4242
    %4498 = vmatprep.subr.bf16.mxu0 %v4241
    %4499 = vmatpush1.bf16.msra.mxu0 %v4240
    %4500 = vmatprep.subr.bf16.mxu0 %v4239
    %4501 = vmatpush1.bf16.msra.mxu0 %v4238
    %4502 = vmatprep.subr.bf16.mxu0 %v4237
    %4503 = vmatpush1.bf16.msra.mxu0 %v4236
    %4504 = vmatprep.subr.bf16.mxu0 %v4235
    %4505 = vmatpush1.bf16.msra.mxu0 %v4234
    %4506 = vmatprep.subr.bf16.mxu0 %v4265
    %4507 = vmatpush2.bf16.msra.mxu0 %v4264
    %4508 = vmatprep.subr.bf16.mxu0 %v4263
    %4509 = vmatpush2.bf16.msra.mxu0 %v4262
    %4510 = vmatprep.subr.bf16.mxu0 %v4261
    %4511 = vmatpush2.bf16.msra.mxu0 %v4260
    %4512 = vmatprep.subr.bf16.mxu0 %v4259
    %4513 = vmatpush2.bf16.msra.mxu0 %v4258
    %4514 = vmatprep.subr.bf16.mxu0 %v4257
    %4515 = vmatpush2.bf16.msra.mxu0 %v4256
    %4516 = vmatprep.subr.bf16.mxu0 %v4255
    %4517 = vmatpush2.bf16.msra.mxu0 %v4254
    %4518 = vmatprep.subr.bf16.mxu0 %v4253
    %4519 = vmatpush2.bf16.msra.mxu0 %v4252
    %4520 = vmatprep.subr.bf16.mxu0 %v4251
    %4521 = vmatpush2.bf16.msra.mxu0 %v4250
    %4522 = vmatprep.mubr.bf16.mxu0 %v3703
    %4523 = vmatmul.mubr.bf16.gmra.mxu0 %v3702
    %v4524 = vpop.f32.mrf.mxu0
    %v4525 = vadd.f32 %v3843, %v4524
    %v4526 = vpop.f32.mrf.mxu0
    %v4527 = vadd.f32 %v3847, %v4526
    %v4528 = vpop.f32.mrf.mxu0
    %v4529 = vpop.f32.mrf.mxu0
    %4530 = vdwg.mxu0
    %4531 = vmatprep.subr.bf16.mxu0 %v4281
    %4532 = vmatpush1.bf16.msra.mxu0 %v4280
    %4533 = vmatprep.subr.bf16.mxu0 %v4279
    %4534 = vmatpush1.bf16.msra.mxu0 %v4278
    %4535 = vmatprep.subr.bf16.mxu0 %v4277
    %4536 = vmatpush1.bf16.msra.mxu0 %v4276
    %4537 = vmatprep.subr.bf16.mxu0 %v4275
    %4538 = vmatpush1.bf16.msra.mxu0 %v4274
    %4539 = vmatprep.subr.bf16.mxu0 %v4273
    %4540 = vmatpush1.bf16.msra.mxu0 %v4272
    %4541 = vmatprep.subr.bf16.mxu0 %v4271
    %4542 = vmatpush1.bf16.msra.mxu0 %v4270
    %4543 = vmatprep.subr.bf16.mxu0 %v4269
    %4544 = vmatpush1.bf16.msra.mxu0 %v4268
    %4545 = vmatprep.subr.bf16.mxu0 %v4267
    %4546 = vmatpush1.bf16.msra.mxu0 %v4266
    %4547 = vmatprep.subr.bf16.mxu0 %v4297
    %4548 = vmatpush2.bf16.msra.mxu0 %v4296
    %4549 = vmatprep.subr.bf16.mxu0 %v4295
    %4550 = vmatpush2.bf16.msra.mxu0 %v4294
    %4551 = vmatprep.subr.bf16.mxu0 %v4293
    %4552 = vmatpush2.bf16.msra.mxu0 %v4292
    %4553 = vmatprep.subr.bf16.mxu0 %v4291
    %4554 = vmatpush2.bf16.msra.mxu0 %v4290
    %4555 = vmatprep.subr.bf16.mxu0 %v4289
    %4556 = vmatpush2.bf16.msra.mxu0 %v4288
    %4557 = vmatprep.subr.bf16.mxu0 %v4287
    %4558 = vmatpush2.bf16.msra.mxu0 %v4286
    %4559 = vmatprep.subr.bf16.mxu0 %v4285
    %4560 = vmatpush2.bf16.msra.mxu0 %v4284
    %4561 = vmatprep.subr.bf16.mxu0 %v4283
    %4562 = vmatpush2.bf16.msra.mxu0 %v4282
    %4563 = vmatprep.mubr.bf16.mxu0 %v3705
    %4564 = vmatmul.mubr.bf16.gmra.mxu0 %v3704
    %v4565 = vpop.f32.mrf.mxu0
    %v4566 = vadd.f32 %v4525, %v4565
    %v4567 = vpop.f32.mrf.mxu0
    %v4568 = vadd.f32 %v4527, %v4567
    %v4569 = vpop.f32.mrf.mxu0
    %v4570 = vpop.f32.mrf.mxu0
    %4571 = vdwg.mxu0
    %4572 = vmatprep.subr.bf16.mxu0 %v4313
    %4573 = vmatpush1.bf16.msra.mxu0 %v4312
    %4574 = vmatprep.subr.bf16.mxu0 %v4311
    %4575 = vmatpush1.bf16.msra.mxu0 %v4310
    %4576 = vmatprep.subr.bf16.mxu0 %v4309
    %4577 = vmatpush1.bf16.msra.mxu0 %v4308
    %4578 = vmatprep.subr.bf16.mxu0 %v4307
    %4579 = vmatpush1.bf16.msra.mxu0 %v4306
    %4580 = vmatprep.subr.bf16.mxu0 %v4305
    %4581 = vmatpush1.bf16.msra.mxu0 %v4304
    %4582 = vmatprep.subr.bf16.mxu0 %v4303
    %4583 = vmatpush1.bf16.msra.mxu0 %v4302
    %4584 = vmatprep.subr.bf16.mxu0 %v4301
    %4585 = vmatpush1.bf16.msra.mxu0 %v4300
    %4586 = vmatprep.subr.bf16.mxu0 %v4299
    %4587 = vmatpush1.bf16.msra.mxu0 %v4298
    %4588 = vmatprep.subr.bf16.mxu0 %v4329
    %4589 = vmatpush2.bf16.msra.mxu0 %v4328
    %4590 = vmatprep.subr.bf16.mxu0 %v4327
    %4591 = vmatpush2.bf16.msra.mxu0 %v4326
    %4592 = vmatprep.subr.bf16.mxu0 %v4325
    %4593 = vmatpush2.bf16.msra.mxu0 %v4324
    %4594 = vmatprep.subr.bf16.mxu0 %v4323
    %4595 = vmatpush2.bf16.msra.mxu0 %v4322
    %4596 = vmatprep.subr.bf16.mxu0 %v4321
    %4597 = vmatpush2.bf16.msra.mxu0 %v4320
    %4598 = vmatprep.subr.bf16.mxu0 %v4319
    %4599 = vmatpush2.bf16.msra.mxu0 %v4318
    %4600 = vmatprep.subr.bf16.mxu0 %v4317
    %4601 = vmatpush2.bf16.msra.mxu0 %v4316
    %4602 = vmatprep.subr.bf16.mxu0 %v4315
    %4603 = vmatpush2.bf16.msra.mxu0 %v4314
    %4604 = vmatprep.mubr.bf16.mxu0 %v3707
    %4605 = vmatmul.mubr.bf16.gmra.mxu0 %v3706
    %v4606 = vpop.f32.mrf.mxu0
    %v4607 = vadd.f32 %v4566, %v4606
    %v4608 = vpop.f32.mrf.mxu0
    %v4609 = vadd.f32 %v4568, %v4608
    %v4610 = vpop.f32.mrf.mxu0
    %v4611 = vpop.f32.mrf.mxu0
    %4612 = vdwg.mxu0
    %4613 = vmatprep.subr.bf16.mxu0 %v4345
    %4614 = vmatpush1.bf16.msra.mxu0 %v4344
    %4615 = vmatprep.subr.bf16.mxu0 %v4343
    %4616 = vmatpush1.bf16.msra.mxu0 %v4342
    %4617 = vmatprep.subr.bf16.mxu0 %v4341
    %4618 = vmatpush1.bf16.msra.mxu0 %v4340
    %4619 = vmatprep.subr.bf16.mxu0 %v4339
    %4620 = vmatpush1.bf16.msra.mxu0 %v4338
    %4621 = vmatprep.subr.bf16.mxu0 %v4337
    %4622 = vmatpush1.bf16.msra.mxu0 %v4336
    %4623 = vmatprep.subr.bf16.mxu0 %v4335
    %4624 = vmatpush1.bf16.msra.mxu0 %v4334
    %4625 = vmatprep.subr.bf16.mxu0 %v4333
    %4626 = vmatpush1.bf16.msra.mxu0 %v4332
    %4627 = vmatprep.subr.bf16.mxu0 %v4331
    %4628 = vmatpush1.bf16.msra.mxu0 %v4330
    %4629 = vmatprep.subr.bf16.mxu0 %v4361
    %4630 = vmatpush2.bf16.msra.mxu0 %v4360
    %4631 = vmatprep.subr.bf16.mxu0 %v4359
    %4632 = vmatpush2.bf16.msra.mxu0 %v4358
    %4633 = vmatprep.subr.bf16.mxu0 %v4357
    %4634 = vmatpush2.bf16.msra.mxu0 %v4356
    %4635 = vmatprep.subr.bf16.mxu0 %v4355
    %4636 = vmatpush2.bf16.msra.mxu0 %v4354
    %4637 = vmatprep.subr.bf16.mxu0 %v4353
    %4638 = vmatpush2.bf16.msra.mxu0 %v4352
    %4639 = vmatprep.subr.bf16.mxu0 %v4351
    %4640 = vmatpush2.bf16.msra.mxu0 %v4350
    %4641 = vmatprep.subr.bf16.mxu0 %v4349
    %4642 = vmatpush2.bf16.msra.mxu0 %v4348
    %4643 = vmatprep.subr.bf16.mxu0 %v4347
    %4644 = vmatpush2.bf16.msra.mxu0 %v4346
    %4645 = vmatprep.mubr.bf16.mxu0 %v3709
    %4646 = vmatmul.mubr.bf16.gmra.mxu0 %v3708
    %v4647 = vpop.f32.mrf.mxu0
    %v4648 = vadd.f32 %v4607, %v4647
    %v4649 = vpop.f32.mrf.mxu0
    %v4650 = vadd.f32 %v4609, %v4649
    %v4651 = vpop.f32.mrf.mxu0
    %v4652 = vpop.f32.mrf.mxu0
    %4653 = vdwg.mxu0
    %v4654 = vtanh.pop %v4648
    %v4655 = vtanh.pop %v4650
    %4656 = vst [vmem:[%s20] sm:$0xff] %v4654
    %4657 = vst [vmem:[%s20 + $0x8] sm:$0xff] %v4655
    // Predicated region
    $region130: #{generator_forward.1} parent=1 // pred_check
      _
    $region131: #{generator_forward.1} parent=1 // pred_check_branch
      %4659 = sbr.rel (0) target = $region133
    $region132: #{generator_forward.1} parent=1 // pred_region
      _
    $region133: #{generator_forward.1} parent=1 // pred_fallthru
      _
    // Predicated region
    $region134: #{generator_forward.1} parent=1 // pred_check
      _
    $region135: #{generator_forward.1} parent=1 // pred_check_branch
      %4661 = sbr.rel (0) target = $region137
    $region136: #{generator_forward.1} parent=1 // pred_region
      _
    $region137: #{generator_forward.1} parent=1 // pred_fallthru
      _
    %4662 = vsyncpa [#allocation3], 1
    %4663 = vsyncpa [#allocation5], 1
    %4664 = vsyncpa [#allocation8], 1
    %4665 = vsyncpa [#allocation11], 1
    %4666 = vsyncpa [#allocation14], 1
    %4667 = vsyncpa [#allocation17], 1
    %4668 = vsyncpa [#allocation20], 1

</llo_original>
